<compile_context>
chip_gen: v6e
topology: v6e:2x2x1
jax: 0.10.0
libtpu: 0.0.40
codegen_flags: <defaults>
</compile_context>

<pallas_src>
import numpy as np
import jax
import jax.numpy as jnp
from jax import lax
from jax.experimental import pallas as pl
from jax.experimental.pallas import tpu as pltpu


# --------------------------------------------------------------------------------------
# Fused kernel builder
# --------------------------------------------------------------------------------------
def make_classify_lstm_kernel(*, num_lstm_layers, num_linear, layer_norm, training,
                              seq_len, batch, hidden, lin_width, eps=1e-5):
    S, B, H, LW, L = seq_len, batch, hidden, lin_width, num_lstm_layers

    def kernel(*refs):
        it = iter(refs)
        x_ref = next(it)            # (S*B, H)   time-major flattened input rows
        wih0_ref = next(it)         # (H, 4H)    layer-0 W_ih^T  (g columns pre-scaled x2)
        whh0_ref = next(it)         # (H, 4H)    layer-0 W_hh^T  (g columns pre-scaled x2)
        bias0_ref = next(it)        # (1, 4H)    layer-0 b_ih+b_hh (g columns pre-scaled x2)
        if L > 1:
            wihL_ref = next(it)     # (L-1, H, 4H)
            whhL_ref = next(it)     # (L-1, H, 4H)
            biasL_ref = next(it)    # (L-1, 1, 4H)
        lin_w, lin_b, ln_g, ln_b = [], [], [], []
        for _ in range(num_linear):
            lin_w.append(next(it))              # (fan_in, LW)
            lin_b.append(next(it))              # (1, LW)
            if layer_norm:
                ln_g.append(next(it))           # (1, LW)
                ln_b.append(next(it))           # (1, LW)
        wout_ref = next(it)         # (1, LW)   final projection as a row vector
        bout_ref = next(it)         # (1, 1)
        out_ref = next(it)          # (S*B, 1)  time-major flattened output
        seq_ref = next(it)          # VMEM scratch (S*B, H): top-layer output sequence

        # Hoisted layer-0 input projection (+ folded bias): one MXU matmul, completely
        # off the serial h/c recurrence.
        xw0 = (jnp.dot(x_ref[...], wih0_ref[...], preferred_element_type=jnp.float32)
               + bias0_ref[...])                                     # (S*B, 4H)

        # Hoist weight/bias loads out of the unrolled time loop (values stay in vregs).
        wih_l = [None] + ([wihL_ref[i] for i in range(L - 1)] if L > 1 else [])
        whh_l = [whh0_ref[...]] + ([whhL_ref[i] for i in range(L - 1)] if L > 1 else [])
        bias_l = [None] + ([biasL_ref[i] for i in range(L - 1)] if L > 1 else [])

        def lstm_cell(gates, c):
            # Single full-width sigmoid (one EUP push); g-gate pre-activations were
            # scaled by 2 at param prep, so tanh(g) = 2*sigmoid(2g) - 1 (VPU FMA).
            sg = jax.nn.sigmoid(gates)                               # (B, 4H)
            g = 2.0 * sg[:, 2 * H:3 * H] - 1.0
            c_new = sg[:, H:2 * H] * c + sg[:, 0:H] * g
            h_new = sg[:, 3 * H:4 * H] * jnp.tanh(c_new)
            return h_new, c_new

        # TODO(synk): hold whh (or stacked [wih;whh]) stationary in MXU weight registers
        # via pltpu.matmul_push_rhs/matmul_acc_lhs/matmul_pop to drop the per-step weight
        # fill from the serial chain (and accumulate in-place in the MRB on v7x).
        h = [jnp.zeros((B, H), jnp.float32) for _ in range(L)]       # carried in vregs
        c = [jnp.zeros((B, H), jnp.float32) for _ in range(L)]

        # Wavefront over (time, layer): (t,l) depends on (t-1,l) and (t,l-1); statically
        # unrolled so the scheduler interleaves the layer chains.
        for t in range(S):
            for l in range(L):
                if l == 0:
                    gates = xw0[t * B:(t + 1) * B, :]                # hoisted input + bias
                else:
                    gates = (jnp.dot(h[l - 1], wih_l[l],
                                     preferred_element_type=jnp.float32) + bias_l[l])
                if t > 0:                                            # h == 0 at t == 0
                    gates = gates + jnp.dot(h[l], whh_l[l],
                                            preferred_element_type=jnp.float32)
                h[l], c[l] = lstm_cell(gates, c[l])
            # Only the top layer touches VMEM, and only off the h/c critical path.
            # TODO(synk): keep these in vregs (list + sublane concat) once the all-vreg
            # head-input assembly is proven cheaper than S masked stores at production S*B.
            seq_ref[pl.ds(t * B, B), :] = h[L - 1]

        # ---------------- MLP head over all (seq*batch) rows ----------------
        xh = seq_ref[...]                                            # (S*B, H)
        for i in range(num_linear):
            xh = jnp.dot(xh, lin_w[i][...],
                         preferred_element_type=jnp.float32) + lin_b[i][...]
            xh = jnp.maximum(xh, 0.0)                                # relu(Linear(x))
            if layer_norm:
                mu = jnp.mean(xh, axis=-1, keepdims=True)
                var = jnp.mean(jnp.square(xh - mu), axis=-1, keepdims=True)
                xh = (xh - mu) * lax.rsqrt(var + eps)
                xh = xh * ln_g[i][...] + ln_b[i][...]
                xh = jnp.maximum(xh, 0.0)                            # relu(LayerNorm(x))

        # Final Linear(LW -> 1): VPU multiply + lane reduction (avoid N=1 MXU matmul).
        y = jnp.sum(xh * wout_ref[...], axis=-1, keepdims=True) + bout_ref[...]
        if not training:                                             # eval: sigmoid
            y = jax.nn.sigmoid(y)
        # TODO(synk): for production S*B, emit a lane-dense (8,128)-padded output slab
        # instead of (S*B, 1) to avoid masked vst.msk partial stores.
        out_ref[...] = y

    return kernel


# --------------------------------------------------------------------------------------
# Wrapper
# --------------------------------------------------------------------------------------
def classify_model_lstm(x, params, *, layer_norm=True, training=False):
    """x: (batch, seq, embedding_dim) -> (batch, seq, 1)"""
    B, S, E = x.shape
    L = params["wih_T"].shape[0]
    num_linear = len(params["lin_w"])
    LW = params["lin_w"][0].shape[1]

    kernel = make_classify_lstm_kernel(
        num_lstm_layers=L, num_linear=num_linear, layer_norm=layer_norm,
        training=training, seq_len=S, batch=B, hidden=E, lin_width=LW)

    # Pre-scale the g-gate columns (2H:3H) of wih/whh/bias by 2 so the kernel recovers
    # tanh(g) from the single full-width sigmoid: tanh(x) = 2*sigmoid(2x) - 1.
    gate_scale = jnp.ones((4 * E,), jnp.float32).at[2 * E:3 * E].set(2.0)
    wih_s = params["wih_T"].astype(jnp.float32) * gate_scale
    whh_s = params["whh_T"].astype(jnp.float32) * gate_scale
    bias_s = params["bias"].astype(jnp.float32) * gate_scale

    # time-major, flattened: row (t*B + b) is (batch b, time t)
    x_tm = jnp.transpose(x, (1, 0, 2)).reshape(S * B, E).astype(jnp.float32)
    inputs = [x_tm, wih_s[0], whh_s[0], bias_s[0]]
    if L > 1:
        inputs += [wih_s[1:], whh_s[1:], bias_s[1:]]
    for i in range(num_linear):
        inputs += [params["lin_w"][i], params["lin_b"][i]]
        if layer_norm:
            inputs += [params["ln_g"][i], params["ln_b"][i]]
    inputs += [params["w_out"].reshape(1, LW), params["b_out"]]

    # TODO(synk): on v7x add grid=(B,) with dimension_semantics=("parallel",) (batch-major
    # layout, per-b BlockSpecs) so the independent per-example recurrences run on both
    # TensorCores; kept gridless here since a batch grid only serializes on 1-TC v5e/v6e.
    # TODO(synk): for production-sized S*B, block the hoisted projection and the MLP head
    # over a grid (>=512-row tiles, double-buffered), sized against 64 MiB VMEM on v7x.
    # TODO(synk): optionally cast matmul operands to bf16 (keep f32 accumulation) once the
    # recurrence is validated against the reference at the required tolerance.
    vmem = pl.BlockSpec(memory_space=pltpu.MemorySpace.VMEM)
    out_flat = pl.pallas_call(
        kernel,
        out_shape=jax.ShapeDtypeStruct((S * B, 1), jnp.float32),
        in_specs=[vmem] * len(inputs),
        out_specs=vmem,
        scratch_shapes=[pltpu.VMEM((S * B, E), jnp.float32)],   # top-layer sequence buffer
    )(*inputs)
    # rows are time-major (S*B, 1) -> back to PyTorch (B, S, 1)
    return jnp.transpose(out_flat.reshape(S, B, 1), (1, 0, 2))


# --------------------------------------------------------------------------------------
# Deterministic parameter init (same shapes as the PyTorch module)
# --------------------------------------------------------------------------------------
def init_params(key, *, embedding_dim, lstm_layers, linear_layers, linear_width):
    H, LW = embedding_dim, linear_width
    ks = iter(jax.random.split(key, 4 * lstm_layers + 2 * linear_layers + 2))
    s = 1.0 / np.sqrt(H)
    wih_T = jnp.stack([jax.random.uniform(next(ks), (H, 4 * H), jnp.float32, -s, s)
                       for _ in range(lstm_layers)])
    whh_T = jnp.stack([jax.random.uniform(next(ks), (H, 4 * H), jnp.float32, -s, s)
                       for _ in range(lstm_layers)])
    bias = jnp.stack([(jax.random.uniform(next(ks), (4 * H,), jnp.float32, -s, s)
                       + jax.random.uniform(next(ks), (4 * H,), jnp.float32, -s, s))[None, :]
                      for _ in range(lstm_layers)])
    lin_w, lin_b, ln_g, ln_b = [], [], [], []
    fan_in = H
    for _ in range(linear_layers):
        sw = 1.0 / np.sqrt(fan_in)
        lin_w.append(jax.random.uniform(next(ks), (fan_in, LW), jnp.float32, -sw, sw))
        lin_b.append(jax.random.uniform(next(ks), (1, LW), jnp.float32, -sw, sw))
        ln_g.append(jnp.ones((1, LW), jnp.float32))
        ln_b.append(jnp.zeros((1, LW), jnp.float32))
        fan_in = LW
    so = 1.0 / np.sqrt(LW)
    w_out = jax.random.uniform(next(ks), (LW, 1), jnp.float32, -so, so)
    b_out = jax.random.uniform(next(ks), (1, 1), jnp.float32, -so, so)
    return dict(wih_T=wih_T, whh_T=whh_T, bias=bias, lin_w=lin_w, lin_b=lin_b,
                ln_g=ln_g, ln_b=ln_b, w_out=w_out, b_out=b_out)


# --------------------------------------------------------------------------------------
# Pure-JAX reference (mirrors the PyTorch forward) for validation
# --------------------------------------------------------------------------------------
def reference_forward(x, params, *, layer_norm=True, training=False, eps=1e-5):
    B, S, E = x.shape
    seq = x.astype(jnp.float32)
    for l in range(params["wih_T"].shape[0]):
        h = jnp.zeros((B, E), jnp.float32)
        c = jnp.zeros((B, E), jnp.float32)
        outs = []
        for t in range(S):
            gates = (seq[:, t, :] @ params["wih_T"][l]
                     + h @ params["whh_T"][l] + params["bias"][l])
            i = jax.nn.sigmoid(gates[:, :E])
            f = jax.nn.sigmoid(gates[:, E:2 * E])
            g = jnp.tanh(gates[:, 2 * E:3 * E])
            o = jax.nn.sigmoid(gates[:, 3 * E:])
            c = f * c + i * g
            h = o * jnp.tanh(c)
            outs.append(h)
        seq = jnp.stack(outs, axis=1)
    xf = seq
    for i in range(len(params["lin_w"])):
        xf = jax.nn.relu(xf @ params["lin_w"][i] + params["lin_b"][i][0])
        if layer_norm:
            mu = jnp.mean(xf, -1, keepdims=True)
            var = jnp.mean(jnp.square(xf - mu), -1, keepdims=True)
            xf = (xf - mu) * lax.rsqrt(var + eps) * params["ln_g"][i][0] + params["ln_b"][i][0]
            xf = jax.nn.relu(xf)
    y = xf @ params["w_out"] + params["b_out"][0]
    if not training:
        y = jax.nn.sigmoid(y)
    return y


if __name__ == "__main__":
    # args: lstm_layers=2, linear_layers=2, linear_width=64, layer_norm=True; embedding_dim=32
    B, S, E = 2, 8, 32
    LSTM_LAYERS, LIN_LAYERS, LIN_WIDTH, LAYER_NORM = 2, 2, 64, True

    key = jax.random.PRNGKey(0)
    pkey, xkey = jax.random.split(key)
    params = init_params(pkey, embedding_dim=E, lstm_layers=LSTM_LAYERS,
                         linear_layers=LIN_LAYERS, linear_width=LIN_WIDTH)
    logs = jax.random.normal(xkey, (B, S, E), jnp.float32)

    out = classify_model_lstm(logs, params, layer_norm=LAYER_NORM, training=False)
    out = jax.block_until_ready(out)
    assert out.shape == (B, S, 1)

    ref = reference_forward(logs, params, layer_norm=LAYER_NORM, training=False)
    # atol slightly loosened: kernel recovers tanh(g) as 2*sigmoid(2g)-1 (few-ulp/step delta).
    np.testing.assert_allclose(np.asarray(out), np.asarray(ref), rtol=1e-5, atol=2e-5)
    print("KERNEL_OK")
</pallas_src>

<mosaic_0001>
module attributes {stable_mosaic.version = 11 : i64} {
  func.func @kernel(%arg0: memref<16x32xf32, #tpu.memory_space<vmem>>, %arg1: memref<32x128xf32, #tpu.memory_space<vmem>>, %arg2: memref<32x128xf32, #tpu.memory_space<vmem>>, %arg3: memref<1x128xf32, #tpu.memory_space<vmem>>, %arg4: memref<1x32x128xf32, #tpu.memory_space<vmem>>, %arg5: memref<1x32x128xf32, #tpu.memory_space<vmem>>, %arg6: memref<1x1x128xf32, #tpu.memory_space<vmem>>, %arg7: memref<32x64xf32, #tpu.memory_space<vmem>>, %arg8: memref<1x64xf32, #tpu.memory_space<vmem>>, %arg9: memref<1x64xf32, #tpu.memory_space<vmem>>, %arg10: memref<1x64xf32, #tpu.memory_space<vmem>>, %arg11: memref<64x64xf32, #tpu.memory_space<vmem>>, %arg12: memref<1x64xf32, #tpu.memory_space<vmem>>, %arg13: memref<1x64xf32, #tpu.memory_space<vmem>>, %arg14: memref<1x64xf32, #tpu.memory_space<vmem>>, %arg15: memref<1x64xf32, #tpu.memory_space<vmem>>, %arg16: memref<1x1xf32, #tpu.memory_space<vmem>>, %arg17: memref<16x1xf32, #tpu.memory_space<vmem>>, %arg18: memref<16x32xf32, #tpu.memory_space<vmem>>) attributes {dimension_semantics = [], scalar_prefetch = 0 : i64, scratch_operands = 1 : i64, tpu.core_type = #tpu.core_type<tc>} {
    %c0 = arith.constant 0 : index
    %c0_0 = arith.constant 0 : index
    %0 = vector.load %arg0[%c0, %c0_0] : memref<16x32xf32, #tpu.memory_space<vmem>>, vector<16x32xf32>
    %c0_1 = arith.constant 0 : index
    %c0_2 = arith.constant 0 : index
    %1 = vector.load %arg1[%c0_1, %c0_2] : memref<32x128xf32, #tpu.memory_space<vmem>>, vector<32x128xf32>
    %cst = arith.constant dense<0.000000e+00> : vector<16x128xf32>
    %2 = tpu.matmul %0, %1, %cst {dimension_numbers = #tpu.dot_dimension_numbers<[1], [0], [0], [1], [0, 0, 1, 1], [], []>} : vector<16x32xf32>, vector<32x128xf32>, vector<16x128xf32> -> vector<16x128xf32>
    %c0_3 = arith.constant 0 : index
    %c0_4 = arith.constant 0 : index
    %3 = vector.load %arg3[%c0_3, %c0_4] : memref<1x128xf32, #tpu.memory_space<vmem>>, vector<1x128xf32>
    %4 = vector.broadcast %3 : vector<1x128xf32> to vector<16x128xf32>
    %5 = arith.addf %2, %4 : vector<16x128xf32>
    %c0_5 = arith.constant 0 : index
    %c0_6 = arith.constant 0 : index
    %c0_7 = arith.constant 0 : index
    %6 = vector.load %arg4[%c0_5, %c0_6, %c0_7] : memref<1x32x128xf32, #tpu.memory_space<vmem>>, vector<1x32x128xf32>
    %7 = vector.shape_cast %6 : vector<1x32x128xf32> to vector<32x128xf32>
    %c0_8 = arith.constant 0 : index
    %c0_9 = arith.constant 0 : index
    %8 = vector.load %arg2[%c0_8, %c0_9] : memref<32x128xf32, #tpu.memory_space<vmem>>, vector<32x128xf32>
    %c0_10 = arith.constant 0 : index
    %c0_11 = arith.constant 0 : index
    %c0_12 = arith.constant 0 : index
    %9 = vector.load %arg5[%c0_10, %c0_11, %c0_12] : memref<1x32x128xf32, #tpu.memory_space<vmem>>, vector<1x32x128xf32>
    %10 = vector.shape_cast %9 : vector<1x32x128xf32> to vector<32x128xf32>
    %c0_13 = arith.constant 0 : index
    %c0_14 = arith.constant 0 : index
    %c0_15 = arith.constant 0 : index
    %11 = vector.load %arg6[%c0_13, %c0_14, %c0_15] : memref<1x1x128xf32, #tpu.memory_space<vmem>>, vector<1x1x128xf32>
    %12 = vector.shape_cast %11 : vector<1x1x128xf32> to vector<1x128xf32>
    %cst_16 = arith.constant 0.000000e+00 : f32
    %13 = vector.broadcast %cst_16 : f32 to vector<2x32xf32>
    %cst_17 = arith.constant 0.000000e+00 : f32
    %14 = vector.broadcast %cst_17 : f32 to vector<2x32xf32>
    %15 = vector.extract_strided_slice %5 {offsets = [0, 0], sizes = [2, 128], strides = [1, 1]} : vector<16x128xf32> to vector<2x128xf32>
    %16 = arith.negf %15 : vector<2x128xf32>
    %17 = math.exp %16 : vector<2x128xf32>
    %cst_18 = arith.constant 1.000000e+00 : f32
    %18 = vector.broadcast %cst_18 : f32 to vector<2x128xf32>
    %19 = arith.addf %18, %17 : vector<2x128xf32>
    %20 = arith.divf %18, %19 : vector<2x128xf32>
    %21 = vector.extract_strided_slice %20 {offsets = [0, 64], sizes = [2, 32], strides = [1, 1]} : vector<2x128xf32> to vector<2x32xf32>
    %cst_19 = arith.constant 2.000000e+00 : f32
    %22 = vector.broadcast %cst_19 : f32 to vector<2x32xf32>
    %23 = arith.mulf %22, %21 : vector<2x32xf32>
    %cst_20 = arith.constant 1.000000e+00 : f32
    %24 = vector.broadcast %cst_20 : f32 to vector<2x32xf32>
    %25 = arith.subf %23, %24 : vector<2x32xf32>
    %26 = vector.extract_strided_slice %20 {offsets = [0, 32], sizes = [2, 32], strides = [1, 1]} : vector<2x128xf32> to vector<2x32xf32>
    %27 = arith.mulf %26, %13 : vector<2x32xf32>
    %28 = vector.extract_strided_slice %20 {offsets = [0, 0], sizes = [2, 32], strides = [1, 1]} : vector<2x128xf32> to vector<2x32xf32>
    %29 = arith.mulf %28, %25 : vector<2x32xf32>
    %30 = arith.addf %27, %29 : vector<2x32xf32>
    %31 = vector.extract_strided_slice %20 {offsets = [0, 96], sizes = [2, 32], strides = [1, 1]} : vector<2x128xf32> to vector<2x32xf32>
    %32 = math.tanh %30 : vector<2x32xf32>
    %33 = arith.mulf %31, %32 : vector<2x32xf32>
    %cst_21 = arith.constant dense<0.000000e+00> : vector<2x128xf32>
    %34 = tpu.matmul %33, %7, %cst_21 {dimension_numbers = #tpu.dot_dimension_numbers<[1], [0], [0], [1], [0, 0, 1, 1], [], []>} : vector<2x32xf32>, vector<32x128xf32>, vector<2x128xf32> -> vector<2x128xf32>
    %35 = vector.broadcast %12 : vector<1x128xf32> to vector<2x128xf32>
    %36 = arith.addf %34, %35 : vector<2x128xf32>
    %37 = arith.negf %36 : vector<2x128xf32>
    %38 = math.exp %37 : vector<2x128xf32>
    %cst_22 = arith.constant 1.000000e+00 : f32
    %39 = vector.broadcast %cst_22 : f32 to vector<2x128xf32>
    %40 = arith.addf %39, %38 : vector<2x128xf32>
    %41 = arith.divf %39, %40 : vector<2x128xf32>
    %42 = vector.extract_strided_slice %41 {offsets = [0, 64], sizes = [2, 32], strides = [1, 1]} : vector<2x128xf32> to vector<2x32xf32>
    %cst_23 = arith.constant 2.000000e+00 : f32
    %43 = vector.broadcast %cst_23 : f32 to vector<2x32xf32>
    %44 = arith.mulf %43, %42 : vector<2x32xf32>
    %cst_24 = arith.constant 1.000000e+00 : f32
    %45 = vector.broadcast %cst_24 : f32 to vector<2x32xf32>
    %46 = arith.subf %44, %45 : vector<2x32xf32>
    %47 = vector.extract_strided_slice %41 {offsets = [0, 32], sizes = [2, 32], strides = [1, 1]} : vector<2x128xf32> to vector<2x32xf32>
    %48 = arith.mulf %47, %14 : vector<2x32xf32>
    %49 = vector.extract_strided_slice %41 {offsets = [0, 0], sizes = [2, 32], strides = [1, 1]} : vector<2x128xf32> to vector<2x32xf32>
    %50 = arith.mulf %49, %46 : vector<2x32xf32>
    %51 = arith.addf %48, %50 : vector<2x32xf32>
    %52 = vector.extract_strided_slice %41 {offsets = [0, 96], sizes = [2, 32], strides = [1, 1]} : vector<2x128xf32> to vector<2x32xf32>
    %53 = math.tanh %51 : vector<2x32xf32>
    %54 = arith.mulf %52, %53 : vector<2x32xf32>
    %c0_25 = arith.constant 0 : index
    %c0_26 = arith.constant 0 : index
    %55 = vector.load %arg18[%c0_25, %c0_26] : memref<16x32xf32, #tpu.memory_space<vmem>>, vector<2x32xf32>
    tpu.vector_store %arg18[%c0_25, %c0_26], %54 {strides = array<i32>} : memref<16x32xf32, #tpu.memory_space<vmem>>, vector<2x32xf32>,
    %56 = vector.extract_strided_slice %5 {offsets = [2, 0], sizes = [2, 128], strides = [1, 1]} : vector<16x128xf32> to vector<2x128xf32>
    %cst_27 = arith.constant dense<0.000000e+00> : vector<2x128xf32>
    %57 = tpu.matmul %33, %8, %cst_27 {dimension_numbers = #tpu.dot_dimension_numbers<[1], [0], [0], [1], [0, 0, 1, 1], [], []>} : vector<2x32xf32>, vector<32x128xf32>, vector<2x128xf32> -> vector<2x128xf32>
    %58 = arith.addf %56, %57 : vector<2x128xf32>
    %59 = arith.negf %58 : vector<2x128xf32>
    %60 = math.exp %59 : vector<2x128xf32>
    %cst_28 = arith.constant 1.000000e+00 : f32
    %61 = vector.broadcast %cst_28 : f32 to vector<2x128xf32>
    %62 = arith.addf %61, %60 : vector<2x128xf32>
    %63 = arith.divf %61, %62 : vector<2x128xf32>
    %64 = vector.extract_strided_slice %63 {offsets = [0, 64], sizes = [2, 32], strides = [1, 1]} : vector<2x128xf32> to vector<2x32xf32>
    %cst_29 = arith.constant 2.000000e+00 : f32
    %65 = vector.broadcast %cst_29 : f32 to vector<2x32xf32>
    %66 = arith.mulf %65, %64 : vector<2x32xf32>
    %cst_30 = arith.constant 1.000000e+00 : f32
    %67 = vector.broadcast %cst_30 : f32 to vector<2x32xf32>
    %68 = arith.subf %66, %67 : vector<2x32xf32>
    %69 = vector.extract_strided_slice %63 {offsets = [0, 32], sizes = [2, 32], strides = [1, 1]} : vector<2x128xf32> to vector<2x32xf32>
    %70 = arith.mulf %69, %30 : vector<2x32xf32>
    %71 = vector.extract_strided_slice %63 {offsets = [0, 0], sizes = [2, 32], strides = [1, 1]} : vector<2x128xf32> to vector<2x32xf32>
    %72 = arith.mulf %71, %68 : vector<2x32xf32>
    %73 = arith.addf %70, %72 : vector<2x32xf32>
    %74 = vector.extract_strided_slice %63 {offsets = [0, 96], sizes = [2, 32], strides = [1, 1]} : vector<2x128xf32> to vector<2x32xf32>
    %75 = math.tanh %73 : vector<2x32xf32>
    %76 = arith.mulf %74, %75 : vector<2x32xf32>
    %cst_31 = arith.constant dense<0.000000e+00> : vector<2x128xf32>
    %77 = tpu.matmul %76, %7, %cst_31 {dimension_numbers = #tpu.dot_dimension_numbers<[1], [0], [0], [1], [0, 0, 1, 1], [], []>} : vector<2x32xf32>, vector<32x128xf32>, vector<2x128xf32> -> vector<2x128xf32>
    %78 = vector.broadcast %12 : vector<1x128xf32> to vector<2x128xf32>
    %79 = arith.addf %77, %78 : vector<2x128xf32>
    %cst_32 = arith.constant dense<0.000000e+00> : vector<2x128xf32>
    %80 = tpu.matmul %54, %10, %cst_32 {dimension_numbers = #tpu.dot_dimension_numbers<[1], [0], [0], [1], [0, 0, 1, 1], [], []>} : vector<2x32xf32>, vector<32x128xf32>, vector<2x128xf32> -> vector<2x128xf32>
    %81 = arith.addf %79, %80 : vector<2x128xf32>
    %82 = arith.negf %81 : vector<2x128xf32>
    %83 = math.exp %82 : vector<2x128xf32>
    %cst_33 = arith.constant 1.000000e+00 : f32
    %84 = vector.broadcast %cst_33 : f32 to vector<2x128xf32>
    %85 = arith.addf %84, %83 : vector<2x128xf32>
    %86 = arith.divf %84, %85 : vector<2x128xf32>
    %87 = vector.extract_strided_slice %86 {offsets = [0, 64], sizes = [2, 32], strides = [1, 1]} : vector<2x128xf32> to vector<2x32xf32>
    %cst_34 = arith.constant 2.000000e+00 : f32
    %88 = vector.broadcast %cst_34 : f32 to vector<2x32xf32>
    %89 = arith.mulf %88, %87 : vector<2x32xf32>
    %cst_35 = arith.constant 1.000000e+00 : f32
    %90 = vector.broadcast %cst_35 : f32 to vector<2x32xf32>
    %91 = arith.subf %89, %90 : vector<2x32xf32>
    %92 = vector.extract_strided_slice %86 {offsets = [0, 32], sizes = [2, 32], strides = [1, 1]} : vector<2x128xf32> to vector<2x32xf32>
    %93 = arith.mulf %92, %51 : vector<2x32xf32>
    %94 = vector.extract_strided_slice %86 {offsets = [0, 0], sizes = [2, 32], strides = [1, 1]} : vector<2x128xf32> to vector<2x32xf32>
    %95 = arith.mulf %94, %91 : vector<2x32xf32>
    %96 = arith.addf %93, %95 : vector<2x32xf32>
    %97 = vector.extract_strided_slice %86 {offsets = [0, 96], sizes = [2, 32], strides = [1, 1]} : vector<2x128xf32> to vector<2x32xf32>
    %98 = math.tanh %96 : vector<2x32xf32>
    %99 = arith.mulf %97, %98 : vector<2x32xf32>
    %c2 = arith.constant 2 : index
    %c0_36 = arith.constant 0 : index
    %100 = vector.load %arg18[%c2, %c0_36] : memref<16x32xf32, #tpu.memory_space<vmem>>, vector<2x32xf32>
    tpu.vector_store %arg18[%c2, %c0_36], %99 {strides = array<i32>} : memref<16x32xf32, #tpu.memory_space<vmem>>, vector<2x32xf32>,
    %101 = vector.extract_strided_slice %5 {offsets = [4, 0], sizes = [2, 128], strides = [1, 1]} : vector<16x128xf32> to vector<2x128xf32>
    %cst_37 = arith.constant dense<0.000000e+00> : vector<2x128xf32>
    %102 = tpu.matmul %76, %8, %cst_37 {dimension_numbers = #tpu.dot_dimension_numbers<[1], [0], [0], [1], [0, 0, 1, 1], [], []>} : vector<2x32xf32>, vector<32x128xf32>, vector<2x128xf32> -> vector<2x128xf32>
    %103 = arith.addf %101, %102 : vector<2x128xf32>
    %104 = arith.negf %103 : vector<2x128xf32>
    %105 = math.exp %104 : vector<2x128xf32>
    %cst_38 = arith.constant 1.000000e+00 : f32
    %106 = vector.broadcast %cst_38 : f32 to vector<2x128xf32>
    %107 = arith.addf %106, %105 : vector<2x128xf32>
    %108 = arith.divf %106, %107 : vector<2x128xf32>
    %109 = vector.extract_strided_slice %108 {offsets = [0, 64], sizes = [2, 32], strides = [1, 1]} : vector<2x128xf32> to vector<2x32xf32>
    %cst_39 = arith.constant 2.000000e+00 : f32
    %110 = vector.broadcast %cst_39 : f32 to vector<2x32xf32>
    %111 = arith.mulf %110, %109 : vector<2x32xf32>
    %cst_40 = arith.constant 1.000000e+00 : f32
    %112 = vector.broadcast %cst_40 : f32 to vector<2x32xf32>
    %113 = arith.subf %111, %112 : vector<2x32xf32>
    %114 = vector.extract_strided_slice %108 {offsets = [0, 32], sizes = [2, 32], strides = [1, 1]} : vector<2x128xf32> to vector<2x32xf32>
    %115 = arith.mulf %114, %73 : vector<2x32xf32>
    %116 = vector.extract_strided_slice %108 {offsets = [0, 0], sizes = [2, 32], strides = [1, 1]} : vector<2x128xf32> to vector<2x32xf32>
    %117 = arith.mulf %116, %113 : vector<2x32xf32>
    %118 = arith.addf %115, %117 : vector<2x32xf32>
    %119 = vector.extract_strided_slice %108 {offsets = [0, 96], sizes = [2, 32], strides = [1, 1]} : vector<2x128xf32> to vector<2x32xf32>
    %120 = math.tanh %118 : vector<2x32xf32>
    %121 = arith.mulf %119, %120 : vector<2x32xf32>
    %cst_41 = arith.constant dense<0.000000e+00> : vector<2x128xf32>
    %122 = tpu.matmul %121, %7, %cst_41 {dimension_numbers = #tpu.dot_dimension_numbers<[1], [0], [0], [1], [0, 0, 1, 1], [], []>} : vector<2x32xf32>, vector<32x128xf32>, vector<2x128xf32> -> vector<2x128xf32>
    %123 = vector.broadcast %12 : vector<1x128xf32> to vector<2x128xf32>
    %124 = arith.addf %122, %123 : vector<2x128xf32>
    %cst_42 = arith.constant dense<0.000000e+00> : vector<2x128xf32>
    %125 = tpu.matmul %99, %10, %cst_42 {dimension_numbers = #tpu.dot_dimension_numbers<[1], [0], [0], [1], [0, 0, 1, 1], [], []>} : vector<2x32xf32>, vector<32x128xf32>, vector<2x128xf32> -> vector<2x128xf32>
    %126 = arith.addf %124, %125 : vector<2x128xf32>
    %127 = arith.negf %126 : vector<2x128xf32>
    %128 = math.exp %127 : vector<2x128xf32>
    %cst_43 = arith.constant 1.000000e+00 : f32
    %129 = vector.broadcast %cst_43 : f32 to vector<2x128xf32>
    %130 = arith.addf %129, %128 : vector<2x128xf32>
    %131 = arith.divf %129, %130 : vector<2x128xf32>
    %132 = vector.extract_strided_slice %131 {offsets = [0, 64], sizes = [2, 32], strides = [1, 1]} : vector<2x128xf32> to vector<2x32xf32>
    %cst_44 = arith.constant 2.000000e+00 : f32
    %133 = vector.broadcast %cst_44 : f32 to vector<2x32xf32>
    %134 = arith.mulf %133, %132 : vector<2x32xf32>
    %cst_45 = arith.constant 1.000000e+00 : f32
    %135 = vector.broadcast %cst_45 : f32 to vector<2x32xf32>
    %136 = arith.subf %134, %135 : vector<2x32xf32>
    %137 = vector.extract_strided_slice %131 {offsets = [0, 32], sizes = [2, 32], strides = [1, 1]} : vector<2x128xf32> to vector<2x32xf32>
    %138 = arith.mulf %137, %96 : vector<2x32xf32>
    %139 = vector.extract_strided_slice %131 {offsets = [0, 0], sizes = [2, 32], strides = [1, 1]} : vector<2x128xf32> to vector<2x32xf32>
    %140 = arith.mulf %139, %136 : vector<2x32xf32>
    %141 = arith.addf %138, %140 : vector<2x32xf32>
    %142 = vector.extract_strided_slice %131 {offsets = [0, 96], sizes = [2, 32], strides = [1, 1]} : vector<2x128xf32> to vector<2x32xf32>
    %143 = math.tanh %141 : vector<2x32xf32>
    %144 = arith.mulf %142, %143 : vector<2x32xf32>
    %c4 = arith.constant 4 : index
    %c0_46 = arith.constant 0 : index
    %145 = vector.load %arg18[%c4, %c0_46] : memref<16x32xf32, #tpu.memory_space<vmem>>, vector<2x32xf32>
    tpu.vector_store %arg18[%c4, %c0_46], %144 {strides = array<i32>} : memref<16x32xf32, #tpu.memory_space<vmem>>, vector<2x32xf32>,
    %146 = vector.extract_strided_slice %5 {offsets = [6, 0], sizes = [2, 128], strides = [1, 1]} : vector<16x128xf32> to vector<2x128xf32>
    %cst_47 = arith.constant dense<0.000000e+00> : vector<2x128xf32>
    %147 = tpu.matmul %121, %8, %cst_47 {dimension_numbers = #tpu.dot_dimension_numbers<[1], [0], [0], [1], [0, 0, 1, 1], [], []>} : vector<2x32xf32>, vector<32x128xf32>, vector<2x128xf32> -> vector<2x128xf32>
    %148 = arith.addf %146, %147 : vector<2x128xf32>
    %149 = arith.negf %148 : vector<2x128xf32>
    %150 = math.exp %149 : vector<2x128xf32>
    %cst_48 = arith.constant 1.000000e+00 : f32
    %151 = vector.broadcast %cst_48 : f32 to vector<2x128xf32>
    %152 = arith.addf %151, %150 : vector<2x128xf32>
    %153 = arith.divf %151, %152 : vector<2x128xf32>
    %154 = vector.extract_strided_slice %153 {offsets = [0, 64], sizes = [2, 32], strides = [1, 1]} : vector<2x128xf32> to vector<2x32xf32>
    %cst_49 = arith.constant 2.000000e+00 : f32
    %155 = vector.broadcast %cst_49 : f32 to vector<2x32xf32>
    %156 = arith.mulf %155, %154 : vector<2x32xf32>
    %cst_50 = arith.constant 1.000000e+00 : f32
    %157 = vector.broadcast %cst_50 : f32 to vector<2x32xf32>
    %158 = arith.subf %156, %157 : vector<2x32xf32>
    %159 = vector.extract_strided_slice %153 {offsets = [0, 32], sizes = [2, 32], strides = [1, 1]} : vector<2x128xf32> to vector<2x32xf32>
    %160 = arith.mulf %159, %118 : vector<2x32xf32>
    %161 = vector.extract_strided_slice %153 {offsets = [0, 0], sizes = [2, 32], strides = [1, 1]} : vector<2x128xf32> to vector<2x32xf32>
    %162 = arith.mulf %161, %158 : vector<2x32xf32>
    %163 = arith.addf %160, %162 : vector<2x32xf32>
    %164 = vector.extract_strided_slice %153 {offsets = [0, 96], sizes = [2, 32], strides = [1, 1]} : vector<2x128xf32> to vector<2x32xf32>
    %165 = math.tanh %163 : vector<2x32xf32>
    %166 = arith.mulf %164, %165 : vector<2x32xf32>
    %cst_51 = arith.constant dense<0.000000e+00> : vector<2x128xf32>
    %167 = tpu.matmul %166, %7, %cst_51 {dimension_numbers = #tpu.dot_dimension_numbers<[1], [0], [0], [1], [0, 0, 1, 1], [], []>} : vector<2x32xf32>, vector<32x128xf32>, vector<2x128xf32> -> vector<2x128xf32>
    %168 = vector.broadcast %12 : vector<1x128xf32> to vector<2x128xf32>
    %169 = arith.addf %167, %168 : vector<2x128xf32>
    %cst_52 = arith.constant dense<0.000000e+00> : vector<2x128xf32>
    %170 = tpu.matmul %144, %10, %cst_52 {dimension_numbers = #tpu.dot_dimension_numbers<[1], [0], [0], [1], [0, 0, 1, 1], [], []>} : vector<2x32xf32>, vector<32x128xf32>, vector<2x128xf32> -> vector<2x128xf32>
    %171 = arith.addf %169, %170 : vector<2x128xf32>
    %172 = arith.negf %171 : vector<2x128xf32>
    %173 = math.exp %172 : vector<2x128xf32>
    %cst_53 = arith.constant 1.000000e+00 : f32
    %174 = vector.broadcast %cst_53 : f32 to vector<2x128xf32>
    %175 = arith.addf %174, %173 : vector<2x128xf32>
    %176 = arith.divf %174, %175 : vector<2x128xf32>
    %177 = vector.extract_strided_slice %176 {offsets = [0, 64], sizes = [2, 32], strides = [1, 1]} : vector<2x128xf32> to vector<2x32xf32>
    %cst_54 = arith.constant 2.000000e+00 : f32
    %178 = vector.broadcast %cst_54 : f32 to vector<2x32xf32>
    %179 = arith.mulf %178, %177 : vector<2x32xf32>
    %cst_55 = arith.constant 1.000000e+00 : f32
    %180 = vector.broadcast %cst_55 : f32 to vector<2x32xf32>
    %181 = arith.subf %179, %180 : vector<2x32xf32>
    %182 = vector.extract_strided_slice %176 {offsets = [0, 32], sizes = [2, 32], strides = [1, 1]} : vector<2x128xf32> to vector<2x32xf32>
    %183 = arith.mulf %182, %141 : vector<2x32xf32>
    %184 = vector.extract_strided_slice %176 {offsets = [0, 0], sizes = [2, 32], strides = [1, 1]} : vector<2x128xf32> to vector<2x32xf32>
    %185 = arith.mulf %184, %181 : vector<2x32xf32>
    %186 = arith.addf %183, %185 : vector<2x32xf32>
    %187 = vector.extract_strided_slice %176 {offsets = [0, 96], sizes = [2, 32], strides = [1, 1]} : vector<2x128xf32> to vector<2x32xf32>
    %188 = math.tanh %186 : vector<2x32xf32>
    %189 = arith.mulf %187, %188 : vector<2x32xf32>
    %c6 = arith.constant 6 : index
    %c0_56 = arith.constant 0 : index
    %190 = vector.load %arg18[%c6, %c0_56] : memref<16x32xf32, #tpu.memory_space<vmem>>, vector<2x32xf32>
    tpu.vector_store %arg18[%c6, %c0_56], %189 {strides = array<i32>} : memref<16x32xf32, #tpu.memory_space<vmem>>, vector<2x32xf32>,
    %191 = vector.extract_strided_slice %5 {offsets = [8, 0], sizes = [2, 128], strides = [1, 1]} : vector<16x128xf32> to vector<2x128xf32>
    %cst_57 = arith.constant dense<0.000000e+00> : vector<2x128xf32>
    %192 = tpu.matmul %166, %8, %cst_57 {dimension_numbers = #tpu.dot_dimension_numbers<[1], [0], [0], [1], [0, 0, 1, 1], [], []>} : vector<2x32xf32>, vector<32x128xf32>, vector<2x128xf32> -> vector<2x128xf32>
    %193 = arith.addf %191, %192 : vector<2x128xf32>
    %194 = arith.negf %193 : vector<2x128xf32>
    %195 = math.exp %194 : vector<2x128xf32>
    %cst_58 = arith.constant 1.000000e+00 : f32
    %196 = vector.broadcast %cst_58 : f32 to vector<2x128xf32>
    %197 = arith.addf %196, %195 : vector<2x128xf32>
    %198 = arith.divf %196, %197 : vector<2x128xf32>
    %199 = vector.extract_strided_slice %198 {offsets = [0, 64], sizes = [2, 32], strides = [1, 1]} : vector<2x128xf32> to vector<2x32xf32>
    %cst_59 = arith.constant 2.000000e+00 : f32
    %200 = vector.broadcast %cst_59 : f32 to vector<2x32xf32>
    %201 = arith.mulf %200, %199 : vector<2x32xf32>
    %cst_60 = arith.constant 1.000000e+00 : f32
    %202 = vector.broadcast %cst_60 : f32 to vector<2x32xf32>
    %203 = arith.subf %201, %202 : vector<2x32xf32>
    %204 = vector.extract_strided_slice %198 {offsets = [0, 32], sizes = [2, 32], strides = [1, 1]} : vector<2x128xf32> to vector<2x32xf32>
    %205 = arith.mulf %204, %163 : vector<2x32xf32>
    %206 = vector.extract_strided_slice %198 {offsets = [0, 0], sizes = [2, 32], strides = [1, 1]} : vector<2x128xf32> to vector<2x32xf32>
    %207 = arith.mulf %206, %203 : vector<2x32xf32>
    %208 = arith.addf %205, %207 : vector<2x32xf32>
    %209 = vector.extract_strided_slice %198 {offsets = [0, 96], sizes = [2, 32], strides = [1, 1]} : vector<2x128xf32> to vector<2x32xf32>
    %210 = math.tanh %208 : vector<2x32xf32>
    %211 = arith.mulf %209, %210 : vector<2x32xf32>
    %cst_61 = arith.constant dense<0.000000e+00> : vector<2x128xf32>
    %212 = tpu.matmul %211, %7, %cst_61 {dimension_numbers = #tpu.dot_dimension_numbers<[1], [0], [0], [1], [0, 0, 1, 1], [], []>} : vector<2x32xf32>, vector<32x128xf32>, vector<2x128xf32> -> vector<2x128xf32>
    %213 = vector.broadcast %12 : vector<1x128xf32> to vector<2x128xf32>
    %214 = arith.addf %212, %213 : vector<2x128xf32>
    %cst_62 = arith.constant dense<0.000000e+00> : vector<2x128xf32>
    %215 = tpu.matmul %189, %10, %cst_62 {dimension_numbers = #tpu.dot_dimension_numbers<[1], [0], [0], [1], [0, 0, 1, 1], [], []>} : vector<2x32xf32>, vector<32x128xf32>, vector<2x128xf32> -> vector<2x128xf32>
    %216 = arith.addf %214, %215 : vector<2x128xf32>
    %217 = arith.negf %216 : vector<2x128xf32>
    %218 = math.exp %217 : vector<2x128xf32>
    %cst_63 = arith.constant 1.000000e+00 : f32
    %219 = vector.broadcast %cst_63 : f32 to vector<2x128xf32>
    %220 = arith.addf %219, %218 : vector<2x128xf32>
    %221 = arith.divf %219, %220 : vector<2x128xf32>
    %222 = vector.extract_strided_slice %221 {offsets = [0, 64], sizes = [2, 32], strides = [1, 1]} : vector<2x128xf32> to vector<2x32xf32>
    %cst_64 = arith.constant 2.000000e+00 : f32
    %223 = vector.broadcast %cst_64 : f32 to vector<2x32xf32>
    %224 = arith.mulf %223, %222 : vector<2x32xf32>
    %cst_65 = arith.constant 1.000000e+00 : f32
    %225 = vector.broadcast %cst_65 : f32 to vector<2x32xf32>
    %226 = arith.subf %224, %225 : vector<2x32xf32>
    %227 = vector.extract_strided_slice %221 {offsets = [0, 32], sizes = [2, 32], strides = [1, 1]} : vector<2x128xf32> to vector<2x32xf32>
    %228 = arith.mulf %227, %186 : vector<2x32xf32>
    %229 = vector.extract_strided_slice %221 {offsets = [0, 0], sizes = [2, 32], strides = [1, 1]} : vector<2x128xf32> to vector<2x32xf32>
    %230 = arith.mulf %229, %226 : vector<2x32xf32>
    %231 = arith.addf %228, %230 : vector<2x32xf32>
    %232 = vector.extract_strided_slice %221 {offsets = [0, 96], sizes = [2, 32], strides = [1, 1]} : vector<2x128xf32> to vector<2x32xf32>
    %233 = math.tanh %231 : vector<2x32xf32>
    %234 = arith.mulf %232, %233 : vector<2x32xf32>
    %c8 = arith.constant 8 : index
    %c0_66 = arith.constant 0 : index
    %235 = vector.load %arg18[%c8, %c0_66] : memref<16x32xf32, #tpu.memory_space<vmem>>, vector<2x32xf32>
    tpu.vector_store %arg18[%c8, %c0_66], %234 {strides = array<i32>} : memref<16x32xf32, #tpu.memory_space<vmem>>, vector<2x32xf32>,
    %236 = vector.extract_strided_slice %5 {offsets = [10, 0], sizes = [2, 128], strides = [1, 1]} : vector<16x128xf32> to vector<2x128xf32>
    %cst_67 = arith.constant dense<0.000000e+00> : vector<2x128xf32>
    %237 = tpu.matmul %211, %8, %cst_67 {dimension_numbers = #tpu.dot_dimension_numbers<[1], [0], [0], [1], [0, 0, 1, 1], [], []>} : vector<2x32xf32>, vector<32x128xf32>, vector<2x128xf32> -> vector<2x128xf32>
    %238 = arith.addf %236, %237 : vector<2x128xf32>
    %239 = arith.negf %238 : vector<2x128xf32>
    %240 = math.exp %239 : vector<2x128xf32>
    %cst_68 = arith.constant 1.000000e+00 : f32
    %241 = vector.broadcast %cst_68 : f32 to vector<2x128xf32>
    %242 = arith.addf %241, %240 : vector<2x128xf32>
    %243 = arith.divf %241, %242 : vector<2x128xf32>
    %244 = vector.extract_strided_slice %243 {offsets = [0, 64], sizes = [2, 32], strides = [1, 1]} : vector<2x128xf32> to vector<2x32xf32>
    %cst_69 = arith.constant 2.000000e+00 : f32
    %245 = vector.broadcast %cst_69 : f32 to vector<2x32xf32>
    %246 = arith.mulf %245, %244 : vector<2x32xf32>
    %cst_70 = arith.constant 1.000000e+00 : f32
    %247 = vector.broadcast %cst_70 : f32 to vector<2x32xf32>
    %248 = arith.subf %246, %247 : vector<2x32xf32>
    %249 = vector.extract_strided_slice %243 {offsets = [0, 32], sizes = [2, 32], strides = [1, 1]} : vector<2x128xf32> to vector<2x32xf32>
    %250 = arith.mulf %249, %208 : vector<2x32xf32>
    %251 = vector.extract_strided_slice %243 {offsets = [0, 0], sizes = [2, 32], strides = [1, 1]} : vector<2x128xf32> to vector<2x32xf32>
    %252 = arith.mulf %251, %248 : vector<2x32xf32>
    %253 = arith.addf %250, %252 : vector<2x32xf32>
    %254 = vector.extract_strided_slice %243 {offsets = [0, 96], sizes = [2, 32], strides = [1, 1]} : vector<2x128xf32> to vector<2x32xf32>
    %255 = math.tanh %253 : vector<2x32xf32>
    %256 = arith.mulf %254, %255 : vector<2x32xf32>
    %cst_71 = arith.constant dense<0.000000e+00> : vector<2x128xf32>
    %257 = tpu.matmul %256, %7, %cst_71 {dimension_numbers = #tpu.dot_dimension_numbers<[1], [0], [0], [1], [0, 0, 1, 1], [], []>} : vector<2x32xf32>, vector<32x128xf32>, vector<2x128xf32> -> vector<2x128xf32>
    %258 = vector.broadcast %12 : vector<1x128xf32> to vector<2x128xf32>
    %259 = arith.addf %257, %258 : vector<2x128xf32>
    %cst_72 = arith.constant dense<0.000000e+00> : vector<2x128xf32>
    %260 = tpu.matmul %234, %10, %cst_72 {dimension_numbers = #tpu.dot_dimension_numbers<[1], [0], [0], [1], [0, 0, 1, 1], [], []>} : vector<2x32xf32>, vector<32x128xf32>, vector<2x128xf32> -> vector<2x128xf32>
    %261 = arith.addf %259, %260 : vector<2x128xf32>
    %262 = arith.negf %261 : vector<2x128xf32>
    %263 = math.exp %262 : vector<2x128xf32>
    %cst_73 = arith.constant 1.000000e+00 : f32
    %264 = vector.broadcast %cst_73 : f32 to vector<2x128xf32>
    %265 = arith.addf %264, %263 : vector<2x128xf32>
    %266 = arith.divf %264, %265 : vector<2x128xf32>
    %267 = vector.extract_strided_slice %266 {offsets = [0, 64], sizes = [2, 32], strides = [1, 1]} : vector<2x128xf32> to vector<2x32xf32>
    %cst_74 = arith.constant 2.000000e+00 : f32
    %268 = vector.broadcast %cst_74 : f32 to vector<2x32xf32>
    %269 = arith.mulf %268, %267 : vector<2x32xf32>
    %cst_75 = arith.constant 1.000000e+00 : f32
    %270 = vector.broadcast %cst_75 : f32 to vector<2x32xf32>
    %271 = arith.subf %269, %270 : vector<2x32xf32>
    %272 = vector.extract_strided_slice %266 {offsets = [0, 32], sizes = [2, 32], strides = [1, 1]} : vector<2x128xf32> to vector<2x32xf32>
    %273 = arith.mulf %272, %231 : vector<2x32xf32>
    %274 = vector.extract_strided_slice %266 {offsets = [0, 0], sizes = [2, 32], strides = [1, 1]} : vector<2x128xf32> to vector<2x32xf32>
    %275 = arith.mulf %274, %271 : vector<2x32xf32>
    %276 = arith.addf %273, %275 : vector<2x32xf32>
    %277 = vector.extract_strided_slice %266 {offsets = [0, 96], sizes = [2, 32], strides = [1, 1]} : vector<2x128xf32> to vector<2x32xf32>
    %278 = math.tanh %276 : vector<2x32xf32>
    %279 = arith.mulf %277, %278 : vector<2x32xf32>
    %c10 = arith.constant 10 : index
    %c0_76 = arith.constant 0 : index
    %280 = vector.load %arg18[%c10, %c0_76] : memref<16x32xf32, #tpu.memory_space<vmem>>, vector<2x32xf32>
    tpu.vector_store %arg18[%c10, %c0_76], %279 {strides = array<i32>} : memref<16x32xf32, #tpu.memory_space<vmem>>, vector<2x32xf32>,
    %281 = vector.extract_strided_slice %5 {offsets = [12, 0], sizes = [2, 128], strides = [1, 1]} : vector<16x128xf32> to vector<2x128xf32>
    %cst_77 = arith.constant dense<0.000000e+00> : vector<2x128xf32>
    %282 = tpu.matmul %256, %8, %cst_77 {dimension_numbers = #tpu.dot_dimension_numbers<[1], [0], [0], [1], [0, 0, 1, 1], [], []>} : vector<2x32xf32>, vector<32x128xf32>, vector<2x128xf32> -> vector<2x128xf32>
    %283 = arith.addf %281, %282 : vector<2x128xf32>
    %284 = arith.negf %283 : vector<2x128xf32>
    %285 = math.exp %284 : vector<2x128xf32>
    %cst_78 = arith.constant 1.000000e+00 : f32
    %286 = vector.broadcast %cst_78 : f32 to vector<2x128xf32>
    %287 = arith.addf %286, %285 : vector<2x128xf32>
    %288 = arith.divf %286, %287 : vector<2x128xf32>
    %289 = vector.extract_strided_slice %288 {offsets = [0, 64], sizes = [2, 32], strides = [1, 1]} : vector<2x128xf32> to vector<2x32xf32>
    %cst_79 = arith.constant 2.000000e+00 : f32
    %290 = vector.broadcast %cst_79 : f32 to vector<2x32xf32>
    %291 = arith.mulf %290, %289 : vector<2x32xf32>
    %cst_80 = arith.constant 1.000000e+00 : f32
    %292 = vector.broadcast %cst_80 : f32 to vector<2x32xf32>
    %293 = arith.subf %291, %292 : vector<2x32xf32>
    %294 = vector.extract_strided_slice %288 {offsets = [0, 32], sizes = [2, 32], strides = [1, 1]} : vector<2x128xf32> to vector<2x32xf32>
    %295 = arith.mulf %294, %253 : vector<2x32xf32>
    %296 = vector.extract_strided_slice %288 {offsets = [0, 0], sizes = [2, 32], strides = [1, 1]} : vector<2x128xf32> to vector<2x32xf32>
    %297 = arith.mulf %296, %293 : vector<2x32xf32>
    %298 = arith.addf %295, %297 : vector<2x32xf32>
    %299 = vector.extract_strided_slice %288 {offsets = [0, 96], sizes = [2, 32], strides = [1, 1]} : vector<2x128xf32> to vector<2x32xf32>
    %300 = math.tanh %298 : vector<2x32xf32>
    %301 = arith.mulf %299, %300 : vector<2x32xf32>
    %cst_81 = arith.constant dense<0.000000e+00> : vector<2x128xf32>
    %302 = tpu.matmul %301, %7, %cst_81 {dimension_numbers = #tpu.dot_dimension_numbers<[1], [0], [0], [1], [0, 0, 1, 1], [], []>} : vector<2x32xf32>, vector<32x128xf32>, vector<2x128xf32> -> vector<2x128xf32>
    %303 = vector.broadcast %12 : vector<1x128xf32> to vector<2x128xf32>
    %304 = arith.addf %302, %303 : vector<2x128xf32>
    %cst_82 = arith.constant dense<0.000000e+00> : vector<2x128xf32>
    %305 = tpu.matmul %279, %10, %cst_82 {dimension_numbers = #tpu.dot_dimension_numbers<[1], [0], [0], [1], [0, 0, 1, 1], [], []>} : vector<2x32xf32>, vector<32x128xf32>, vector<2x128xf32> -> vector<2x128xf32>
    %306 = arith.addf %304, %305 : vector<2x128xf32>
    %307 = arith.negf %306 : vector<2x128xf32>
    %308 = math.exp %307 : vector<2x128xf32>
    %cst_83 = arith.constant 1.000000e+00 : f32
    %309 = vector.broadcast %cst_83 : f32 to vector<2x128xf32>
    %310 = arith.addf %309, %308 : vector<2x128xf32>
    %311 = arith.divf %309, %310 : vector<2x128xf32>
    %312 = vector.extract_strided_slice %311 {offsets = [0, 64], sizes = [2, 32], strides = [1, 1]} : vector<2x128xf32> to vector<2x32xf32>
    %cst_84 = arith.constant 2.000000e+00 : f32
    %313 = vector.broadcast %cst_84 : f32 to vector<2x32xf32>
    %314 = arith.mulf %313, %312 : vector<2x32xf32>
    %cst_85 = arith.constant 1.000000e+00 : f32
    %315 = vector.broadcast %cst_85 : f32 to vector<2x32xf32>
    %316 = arith.subf %314, %315 : vector<2x32xf32>
    %317 = vector.extract_strided_slice %311 {offsets = [0, 32], sizes = [2, 32], strides = [1, 1]} : vector<2x128xf32> to vector<2x32xf32>
    %318 = arith.mulf %317, %276 : vector<2x32xf32>
    %319 = vector.extract_strided_slice %311 {offsets = [0, 0], sizes = [2, 32], strides = [1, 1]} : vector<2x128xf32> to vector<2x32xf32>
    %320 = arith.mulf %319, %316 : vector<2x32xf32>
    %321 = arith.addf %318, %320 : vector<2x32xf32>
    %322 = vector.extract_strided_slice %311 {offsets = [0, 96], sizes = [2, 32], strides = [1, 1]} : vector<2x128xf32> to vector<2x32xf32>
    %323 = math.tanh %321 : vector<2x32xf32>
    %324 = arith.mulf %322, %323 : vector<2x32xf32>
    %c12 = arith.constant 12 : index
    %c0_86 = arith.constant 0 : index
    %325 = vector.load %arg18[%c12, %c0_86] : memref<16x32xf32, #tpu.memory_space<vmem>>, vector<2x32xf32>
    tpu.vector_store %arg18[%c12, %c0_86], %324 {strides = array<i32>} : memref<16x32xf32, #tpu.memory_space<vmem>>, vector<2x32xf32>,
    %326 = vector.extract_strided_slice %5 {offsets = [14, 0], sizes = [2, 128], strides = [1, 1]} : vector<16x128xf32> to vector<2x128xf32>
    %cst_87 = arith.constant dense<0.000000e+00> : vector<2x128xf32>
    %327 = tpu.matmul %301, %8, %cst_87 {dimension_numbers = #tpu.dot_dimension_numbers<[1], [0], [0], [1], [0, 0, 1, 1], [], []>} : vector<2x32xf32>, vector<32x128xf32>, vector<2x128xf32> -> vector<2x128xf32>
    %328 = arith.addf %326, %327 : vector<2x128xf32>
    %329 = arith.negf %328 : vector<2x128xf32>
    %330 = math.exp %329 : vector<2x128xf32>
    %cst_88 = arith.constant 1.000000e+00 : f32
    %331 = vector.broadcast %cst_88 : f32 to vector<2x128xf32>
    %332 = arith.addf %331, %330 : vector<2x128xf32>
    %333 = arith.divf %331, %332 : vector<2x128xf32>
    %334 = vector.extract_strided_slice %333 {offsets = [0, 64], sizes = [2, 32], strides = [1, 1]} : vector<2x128xf32> to vector<2x32xf32>
    %cst_89 = arith.constant 2.000000e+00 : f32
    %335 = vector.broadcast %cst_89 : f32 to vector<2x32xf32>
    %336 = arith.mulf %335, %334 : vector<2x32xf32>
    %cst_90 = arith.constant 1.000000e+00 : f32
    %337 = vector.broadcast %cst_90 : f32 to vector<2x32xf32>
    %338 = arith.subf %336, %337 : vector<2x32xf32>
    %339 = vector.extract_strided_slice %333 {offsets = [0, 32], sizes = [2, 32], strides = [1, 1]} : vector<2x128xf32> to vector<2x32xf32>
    %340 = arith.mulf %339, %298 : vector<2x32xf32>
    %341 = vector.extract_strided_slice %333 {offsets = [0, 0], sizes = [2, 32], strides = [1, 1]} : vector<2x128xf32> to vector<2x32xf32>
    %342 = arith.mulf %341, %338 : vector<2x32xf32>
    %343 = arith.addf %340, %342 : vector<2x32xf32>
    %344 = vector.extract_strided_slice %333 {offsets = [0, 96], sizes = [2, 32], strides = [1, 1]} : vector<2x128xf32> to vector<2x32xf32>
    %345 = math.tanh %343 : vector<2x32xf32>
    %346 = arith.mulf %344, %345 : vector<2x32xf32>
    %cst_91 = arith.constant dense<0.000000e+00> : vector<2x128xf32>
    %347 = tpu.matmul %346, %7, %cst_91 {dimension_numbers = #tpu.dot_dimension_numbers<[1], [0], [0], [1], [0, 0, 1, 1], [], []>} : vector<2x32xf32>, vector<32x128xf32>, vector<2x128xf32> -> vector<2x128xf32>
    %348 = vector.broadcast %12 : vector<1x128xf32> to vector<2x128xf32>
    %349 = arith.addf %347, %348 : vector<2x128xf32>
    %cst_92 = arith.constant dense<0.000000e+00> : vector<2x128xf32>
    %350 = tpu.matmul %324, %10, %cst_92 {dimension_numbers = #tpu.dot_dimension_numbers<[1], [0], [0], [1], [0, 0, 1, 1], [], []>} : vector<2x32xf32>, vector<32x128xf32>, vector<2x128xf32> -> vector<2x128xf32>
    %351 = arith.addf %349, %350 : vector<2x128xf32>
    %352 = arith.negf %351 : vector<2x128xf32>
    %353 = math.exp %352 : vector<2x128xf32>
    %cst_93 = arith.constant 1.000000e+00 : f32
    %354 = vector.broadcast %cst_93 : f32 to vector<2x128xf32>
    %355 = arith.addf %354, %353 : vector<2x128xf32>
    %356 = arith.divf %354, %355 : vector<2x128xf32>
    %357 = vector.extract_strided_slice %356 {offsets = [0, 64], sizes = [2, 32], strides = [1, 1]} : vector<2x128xf32> to vector<2x32xf32>
    %cst_94 = arith.constant 2.000000e+00 : f32
    %358 = vector.broadcast %cst_94 : f32 to vector<2x32xf32>
    %359 = arith.mulf %358, %357 : vector<2x32xf32>
    %cst_95 = arith.constant 1.000000e+00 : f32
    %360 = vector.broadcast %cst_95 : f32 to vector<2x32xf32>
    %361 = arith.subf %359, %360 : vector<2x32xf32>
    %362 = vector.extract_strided_slice %356 {offsets = [0, 32], sizes = [2, 32], strides = [1, 1]} : vector<2x128xf32> to vector<2x32xf32>
    %363 = arith.mulf %362, %321 : vector<2x32xf32>
    %364 = vector.extract_strided_slice %356 {offsets = [0, 0], sizes = [2, 32], strides = [1, 1]} : vector<2x128xf32> to vector<2x32xf32>
    %365 = arith.mulf %364, %361 : vector<2x32xf32>
    %366 = arith.addf %363, %365 : vector<2x32xf32>
    %367 = vector.extract_strided_slice %356 {offsets = [0, 96], sizes = [2, 32], strides = [1, 1]} : vector<2x128xf32> to vector<2x32xf32>
    %368 = math.tanh %366 : vector<2x32xf32>
    %369 = arith.mulf %367, %368 : vector<2x32xf32>
    %c14 = arith.constant 14 : index
    %c0_96 = arith.constant 0 : index
    %370 = vector.load %arg18[%c14, %c0_96] : memref<16x32xf32, #tpu.memory_space<vmem>>, vector<2x32xf32>
    tpu.vector_store %arg18[%c14, %c0_96], %369 {strides = array<i32>} : memref<16x32xf32, #tpu.memory_space<vmem>>, vector<2x32xf32>,
    %c0_97 = arith.constant 0 : index
    %c0_98 = arith.constant 0 : index
    %371 = vector.load %arg18[%c0_97, %c0_98] : memref<16x32xf32, #tpu.memory_space<vmem>>, vector<16x32xf32>
    %c0_99 = arith.constant 0 : index
    %c0_100 = arith.constant 0 : index
    %372 = vector.load %arg7[%c0_99, %c0_100] : memref<32x64xf32, #tpu.memory_space<vmem>>, vector<32x64xf32>
    %cst_101 = arith.constant dense<0.000000e+00> : vector<16x64xf32>
    %373 = tpu.matmul %371, %372, %cst_101 {dimension_numbers = #tpu.dot_dimension_numbers<[1], [0], [0], [1], [0, 0, 1, 1], [], []>} : vector<16x32xf32>, vector<32x64xf32>, vector<16x64xf32> -> vector<16x64xf32>
    %c0_102 = arith.constant 0 : index
    %c0_103 = arith.constant 0 : index
    %374 = vector.load %arg8[%c0_102, %c0_103] : memref<1x64xf32, #tpu.memory_space<vmem>>, vector<1x64xf32>
    %375 = vector.broadcast %374 : vector<1x64xf32> to vector<16x64xf32>
    %376 = arith.addf %373, %375 : vector<16x64xf32>
    %cst_104 = arith.constant 0.000000e+00 : f32
    %377 = vector.broadcast %cst_104 : f32 to vector<16x64xf32>
    %378 = arith.maximumf %376, %377 : vector<16x64xf32>
    %cst_105 = arith.constant dense<0.000000e+00> : vector<16xf32>
    %379 = vector.multi_reduction <add>, %378, %cst_105 [1] : vector<16x64xf32> to vector<16xf32>
    %380 = vector.shape_cast %379 : vector<16xf32> to vector<16x1xf32>
    %cst_106 = arith.constant 6.400000e+01 : f32
    %381 = vector.broadcast %cst_106 : f32 to vector<16x1xf32>
    %382 = arith.divf %380, %381 : vector<16x1xf32>
    %383 = vector.broadcast %382 : vector<16x1xf32> to vector<16x64xf32>
    %384 = arith.subf %378, %383 : vector<16x64xf32>
    %385 = arith.mulf %384, %384 : vector<16x64xf32>
    %cst_107 = arith.constant dense<0.000000e+00> : vector<16xf32>
    %386 = vector.multi_reduction <add>, %385, %cst_107 [1] : vector<16x64xf32> to vector<16xf32>
    %387 = vector.shape_cast %386 : vector<16xf32> to vector<16x1xf32>
    %cst_108 = arith.constant 6.400000e+01 : f32
    %388 = vector.broadcast %cst_108 : f32 to vector<16x1xf32>
    %389 = arith.divf %387, %388 : vector<16x1xf32>
    %390 = vector.broadcast %382 : vector<16x1xf32> to vector<16x64xf32>
    %391 = arith.subf %378, %390 : vector<16x64xf32>
    %cst_109 = arith.constant 9.99999974E-6 : f32
    %392 = vector.broadcast %cst_109 : f32 to vector<16x1xf32>
    %393 = arith.addf %389, %392 : vector<16x1xf32>
    %394 = math.rsqrt %393 : vector<16x1xf32>
    %395 = vector.broadcast %394 : vector<16x1xf32> to vector<16x64xf32>
    %396 = arith.mulf %391, %395 : vector<16x64xf32>
    %c0_110 = arith.constant 0 : index
    %c0_111 = arith.constant 0 : index
    %397 = vector.load %arg9[%c0_110, %c0_111] : memref<1x64xf32, #tpu.memory_space<vmem>>, vector<1x64xf32>
    %398 = vector.broadcast %397 : vector<1x64xf32> to vector<16x64xf32>
    %399 = arith.mulf %396, %398 : vector<16x64xf32>
    %c0_112 = arith.constant 0 : index
    %c0_113 = arith.constant 0 : index
    %400 = vector.load %arg10[%c0_112, %c0_113] : memref<1x64xf32, #tpu.memory_space<vmem>>, vector<1x64xf32>
    %401 = vector.broadcast %400 : vector<1x64xf32> to vector<16x64xf32>
    %402 = arith.addf %399, %401 : vector<16x64xf32>
    %cst_114 = arith.constant 0.000000e+00 : f32
    %403 = vector.broadcast %cst_114 : f32 to vector<16x64xf32>
    %404 = arith.maximumf %402, %403 : vector<16x64xf32>
    %c0_115 = arith.constant 0 : index
    %c0_116 = arith.constant 0 : index
    %405 = vector.load %arg11[%c0_115, %c0_116] : memref<64x64xf32, #tpu.memory_space<vmem>>, vector<64x64xf32>
    %cst_117 = arith.constant dense<0.000000e+00> : vector<16x64xf32>
    %406 = tpu.matmul %404, %405, %cst_117 {dimension_numbers = #tpu.dot_dimension_numbers<[1], [0], [0], [1], [0, 0, 1, 1], [], []>} : vector<16x64xf32>, vector<64x64xf32>, vector<16x64xf32> -> vector<16x64xf32>
    %c0_118 = arith.constant 0 : index
    %c0_119 = arith.constant 0 : index
    %407 = vector.load %arg12[%c0_118, %c0_119] : memref<1x64xf32, #tpu.memory_space<vmem>>, vector<1x64xf32>
    %408 = vector.broadcast %407 : vector<1x64xf32> to vector<16x64xf32>
    %409 = arith.addf %406, %408 : vector<16x64xf32>
    %cst_120 = arith.constant 0.000000e+00 : f32
    %410 = vector.broadcast %cst_120 : f32 to vector<16x64xf32>
    %411 = arith.maximumf %409, %410 : vector<16x64xf32>
    %cst_121 = arith.constant dense<0.000000e+00> : vector<16xf32>
    %412 = vector.multi_reduction <add>, %411, %cst_121 [1] : vector<16x64xf32> to vector<16xf32>
    %413 = vector.shape_cast %412 : vector<16xf32> to vector<16x1xf32>
    %cst_122 = arith.constant 6.400000e+01 : f32
    %414 = vector.broadcast %cst_122 : f32 to vector<16x1xf32>
    %415 = arith.divf %413, %414 : vector<16x1xf32>
    %416 = vector.broadcast %415 : vector<16x1xf32> to vector<16x64xf32>
    %417 = arith.subf %411, %416 : vector<16x64xf32>
    %418 = arith.mulf %417, %417 : vector<16x64xf32>
    %cst_123 = arith.constant dense<0.000000e+00> : vector<16xf32>
    %419 = vector.multi_reduction <add>, %418, %cst_123 [1] : vector<16x64xf32> to vector<16xf32>
    %420 = vector.shape_cast %419 : vector<16xf32> to vector<16x1xf32>
    %cst_124 = arith.constant 6.400000e+01 : f32
    %421 = vector.broadcast %cst_124 : f32 to vector<16x1xf32>
    %422 = arith.divf %420, %421 : vector<16x1xf32>
    %423 = vector.broadcast %415 : vector<16x1xf32> to vector<16x64xf32>
    %424 = arith.subf %411, %423 : vector<16x64xf32>
    %cst_125 = arith.constant 9.99999974E-6 : f32
    %425 = vector.broadcast %cst_125 : f32 to vector<16x1xf32>
    %426 = arith.addf %422, %425 : vector<16x1xf32>
    %427 = math.rsqrt %426 : vector<16x1xf32>
    %428 = vector.broadcast %427 : vector<16x1xf32> to vector<16x64xf32>
    %429 = arith.mulf %424, %428 : vector<16x64xf32>
    %c0_126 = arith.constant 0 : index
    %c0_127 = arith.constant 0 : index
    %430 = vector.load %arg13[%c0_126, %c0_127] : memref<1x64xf32, #tpu.memory_space<vmem>>, vector<1x64xf32>
    %431 = vector.broadcast %430 : vector<1x64xf32> to vector<16x64xf32>
    %432 = arith.mulf %429, %431 : vector<16x64xf32>
    %c0_128 = arith.constant 0 : index
    %c0_129 = arith.constant 0 : index
    %433 = vector.load %arg14[%c0_128, %c0_129] : memref<1x64xf32, #tpu.memory_space<vmem>>, vector<1x64xf32>
    %434 = vector.broadcast %433 : vector<1x64xf32> to vector<16x64xf32>
    %435 = arith.addf %432, %434 : vector<16x64xf32>
    %cst_130 = arith.constant 0.000000e+00 : f32
    %436 = vector.broadcast %cst_130 : f32 to vector<16x64xf32>
    %437 = arith.maximumf %435, %436 : vector<16x64xf32>
    %c0_131 = arith.constant 0 : index
    %c0_132 = arith.constant 0 : index
    %438 = vector.load %arg15[%c0_131, %c0_132] : memref<1x64xf32, #tpu.memory_space<vmem>>, vector<1x64xf32>
    %439 = vector.broadcast %438 : vector<1x64xf32> to vector<16x64xf32>
    %440 = arith.mulf %437, %439 : vector<16x64xf32>
    %cst_133 = arith.constant dense<0.000000e+00> : vector<16xf32>
    %441 = vector.multi_reduction <add>, %440, %cst_133 [1] : vector<16x64xf32> to vector<16xf32>
    %442 = vector.shape_cast %441 : vector<16xf32> to vector<16x1xf32>
    %c0_134 = arith.constant 0 : index
    %c0_135 = arith.constant 0 : index
    %443 = vector.load %arg16[%c0_134, %c0_135] : memref<1x1xf32, #tpu.memory_space<vmem>>, vector<1x1xf32>
    %444 = vector.broadcast %443 : vector<1x1xf32> to vector<16x1xf32>
    %445 = arith.addf %442, %444 : vector<16x1xf32>
    %446 = arith.negf %445 : vector<16x1xf32>
    %447 = math.exp %446 : vector<16x1xf32>
    %cst_136 = arith.constant 1.000000e+00 : f32
    %448 = vector.broadcast %cst_136 : f32 to vector<16x1xf32>
    %449 = arith.addf %448, %447 : vector<16x1xf32>
    %450 = arith.divf %448, %449 : vector<16x1xf32>
    %c0_137 = arith.constant 0 : index
    %c0_138 = arith.constant 0 : index
    %451 = vector.load %arg17[%c0_137, %c0_138] : memref<16x1xf32, #tpu.memory_space<vmem>>, vector<16x1xf32>
    tpu.vector_store %arg17[%c0_137, %c0_138], %450 {strides = array<i32>} : memref<16x1xf32, #tpu.memory_space<vmem>>, vector<16x1xf32>,
    return
  }
}

</mosaic_0001>

<llo_original>
// kernel: tpu_custom_call.1
$region0: #{tpu_custom_call.1}
  #allocation0 [shape = 'u32[]', space=smem, size = 0x4, offset = 0x4, fixed_abs, tag = 'smem constant byte address 0x4 - core index']
  #allocation1 [shape = 'u32[144,128]{1,0:T(1,128)}', space=vmem, size = 0x12000, scoped, tag = 'internal scratch']
  #allocation2 [shape = 'f32[16,32]{1,0:T(8,128)}', space=vmem, size = 0x2000, scoped, tag = 'scratch operand']
  #allocation3 [shape = 'f32[1,1]{1,0:T(1,128)S(1)}', space=vmem, size = 0x200, scoped, tag = 'scoped memory for tpu_custom_call.1']
  %s0 = inlined_call_operand.hbm [shape: f32[16,32], index: 0, kind: input, shape index: {}]
  %s1 = inlined_call_operand.hbm [shape: f32[32,128], index: 1, kind: input, shape index: {}]
  %s2 = inlined_call_operand.hbm [shape: f32[32,128], index: 2, kind: input, shape index: {}]
  %s3 = inlined_call_operand.vmem [shape: f32[1,128], index: 3, kind: input, shape index: {}]
  %s4 = inlined_call_operand.hbm [shape: f32[1,32,128], index: 4, kind: input, shape index: {}]
  %s5 = inlined_call_operand.hbm [shape: f32[1,32,128], index: 5, kind: input, shape index: {}]
  %s6 = inlined_call_operand.vmem [shape: f32[1,1,128], index: 6, kind: input, shape index: {}]
  %s7 = inlined_call_operand.hbm [shape: f32[32,64], index: 7, kind: input, shape index: {}]
  %s8 = inlined_call_operand.vmem [shape: f32[1,64], index: 8, kind: input, shape index: {}]
  %s9 = inlined_call_operand.vmem [shape: f32[1,64], index: 9, kind: input, shape index: {}]
  %s10 = inlined_call_operand.vmem [shape: f32[1,64], index: 10, kind: input, shape index: {}]
  %s11 = inlined_call_operand.hbm [shape: f32[64,64], index: 11, kind: input, shape index: {}]
  %s12 = inlined_call_operand.vmem [shape: f32[1,64], index: 12, kind: input, shape index: {}]
  %s13 = inlined_call_operand.vmem [shape: f32[1,64], index: 13, kind: input, shape index: {}]
  %s14 = inlined_call_operand.vmem [shape: f32[1,64], index: 14, kind: input, shape index: {}]
  %s15 = inlined_call_operand.vmem [shape: f32[1,64], index: 15, kind: input, shape index: {}]
  %s16 = inlined_call_operand.<no memory space> [shape: f32[1,1], index: 16, kind: input, shape index: {}]
  %s17 = inlined_call_operand.vmem [shape: f32[16,1], index: 17, kind: output, shape index: {}]
  %s18 = sld [smem:[#allocation0]]
  $region106: #{tpu_custom_call.1} parent=0
    _
  %s20 = ssub.s32 1, %s18
  %s21 = scalar_select 0, %s20, %s18
  %v22 = vstv %s16
  %23 = vst [vmem:[#allocation3] sm:$0x1] %v22
  $region1: #{tpu_custom_call.1} parent=0
    #allocation4 [shape = 'u8[8192]{0}', space=vmem, size = 0x2000, scoped, tag = 'input window, operand 0, single buffered']
    #allocation5 [shape = 's32[1]{0}', space=sflag, size = 0x4, scoped, tag = 'scoped memory for tpu_custom_call.1']
    #allocation6 [shape = 'u8[16384]{0}', space=vmem, size = 0x4000, scoped, tag = 'input window, operand 1, single buffered']
    #allocation7 [shape = 's32[1]{0}', space=sflag, size = 0x4, scoped, tag = 'scoped memory for tpu_custom_call.1']
    #allocation8 [shape = 'u8[16384]{0}', space=vmem, size = 0x4000, scoped, tag = 'input window, operand 2, single buffered']
    #allocation9 [shape = 'u8[16384]{0}', space=vmem, size = 0x4000, scoped, tag = 'input window, operand 4, single buffered']
    #allocation10 [shape = 's32[1]{0}', space=sflag, size = 0x4, scoped, tag = 'scoped memory for tpu_custom_call.1']
    #allocation11 [shape = 'u8[16384]{0}', space=vmem, size = 0x4000, scoped, tag = 'input window, operand 5, single buffered']
    #allocation12 [shape = 'u8[16384]{0}', space=vmem, size = 0x4000, scoped, tag = 'input window, operand 7, single buffered']
    #allocation13 [shape = 's32[1]{0}', space=sflag, size = 0x4, scoped, tag = 'scoped memory for tpu_custom_call.1']
    #allocation14 [shape = 'u8[32768]{0}', space=vmem, size = 0x8000, scoped, tag = 'input window, operand 11, single buffered']
    %24 = vsyncpa [#allocation5], 0
    %25 = vsyncpa [#allocation7], 0
    %26 = vsyncpa [#allocation10], 0
    %27 = vsyncpa [#allocation13], 0
    // Predicated region
    $region2: #{tpu_custom_call.1} parent=1 // pred_check
      _
    $region3: #{tpu_custom_call.1} parent=1 // pred_check_branch
      %29 = sbr.rel (0) target = $region5
    $region4: #{tpu_custom_call.1} parent=1 // pred_region
      %s31 = ssub.s32 256, 256
      %32 = vsyncadd [#allocation5], %s31
      %s33 = sshll.u32 [#allocation4], 4
      %s34 = int_to_ptr.vmem [resolvable:$true] %s33
      %39 = dma.hbm_to_vmem [thread:$0]  %s0, 256, %s34, [#allocation5], 128, 128, 8
    $region5: #{tpu_custom_call.1} parent=1 // pred_fallthru
      _
    // Predicated region
    $region6: #{tpu_custom_call.1} parent=1 // pred_check
      _
    $region7: #{tpu_custom_call.1} parent=1 // pred_check_branch
      %41 = sbr.rel (0) target = $region9
    $region8: #{tpu_custom_call.1} parent=1 // pred_region
      %s43 = ssub.s32 512, 512
      %44 = vsyncadd [#allocation7], %s43
      %s45 = sshll.u32 [#allocation6], 4
      %s46 = int_to_ptr.vmem [resolvable:$true] %s45
      %51 = dma.hbm_to_vmem [thread:$0]  %s1, 512, %s46, [#allocation7], 128, 128, 8
    $region9: #{tpu_custom_call.1} parent=1 // pred_fallthru
      _
    // Predicated region
    $region10: #{tpu_custom_call.1} parent=1 // pred_check
      _
    $region11: #{tpu_custom_call.1} parent=1 // pred_check_branch
      %53 = sbr.rel (0) target = $region13
    $region12: #{tpu_custom_call.1} parent=1 // pred_region
      %s55 = ssub.s32 512, 512
      %56 = vsyncadd [#allocation7], %s55
      %s57 = sshll.u32 [#allocation8], 4
      %s58 = int_to_ptr.vmem [resolvable:$true] %s57
      %63 = dma.hbm_to_vmem [thread:$0]  %s2, 512, %s58, [#allocation7], 128, 128, 8
    $region13: #{tpu_custom_call.1} parent=1 // pred_fallthru
      _
    // Predicated region
    $region14: #{tpu_custom_call.1} parent=1 // pred_check
      _
    $region15: #{tpu_custom_call.1} parent=1 // pred_check_branch
      %65 = sbr.rel (0) target = $region17
    $region16: #{tpu_custom_call.1} parent=1 // pred_region
      _
    $region17: #{tpu_custom_call.1} parent=1 // pred_fallthru
      _
    // Predicated region
    $region18: #{tpu_custom_call.1} parent=1 // pred_check
      _
    $region19: #{tpu_custom_call.1} parent=1 // pred_check_branch
      %67 = sbr.rel (0) target = $region21
    $region20: #{tpu_custom_call.1} parent=1 // pred_region
      %s69 = ssub.s32 512, 512
      %70 = vsyncadd [#allocation10], %s69
      %s71 = sshll.u32 [#allocation9], 4
      %s72 = int_to_ptr.vmem [resolvable:$true] %s71
      %77 = dma.hbm_to_vmem [thread:$0]  %s4, 512, %s72, [#allocation10], 128, 128, 8
    $region21: #{tpu_custom_call.1} parent=1 // pred_fallthru
      _
    // Predicated region
    $region22: #{tpu_custom_call.1} parent=1 // pred_check
      _
    $region23: #{tpu_custom_call.1} parent=1 // pred_check_branch
      %79 = sbr.rel (0) target = $region25
    $region24: #{tpu_custom_call.1} parent=1 // pred_region
      %s81 = ssub.s32 512, 512
      %82 = vsyncadd [#allocation10], %s81
      %s83 = sshll.u32 [#allocation11], 4
      %s84 = int_to_ptr.vmem [resolvable:$true] %s83
      %89 = dma.hbm_to_vmem [thread:$0]  %s5, 512, %s84, [#allocation10], 128, 128, 8
    $region25: #{tpu_custom_call.1} parent=1 // pred_fallthru
      _
    // Predicated region
    $region26: #{tpu_custom_call.1} parent=1 // pred_check
      _
    $region27: #{tpu_custom_call.1} parent=1 // pred_check_branch
      %91 = sbr.rel (0) target = $region29
    $region28: #{tpu_custom_call.1} parent=1 // pred_region
      _
    $region29: #{tpu_custom_call.1} parent=1 // pred_fallthru
      _
    // Predicated region
    $region30: #{tpu_custom_call.1} parent=1 // pred_check
      _
    $region31: #{tpu_custom_call.1} parent=1 // pred_check_branch
      %93 = sbr.rel (0) target = $region33
    $region32: #{tpu_custom_call.1} parent=1 // pred_region
      %s95 = ssub.s32 512, 512
      %96 = vsyncadd [#allocation13], %s95
      %s97 = sshll.u32 [#allocation12], 4
      %s98 = int_to_ptr.vmem [resolvable:$true] %s97
      %103 = dma.hbm_to_vmem [thread:$0]  %s7, 512, %s98, [#allocation13], 128, 128, 8
    $region33: #{tpu_custom_call.1} parent=1 // pred_fallthru
      _
    // Predicated region
    $region34: #{tpu_custom_call.1} parent=1 // pred_check
      _
    $region35: #{tpu_custom_call.1} parent=1 // pred_check_branch
      %105 = sbr.rel (0) target = $region37
    $region36: #{tpu_custom_call.1} parent=1 // pred_region
      _
    $region37: #{tpu_custom_call.1} parent=1 // pred_fallthru
      _
    // Predicated region
    $region38: #{tpu_custom_call.1} parent=1 // pred_check
      _
    $region39: #{tpu_custom_call.1} parent=1 // pred_check_branch
      %107 = sbr.rel (0) target = $region41
    $region40: #{tpu_custom_call.1} parent=1 // pred_region
      _
    $region41: #{tpu_custom_call.1} parent=1 // pred_fallthru
      _
    // Predicated region
    $region42: #{tpu_custom_call.1} parent=1 // pred_check
      _
    $region43: #{tpu_custom_call.1} parent=1 // pred_check_branch
      %109 = sbr.rel (0) target = $region45
    $region44: #{tpu_custom_call.1} parent=1 // pred_region
      _
    $region45: #{tpu_custom_call.1} parent=1 // pred_fallthru
      _
    // Predicated region
    $region46: #{tpu_custom_call.1} parent=1 // pred_check
      _
    $region47: #{tpu_custom_call.1} parent=1 // pred_check_branch
      %111 = sbr.rel (0) target = $region49
    $region48: #{tpu_custom_call.1} parent=1 // pred_region
      %s113 = ssub.s32 1024, 1024
      %114 = vsyncadd [#allocation13], %s113
      %s115 = sshll.u32 [#allocation14], 4
      %s116 = int_to_ptr.vmem [resolvable:$true] %s115
      %121 = dma.hbm_to_vmem [thread:$0]  %s11, 1024, %s116, [#allocation13], 128, 128, 8
    $region49: #{tpu_custom_call.1} parent=1 // pred_fallthru
      _
    // Predicated region
    $region50: #{tpu_custom_call.1} parent=1 // pred_check
      _
    $region51: #{tpu_custom_call.1} parent=1 // pred_check_branch
      %123 = sbr.rel (0) target = $region53
    $region52: #{tpu_custom_call.1} parent=1 // pred_region
      _
    $region53: #{tpu_custom_call.1} parent=1 // pred_fallthru
      _
    // Predicated region
    $region54: #{tpu_custom_call.1} parent=1 // pred_check
      _
    $region55: #{tpu_custom_call.1} parent=1 // pred_check_branch
      %125 = sbr.rel (0) target = $region57
    $region56: #{tpu_custom_call.1} parent=1 // pred_region
      _
    $region57: #{tpu_custom_call.1} parent=1 // pred_fallthru
      _
    // Predicated region
    $region58: #{tpu_custom_call.1} parent=1 // pred_check
      _
    $region59: #{tpu_custom_call.1} parent=1 // pred_check_branch
      %127 = sbr.rel (0) target = $region61
    $region60: #{tpu_custom_call.1} parent=1 // pred_region
      _
    $region61: #{tpu_custom_call.1} parent=1 // pred_fallthru
      _
    // Predicated region
    $region62: #{tpu_custom_call.1} parent=1 // pred_check
      _
    $region63: #{tpu_custom_call.1} parent=1 // pred_check_branch
      %129 = sbr.rel (0) target = $region65
    $region64: #{tpu_custom_call.1} parent=1 // pred_region
      _
    $region65: #{tpu_custom_call.1} parent=1 // pred_fallthru
      _
    // Predicated region
    $region66: #{tpu_custom_call.1} parent=1 // pred_check
      _
    $region67: #{tpu_custom_call.1} parent=1 // pred_check_branch
      %131 = sbr.rel (0) target = $region69
    $region68: #{tpu_custom_call.1} parent=1 // pred_region
      _
    $region69: #{tpu_custom_call.1} parent=1 // pred_fallthru
      _
    // Predicated region
    $region70: #{tpu_custom_call.1} parent=1 // pred_check
      _
    $region71: #{tpu_custom_call.1} parent=1 // pred_check_branch
      %133 = sbr.rel (0) target = $region73
    $region72: #{tpu_custom_call.1} parent=1 // pred_region
      %134 = dma.done [#allocation5], 256
    $region73: #{tpu_custom_call.1} parent=1 // pred_fallthru
      _
    // Predicated region
    $region74: #{tpu_custom_call.1} parent=1 // pred_check
      _
    $region75: #{tpu_custom_call.1} parent=1 // pred_check_branch
      %136 = sbr.rel (0) target = $region77
    $region76: #{tpu_custom_call.1} parent=1 // pred_region
      %137 = dma.done [#allocation7], 512
    $region77: #{tpu_custom_call.1} parent=1 // pred_fallthru
      _
    // Predicated region
    $region78: #{tpu_custom_call.1} parent=1 // pred_check
      _
    $region79: #{tpu_custom_call.1} parent=1 // pred_check_branch
      %139 = sbr.rel (0) target = $region81
    $region80: #{tpu_custom_call.1} parent=1 // pred_region
      %140 = dma.done [#allocation7], 512
    $region81: #{tpu_custom_call.1} parent=1 // pred_fallthru
      _
    // Predicated region
    $region82: #{tpu_custom_call.1} parent=1 // pred_check
      _
    $region83: #{tpu_custom_call.1} parent=1 // pred_check_branch
      %142 = sbr.rel (0) target = $region85
    $region84: #{tpu_custom_call.1} parent=1 // pred_region
      %143 = dma.done [#allocation10], 512
    $region85: #{tpu_custom_call.1} parent=1 // pred_fallthru
      _
    // Predicated region
    $region86: #{tpu_custom_call.1} parent=1 // pred_check
      _
    $region87: #{tpu_custom_call.1} parent=1 // pred_check_branch
      %145 = sbr.rel (0) target = $region89
    $region88: #{tpu_custom_call.1} parent=1 // pred_region
      %146 = dma.done [#allocation10], 512
    $region89: #{tpu_custom_call.1} parent=1 // pred_fallthru
      _
    // Predicated region
    $region90: #{tpu_custom_call.1} parent=1 // pred_check
      _
    $region91: #{tpu_custom_call.1} parent=1 // pred_check_branch
      %148 = sbr.rel (0) target = $region93
    $region92: #{tpu_custom_call.1} parent=1 // pred_region
      %149 = dma.done [#allocation13], 512
    $region93: #{tpu_custom_call.1} parent=1 // pred_fallthru
      _
    // Predicated region
    $region94: #{tpu_custom_call.1} parent=1 // pred_check
      _
    $region95: #{tpu_custom_call.1} parent=1 // pred_check_branch
      %151 = sbr.rel (0) target = $region97
    $region96: #{tpu_custom_call.1} parent=1 // pred_region
      %152 = dma.done [#allocation13], 1024
    $region97: #{tpu_custom_call.1} parent=1 // pred_fallthru
      _
    %v153 = vld [vmem:[#allocation4] sm:$0xff]
    %v154 = vld [vmem:[#allocation4 + $0x8] sm:$0xff]
    %v155 = vld [vmem:[#allocation6] sm:$0xff]
    %v156 = vld [vmem:[#allocation6 + $0x8] sm:$0xff]
    %v157 = vld [vmem:[#allocation6 + $0x10] sm:$0xff]
    %v158 = vld [vmem:[#allocation6 + $0x18] sm:$0xff]
    %v159 = vld [vmem:[%s3] sm:$0x1]
    %v161 = vlaneseq
    %v162 = vshrl.u32 %v161, 7
    %v163 = vsub.s32 0, %v162
    %v164 = vrot.slane %v159, %v163
    %vm166 = vcmask 261120
    %v168 = vsel %vm166, %v153, 0
    %v171 = vsel %vm166, %v154, 0
    %173 = vmatprep.subr.mxu0 0.0
    %174 = vmatpush1.msra.mxu0 0.0
    %175 = vmatprep.subr.mxu0 0.0
    %176 = vmatpush1.msra.mxu0 0.0
    %177 = vmatprep.subr.mxu0 0.0
    %178 = vmatpush1.msra.mxu0 0.0
    %179 = vmatprep.subr.mxu0 0.0
    %180 = vmatpush1.msra.mxu0 0.0
    %181 = vmatprep.subr.mxu0 0.0
    %182 = vmatpush1.msra.mxu0 0.0
    %183 = vmatprep.subr.mxu0 0.0
    %184 = vmatpush1.msra.mxu0 0.0
    %185 = vmatprep.subr.mxu0 0.0
    %186 = vmatpush1.msra.mxu0 0.0
    %187 = vmatprep.subr.mxu0 0.0
    %188 = vmatpush1.msra.mxu0 0.0
    %189 = vmatprep.subr.mxu0 0.0
    %190 = vmatpush1.msra.mxu0 0.0
    %191 = vmatprep.subr.mxu0 0.0
    %192 = vmatpush1.msra.mxu0 0.0
    %193 = vmatprep.subr.mxu0 0.0
    %194 = vmatpush1.msra.mxu0 0.0
    %195 = vmatprep.subr.mxu0 0.0
    %196 = vmatpush1.msra.mxu0 0.0
    %197 = vmatprep.subr.mxu0 0.0
    %198 = vmatpush1.msra.mxu0 %v158
    %199 = vmatprep.subr.mxu0 0.0
    %200 = vmatpush1.msra.mxu0 %v157
    %201 = vmatprep.subr.mxu0 0.0
    %202 = vmatpush1.msra.mxu0 %v156
    %203 = vmatprep.subr.mxu0 0.0
    %204 = vmatpush1.msra.mxu0 %v155
    %205 = vmatprep.subr.mxu0 0.0
    %206 = vmatpush2.msra.mxu0 0.0
    %207 = vmatprep.subr.mxu0 0.0
    %208 = vmatpush2.msra.mxu0 0.0
    %209 = vmatprep.subr.mxu0 0.0
    %210 = vmatpush2.msra.mxu0 0.0
    %211 = vmatprep.subr.mxu0 0.0
    %212 = vmatpush2.msra.mxu0 0.0
    %213 = vmatprep.subr.mxu0 0.0
    %214 = vmatpush2.msra.mxu0 0.0
    %215 = vmatprep.subr.mxu0 0.0
    %216 = vmatpush2.msra.mxu0 0.0
    %217 = vmatprep.subr.mxu0 0.0
    %218 = vmatpush2.msra.mxu0 0.0
    %219 = vmatprep.subr.mxu0 0.0
    %220 = vmatpush2.msra.mxu0 0.0
    %221 = vmatprep.subr.mxu0 0.0
    %222 = vmatpush2.msra.mxu0 0.0
    %223 = vmatprep.subr.mxu0 0.0
    %224 = vmatpush2.msra.mxu0 0.0
    %225 = vmatprep.subr.mxu0 0.0
    %226 = vmatpush2.msra.mxu0 0.0
    %227 = vmatprep.subr.mxu0 0.0
    %228 = vmatpush2.msra.mxu0 0.0
    %229 = vmatprep.subr.mxu0 0.0
    %230 = vmatpush2.msra.mxu0 0.0
    %231 = vmatprep.subr.mxu0 0.0
    %232 = vmatpush2.msra.mxu0 0.0
    %233 = vmatprep.subr.mxu0 0.0
    %234 = vmatpush2.msra.mxu0 0.0
    %235 = vmatprep.subr.mxu0 0.0
    %236 = vmatpush2.msra.mxu0 0.0
    %237 = vmatprep.mubr.f32.mxu0 0.0
    %238 = vmatmul.mubr.f32.gmra.mxu0 %v168
    %v239 = vpop.f32.mrf.mxu0
    %v240 = vadd.f32 %v164, %v239
    %v241 = vpop.f32.mrf.mxu0
    %242 = vmatprep.mubr.f32.mxu0 0.0
    %243 = vmatmul.mubr.f32.gmra.mxu0 %v171
    %v244 = vpop.f32.mrf.mxu0
    %v245 = vadd.f32 %v164, %v244
    %v246 = vpop.f32.mrf.mxu0
    %247 = vdwg.mxu0
    %v248 = vld [vmem:[#allocation9] sm:$0xff]
    %v249 = vld [vmem:[#allocation9 + $0x8] sm:$0xff]
    %v250 = vld [vmem:[#allocation9 + $0x10] sm:$0xff]
    %v251 = vld [vmem:[#allocation9 + $0x18] sm:$0xff]
    %v252 = vld [vmem:[#allocation8] sm:$0xff]
    %v253 = vld [vmem:[#allocation8 + $0x8] sm:$0xff]
    %v254 = vld [vmem:[#allocation8 + $0x10] sm:$0xff]
    %v255 = vld [vmem:[#allocation8 + $0x18] sm:$0xff]
    %v256 = vld [vmem:[#allocation11] sm:$0xff]
    %v257 = vld [vmem:[#allocation11 + $0x8] sm:$0xff]
    %v258 = vld [vmem:[#allocation11 + $0x10] sm:$0xff]
    %v259 = vld [vmem:[#allocation11 + $0x18] sm:$0xff]
    %v260 = vld [vmem:[%s6] sm:$0x1]
    %v261 = vxor.u32 %v240, 2147483648
    %v262 = vmul.f32 %v261, 1.442695
    %v263 = vpow.pop %v262
    %v264 = vadd.f32 %v263, 1.0
    %v265 = vrcp.pop %v264
    %v266 = vmul.f32 1.0, %v265
    %v267 = vmul.f32 %v266, 2.0
    %v268 = vsub.f32 %v267, 1.0
    %v269 = vmul.f32 %v266, 0.0
    %271 = vrot.lane.b32.xlu0 %v268, 64
    %v272 = vpop.permute.xlu0 %271
    %v274 = vmul.f32 %v266, %v272
    %276 = vrot.lane.b32.xlu0 %v274, 32
    %v277 = vpop.permute.xlu0 %276
    %v279 = vadd.f32 %v269, %v277
    %v280 = vtanh.pop %v279
    %282 = vrot.lane.b32.xlu0 %v280, 64
    %v283 = vpop.permute.xlu0 %282
    %v285 = vmul.f32 %v266, %v283
    %v287 = vlaneseq
    %v288 = vshrl.u32 %v287, 7
    %v289 = vsub.s32 0, %v288
    %v290 = vrot.slane %v260, %v289
    %293 = vrot.lane.b32.xlu0 %v285, 32
    %v294 = vpop.permute.xlu0 %293
    %v295 = vsel %vm166, %v294, 0
    %297 = vmatprep.subr.mxu0 0.0
    %298 = vmatpush1.msra.mxu0 0.0
    %299 = vmatprep.subr.mxu0 0.0
    %300 = vmatpush1.msra.mxu0 0.0
    %301 = vmatprep.subr.mxu0 0.0
    %302 = vmatpush1.msra.mxu0 0.0
    %303 = vmatprep.subr.mxu0 0.0
    %304 = vmatpush1.msra.mxu0 0.0
    %305 = vmatprep.subr.mxu0 0.0
    %306 = vmatpush1.msra.mxu0 0.0
    %307 = vmatprep.subr.mxu0 0.0
    %308 = vmatpush1.msra.mxu0 0.0
    %309 = vmatprep.subr.mxu0 0.0
    %310 = vmatpush1.msra.mxu0 0.0
    %311 = vmatprep.subr.mxu0 0.0
    %312 = vmatpush1.msra.mxu0 0.0
    %313 = vmatprep.subr.mxu0 0.0
    %314 = vmatpush1.msra.mxu0 0.0
    %315 = vmatprep.subr.mxu0 0.0
    %316 = vmatpush1.msra.mxu0 0.0
    %317 = vmatprep.subr.mxu0 0.0
    %318 = vmatpush1.msra.mxu0 0.0
    %319 = vmatprep.subr.mxu0 0.0
    %320 = vmatpush1.msra.mxu0 0.0
    %321 = vmatprep.subr.mxu0 0.0
    %322 = vmatpush1.msra.mxu0 %v251
    %323 = vmatprep.subr.mxu0 0.0
    %324 = vmatpush1.msra.mxu0 %v250
    %325 = vmatprep.subr.mxu0 0.0
    %326 = vmatpush1.msra.mxu0 %v249
    %327 = vmatprep.subr.mxu0 0.0
    %328 = vmatpush1.msra.mxu0 %v248
    %329 = vmatprep.subr.mxu0 0.0
    %330 = vmatpush2.msra.mxu0 0.0
    %331 = vmatprep.subr.mxu0 0.0
    %332 = vmatpush2.msra.mxu0 0.0
    %333 = vmatprep.subr.mxu0 0.0
    %334 = vmatpush2.msra.mxu0 0.0
    %335 = vmatprep.subr.mxu0 0.0
    %336 = vmatpush2.msra.mxu0 0.0
    %337 = vmatprep.subr.mxu0 0.0
    %338 = vmatpush2.msra.mxu0 0.0
    %339 = vmatprep.subr.mxu0 0.0
    %340 = vmatpush2.msra.mxu0 0.0
    %341 = vmatprep.subr.mxu0 0.0
    %342 = vmatpush2.msra.mxu0 0.0
    %343 = vmatprep.subr.mxu0 0.0
    %344 = vmatpush2.msra.mxu0 0.0
    %345 = vmatprep.subr.mxu0 0.0
    %346 = vmatpush2.msra.mxu0 0.0
    %347 = vmatprep.subr.mxu0 0.0
    %348 = vmatpush2.msra.mxu0 0.0
    %349 = vmatprep.subr.mxu0 0.0
    %350 = vmatpush2.msra.mxu0 0.0
    %351 = vmatprep.subr.mxu0 0.0
    %352 = vmatpush2.msra.mxu0 0.0
    %353 = vmatprep.subr.mxu0 0.0
    %354 = vmatpush2.msra.mxu0 0.0
    %355 = vmatprep.subr.mxu0 0.0
    %356 = vmatpush2.msra.mxu0 0.0
    %357 = vmatprep.subr.mxu0 0.0
    %358 = vmatpush2.msra.mxu0 0.0
    %359 = vmatprep.subr.mxu0 0.0
    %360 = vmatpush2.msra.mxu0 0.0
    %361 = vmatprep.mubr.f32.mxu0 0.0
    %362 = vmatmul.mubr.f32.gmra.mxu0 %v295
    %v363 = vpop.f32.mrf.mxu0
    %v364 = vadd.f32 %v290, %v363
    %v365 = vpop.f32.mrf.mxu0
    %366 = vdwg.mxu0
    %v367 = vxor.u32 %v364, 2147483648
    %v368 = vmul.f32 %v367, 1.442695
    %v369 = vpow.pop %v368
    %v370 = vadd.f32 %v369, 1.0
    %v371 = vrcp.pop %v370
    %v372 = vmul.f32 1.0, %v371
    %v373 = vmul.f32 %v372, 2.0
    %v374 = vsub.f32 %v373, 1.0
    %v375 = vmul.f32 %v372, 0.0
    %377 = vrot.lane.b32.xlu0 %v374, 64
    %v378 = vpop.permute.xlu0 %377
    %v380 = vmul.f32 %v372, %v378
    %382 = vrot.lane.b32.xlu0 %v380, 32
    %v383 = vpop.permute.xlu0 %382
    %v385 = vadd.f32 %v375, %v383
    %v386 = vtanh.pop %v385
    %388 = vrot.lane.b32.xlu0 %v386, 64
    %v389 = vpop.permute.xlu0 %388
    %v391 = vmul.f32 %v372, %v389
    %393 = vrot.lane.b32.xlu0 %v391, 32
    %v394 = vpop.permute.xlu0 %393
    %vm396 = vcmask 254976
    %397 = vst.msk [vmem:[#allocation2] sm:$0x3] %vm396, %v394
    %398 = vmatprep.subr.mxu0 0.0
    %399 = vmatpush1.msra.mxu0 0.0
    %400 = vmatprep.subr.mxu0 0.0
    %401 = vmatpush1.msra.mxu0 0.0
    %402 = vmatprep.subr.mxu0 0.0
    %403 = vmatpush1.msra.mxu0 0.0
    %404 = vmatprep.subr.mxu0 0.0
    %405 = vmatpush1.msra.mxu0 0.0
    %406 = vmatprep.subr.mxu0 0.0
    %407 = vmatpush1.msra.mxu0 0.0
    %408 = vmatprep.subr.mxu0 0.0
    %409 = vmatpush1.msra.mxu0 0.0
    %410 = vmatprep.subr.mxu0 0.0
    %411 = vmatpush1.msra.mxu0 0.0
    %412 = vmatprep.subr.mxu0 0.0
    %413 = vmatpush1.msra.mxu0 0.0
    %414 = vmatprep.subr.mxu0 0.0
    %415 = vmatpush1.msra.mxu0 0.0
    %416 = vmatprep.subr.mxu0 0.0
    %417 = vmatpush1.msra.mxu0 0.0
    %418 = vmatprep.subr.mxu0 0.0
    %419 = vmatpush1.msra.mxu0 0.0
    %420 = vmatprep.subr.mxu0 0.0
    %421 = vmatpush1.msra.mxu0 0.0
    %422 = vmatprep.subr.mxu0 0.0
    %423 = vmatpush1.msra.mxu0 %v255
    %424 = vmatprep.subr.mxu0 0.0
    %425 = vmatpush1.msra.mxu0 %v254
    %426 = vmatprep.subr.mxu0 0.0
    %427 = vmatpush1.msra.mxu0 %v253
    %428 = vmatprep.subr.mxu0 0.0
    %429 = vmatpush1.msra.mxu0 %v252
    %430 = vmatprep.subr.mxu0 0.0
    %431 = vmatpush2.msra.mxu0 0.0
    %432 = vmatprep.subr.mxu0 0.0
    %433 = vmatpush2.msra.mxu0 0.0
    %434 = vmatprep.subr.mxu0 0.0
    %435 = vmatpush2.msra.mxu0 0.0
    %436 = vmatprep.subr.mxu0 0.0
    %437 = vmatpush2.msra.mxu0 0.0
    %438 = vmatprep.subr.mxu0 0.0
    %439 = vmatpush2.msra.mxu0 0.0
    %440 = vmatprep.subr.mxu0 0.0
    %441 = vmatpush2.msra.mxu0 0.0
    %442 = vmatprep.subr.mxu0 0.0
    %443 = vmatpush2.msra.mxu0 0.0
    %444 = vmatprep.subr.mxu0 0.0
    %445 = vmatpush2.msra.mxu0 0.0
    %446 = vmatprep.subr.mxu0 0.0
    %447 = vmatpush2.msra.mxu0 0.0
    %448 = vmatprep.subr.mxu0 0.0
    %449 = vmatpush2.msra.mxu0 0.0
    %450 = vmatprep.subr.mxu0 0.0
    %451 = vmatpush2.msra.mxu0 0.0
    %452 = vmatprep.subr.mxu0 0.0
    %453 = vmatpush2.msra.mxu0 0.0
    %454 = vmatprep.subr.mxu0 0.0
    %455 = vmatpush2.msra.mxu0 0.0
    %456 = vmatprep.subr.mxu0 0.0
    %457 = vmatpush2.msra.mxu0 0.0
    %458 = vmatprep.subr.mxu0 0.0
    %459 = vmatpush2.msra.mxu0 0.0
    %460 = vmatprep.subr.mxu0 0.0
    %461 = vmatpush2.msra.mxu0 0.0
    %462 = vmatprep.mubr.f32.mxu0 0.0
    %463 = vmatmul.mubr.f32.gmra.mxu0 %v295
    %v464 = vpop.f32.mrf.mxu0
    %v465 = vadd.f32 0.0, %v464
    %v466 = vpop.f32.mrf.mxu0
    %467 = vdwg.mxu0
    %v469 = vrot.slane %v465, 6
    %v471 = vadd.f32 %v240, %v469
    %v472 = vxor.u32 %v471, 2147483648
    %v473 = vmul.f32 %v472, 1.442695
    %v474 = vpow.pop %v473
    %v475 = vadd.f32 %v474, 1.0
    %v476 = vrcp.pop %v475
    %v477 = vmul.f32 1.0, %v476
    %v478 = vmul.f32 %v477, 2.0
    %v479 = vsub.f32 %v478, 1.0
    %v481 = vrot.slane %v279, 6
    %v483 = vmul.f32 %v477, %v481
    %485 = vrot.lane.b32.xlu0 %v479, 64
    %v486 = vpop.permute.xlu0 %485
    %v488 = vmul.f32 %v477, %v486
    %490 = vrot.lane.b32.xlu0 %v488, 32
    %v491 = vpop.permute.xlu0 %490
    %v493 = vadd.f32 %v483, %v491
    %v494 = vtanh.pop %v493
    %496 = vrot.lane.b32.xlu0 %v494, 64
    %v497 = vpop.permute.xlu0 %496
    %v499 = vmul.f32 %v477, %v497
    %v501 = vrot.slane %v499, 2
    %502 = vrot.lane.b32.xlu0 %v501, 32
    %v503 = vpop.permute.xlu0 %502
    %v504 = vsel %vm166, %v503, 0
    %506 = vmatprep.subr.mxu0 0.0
    %507 = vmatpush1.msra.mxu0 0.0
    %508 = vmatprep.subr.mxu0 0.0
    %509 = vmatpush1.msra.mxu0 0.0
    %510 = vmatprep.subr.mxu0 0.0
    %511 = vmatpush1.msra.mxu0 0.0
    %512 = vmatprep.subr.mxu0 0.0
    %513 = vmatpush1.msra.mxu0 0.0
    %514 = vmatprep.subr.mxu0 0.0
    %515 = vmatpush1.msra.mxu0 0.0
    %516 = vmatprep.subr.mxu0 0.0
    %517 = vmatpush1.msra.mxu0 0.0
    %518 = vmatprep.subr.mxu0 0.0
    %519 = vmatpush1.msra.mxu0 0.0
    %520 = vmatprep.subr.mxu0 0.0
    %521 = vmatpush1.msra.mxu0 0.0
    %522 = vmatprep.subr.mxu0 0.0
    %523 = vmatpush1.msra.mxu0 0.0
    %524 = vmatprep.subr.mxu0 0.0
    %525 = vmatpush1.msra.mxu0 0.0
    %526 = vmatprep.subr.mxu0 0.0
    %527 = vmatpush1.msra.mxu0 0.0
    %528 = vmatprep.subr.mxu0 0.0
    %529 = vmatpush1.msra.mxu0 0.0
    %530 = vmatprep.subr.mxu0 0.0
    %531 = vmatpush1.msra.mxu0 %v251
    %532 = vmatprep.subr.mxu0 0.0
    %533 = vmatpush1.msra.mxu0 %v250
    %534 = vmatprep.subr.mxu0 0.0
    %535 = vmatpush1.msra.mxu0 %v249
    %536 = vmatprep.subr.mxu0 0.0
    %537 = vmatpush1.msra.mxu0 %v248
    %538 = vmatprep.subr.mxu0 0.0
    %539 = vmatpush2.msra.mxu0 0.0
    %540 = vmatprep.subr.mxu0 0.0
    %541 = vmatpush2.msra.mxu0 0.0
    %542 = vmatprep.subr.mxu0 0.0
    %543 = vmatpush2.msra.mxu0 0.0
    %544 = vmatprep.subr.mxu0 0.0
    %545 = vmatpush2.msra.mxu0 0.0
    %546 = vmatprep.subr.mxu0 0.0
    %547 = vmatpush2.msra.mxu0 0.0
    %548 = vmatprep.subr.mxu0 0.0
    %549 = vmatpush2.msra.mxu0 0.0
    %550 = vmatprep.subr.mxu0 0.0
    %551 = vmatpush2.msra.mxu0 0.0
    %552 = vmatprep.subr.mxu0 0.0
    %553 = vmatpush2.msra.mxu0 0.0
    %554 = vmatprep.subr.mxu0 0.0
    %555 = vmatpush2.msra.mxu0 0.0
    %556 = vmatprep.subr.mxu0 0.0
    %557 = vmatpush2.msra.mxu0 0.0
    %558 = vmatprep.subr.mxu0 0.0
    %559 = vmatpush2.msra.mxu0 0.0
    %560 = vmatprep.subr.mxu0 0.0
    %561 = vmatpush2.msra.mxu0 0.0
    %562 = vmatprep.subr.mxu0 0.0
    %563 = vmatpush2.msra.mxu0 0.0
    %564 = vmatprep.subr.mxu0 0.0
    %565 = vmatpush2.msra.mxu0 0.0
    %566 = vmatprep.subr.mxu0 0.0
    %567 = vmatpush2.msra.mxu0 0.0
    %568 = vmatprep.subr.mxu0 0.0
    %569 = vmatpush2.msra.mxu0 0.0
    %570 = vmatprep.mubr.f32.mxu0 0.0
    %571 = vmatmul.mubr.f32.gmra.mxu0 %v504
    %v572 = vpop.f32.mrf.mxu0
    %v573 = vadd.f32 %v290, %v572
    %v574 = vpop.f32.mrf.mxu0
    %575 = vdwg.mxu0
    %v576 = vsel %vm166, %v394, 0
    %578 = vmatprep.subr.mxu0 0.0
    %579 = vmatpush1.msra.mxu0 0.0
    %580 = vmatprep.subr.mxu0 0.0
    %581 = vmatpush1.msra.mxu0 0.0
    %582 = vmatprep.subr.mxu0 0.0
    %583 = vmatpush1.msra.mxu0 0.0
    %584 = vmatprep.subr.mxu0 0.0
    %585 = vmatpush1.msra.mxu0 0.0
    %586 = vmatprep.subr.mxu0 0.0
    %587 = vmatpush1.msra.mxu0 0.0
    %588 = vmatprep.subr.mxu0 0.0
    %589 = vmatpush1.msra.mxu0 0.0
    %590 = vmatprep.subr.mxu0 0.0
    %591 = vmatpush1.msra.mxu0 0.0
    %592 = vmatprep.subr.mxu0 0.0
    %593 = vmatpush1.msra.mxu0 0.0
    %594 = vmatprep.subr.mxu0 0.0
    %595 = vmatpush1.msra.mxu0 0.0
    %596 = vmatprep.subr.mxu0 0.0
    %597 = vmatpush1.msra.mxu0 0.0
    %598 = vmatprep.subr.mxu0 0.0
    %599 = vmatpush1.msra.mxu0 0.0
    %600 = vmatprep.subr.mxu0 0.0
    %601 = vmatpush1.msra.mxu0 0.0
    %602 = vmatprep.subr.mxu0 0.0
    %603 = vmatpush1.msra.mxu0 %v259
    %604 = vmatprep.subr.mxu0 0.0
    %605 = vmatpush1.msra.mxu0 %v258
    %606 = vmatprep.subr.mxu0 0.0
    %607 = vmatpush1.msra.mxu0 %v257
    %608 = vmatprep.subr.mxu0 0.0
    %609 = vmatpush1.msra.mxu0 %v256
    %610 = vmatprep.subr.mxu0 0.0
    %611 = vmatpush2.msra.mxu0 0.0
    %612 = vmatprep.subr.mxu0 0.0
    %613 = vmatpush2.msra.mxu0 0.0
    %614 = vmatprep.subr.mxu0 0.0
    %615 = vmatpush2.msra.mxu0 0.0
    %616 = vmatprep.subr.mxu0 0.0
    %617 = vmatpush2.msra.mxu0 0.0
    %618 = vmatprep.subr.mxu0 0.0
    %619 = vmatpush2.msra.mxu0 0.0
    %620 = vmatprep.subr.mxu0 0.0
    %621 = vmatpush2.msra.mxu0 0.0
    %622 = vmatprep.subr.mxu0 0.0
    %623 = vmatpush2.msra.mxu0 0.0
    %624 = vmatprep.subr.mxu0 0.0
    %625 = vmatpush2.msra.mxu0 0.0
    %626 = vmatprep.subr.mxu0 0.0
    %627 = vmatpush2.msra.mxu0 0.0
    %628 = vmatprep.subr.mxu0 0.0
    %629 = vmatpush2.msra.mxu0 0.0
    %630 = vmatprep.subr.mxu0 0.0
    %631 = vmatpush2.msra.mxu0 0.0
    %632 = vmatprep.subr.mxu0 0.0
    %633 = vmatpush2.msra.mxu0 0.0
    %634 = vmatprep.subr.mxu0 0.0
    %635 = vmatpush2.msra.mxu0 0.0
    %636 = vmatprep.subr.mxu0 0.0
    %637 = vmatpush2.msra.mxu0 0.0
    %638 = vmatprep.subr.mxu0 0.0
    %639 = vmatpush2.msra.mxu0 0.0
    %640 = vmatprep.subr.mxu0 0.0
    %641 = vmatpush2.msra.mxu0 0.0
    %642 = vmatprep.mubr.f32.mxu0 0.0
    %643 = vmatmul.mubr.f32.gmra.mxu0 %v576
    %v644 = vpop.f32.mrf.mxu0
    %v645 = vadd.f32 0.0, %v644
    %v646 = vpop.f32.mrf.mxu0
    %647 = vdwg.mxu0
    %v648 = vadd.f32 %v573, %v645
    %v649 = vxor.u32 %v648, 2147483648
    %v650 = vmul.f32 %v649, 1.442695
    %v651 = vpow.pop %v650
    %v652 = vadd.f32 %v651, 1.0
    %v653 = vrcp.pop %v652
    %v654 = vmul.f32 1.0, %v653
    %v655 = vmul.f32 %v654, 2.0
    %v656 = vsub.f32 %v655, 1.0
    %v657 = vmul.f32 %v654, %v385
    %659 = vrot.lane.b32.xlu0 %v656, 64
    %v660 = vpop.permute.xlu0 %659
    %v662 = vmul.f32 %v654, %v660
    %664 = vrot.lane.b32.xlu0 %v662, 32
    %v665 = vpop.permute.xlu0 %664
    %v667 = vadd.f32 %v657, %v665
    %v668 = vtanh.pop %v667
    %670 = vrot.lane.b32.xlu0 %v668, 64
    %v671 = vpop.permute.xlu0 %670
    %v673 = vmul.f32 %v654, %v671
    %675 = vrot.lane.b32.xlu0 %v673, 32
    %v676 = vpop.permute.xlu0 %675
    %678 = vst.msk [vmem:[#allocation2 + $0x2] sm:$0x3] %vm396, %v676
    %679 = vmatprep.subr.mxu0 0.0
    %680 = vmatpush1.msra.mxu0 0.0
    %681 = vmatprep.subr.mxu0 0.0
    %682 = vmatpush1.msra.mxu0 0.0
    %683 = vmatprep.subr.mxu0 0.0
    %684 = vmatpush1.msra.mxu0 0.0
    %685 = vmatprep.subr.mxu0 0.0
    %686 = vmatpush1.msra.mxu0 0.0
    %687 = vmatprep.subr.mxu0 0.0
    %688 = vmatpush1.msra.mxu0 0.0
    %689 = vmatprep.subr.mxu0 0.0
    %690 = vmatpush1.msra.mxu0 0.0
    %691 = vmatprep.subr.mxu0 0.0
    %692 = vmatpush1.msra.mxu0 0.0
    %693 = vmatprep.subr.mxu0 0.0
    %694 = vmatpush1.msra.mxu0 0.0
    %695 = vmatprep.subr.mxu0 0.0
    %696 = vmatpush1.msra.mxu0 0.0
    %697 = vmatprep.subr.mxu0 0.0
    %698 = vmatpush1.msra.mxu0 0.0
    %699 = vmatprep.subr.mxu0 0.0
    %700 = vmatpush1.msra.mxu0 0.0
    %701 = vmatprep.subr.mxu0 0.0
    %702 = vmatpush1.msra.mxu0 0.0
    %703 = vmatprep.subr.mxu0 0.0
    %704 = vmatpush1.msra.mxu0 %v255
    %705 = vmatprep.subr.mxu0 0.0
    %706 = vmatpush1.msra.mxu0 %v254
    %707 = vmatprep.subr.mxu0 0.0
    %708 = vmatpush1.msra.mxu0 %v253
    %709 = vmatprep.subr.mxu0 0.0
    %710 = vmatpush1.msra.mxu0 %v252
    %711 = vmatprep.subr.mxu0 0.0
    %712 = vmatpush2.msra.mxu0 0.0
    %713 = vmatprep.subr.mxu0 0.0
    %714 = vmatpush2.msra.mxu0 0.0
    %715 = vmatprep.subr.mxu0 0.0
    %716 = vmatpush2.msra.mxu0 0.0
    %717 = vmatprep.subr.mxu0 0.0
    %718 = vmatpush2.msra.mxu0 0.0
    %719 = vmatprep.subr.mxu0 0.0
    %720 = vmatpush2.msra.mxu0 0.0
    %721 = vmatprep.subr.mxu0 0.0
    %722 = vmatpush2.msra.mxu0 0.0
    %723 = vmatprep.subr.mxu0 0.0
    %724 = vmatpush2.msra.mxu0 0.0
    %725 = vmatprep.subr.mxu0 0.0
    %726 = vmatpush2.msra.mxu0 0.0
    %727 = vmatprep.subr.mxu0 0.0
    %728 = vmatpush2.msra.mxu0 0.0
    %729 = vmatprep.subr.mxu0 0.0
    %730 = vmatpush2.msra.mxu0 0.0
    %731 = vmatprep.subr.mxu0 0.0
    %732 = vmatpush2.msra.mxu0 0.0
    %733 = vmatprep.subr.mxu0 0.0
    %734 = vmatpush2.msra.mxu0 0.0
    %735 = vmatprep.subr.mxu0 0.0
    %736 = vmatpush2.msra.mxu0 0.0
    %737 = vmatprep.subr.mxu0 0.0
    %738 = vmatpush2.msra.mxu0 0.0
    %739 = vmatprep.subr.mxu0 0.0
    %740 = vmatpush2.msra.mxu0 0.0
    %741 = vmatprep.subr.mxu0 0.0
    %742 = vmatpush2.msra.mxu0 0.0
    %743 = vmatprep.mubr.f32.mxu0 0.0
    %744 = vmatmul.mubr.f32.gmra.mxu0 %v504
    %v745 = vpop.f32.mrf.mxu0
    %v746 = vadd.f32 0.0, %v745
    %v747 = vpop.f32.mrf.mxu0
    %748 = vdwg.mxu0
    %v750 = vrot.slane %v746, 4
    %v752 = vadd.f32 %v240, %v750
    %v753 = vxor.u32 %v752, 2147483648
    %v754 = vmul.f32 %v753, 1.442695
    %v755 = vpow.pop %v754
    %v756 = vadd.f32 %v755, 1.0
    %v757 = vrcp.pop %v756
    %v758 = vmul.f32 1.0, %v757
    %v759 = vmul.f32 %v758, 2.0
    %v760 = vsub.f32 %v759, 1.0
    %v762 = vrot.slane %v493, 6
    %v764 = vmul.f32 %v758, %v762
    %766 = vrot.lane.b32.xlu0 %v760, 64
    %v767 = vpop.permute.xlu0 %766
    %v769 = vmul.f32 %v758, %v767
    %771 = vrot.lane.b32.xlu0 %v769, 32
    %v772 = vpop.permute.xlu0 %771
    %v774 = vadd.f32 %v764, %v772
    %v775 = vtanh.pop %v774
    %777 = vrot.lane.b32.xlu0 %v775, 64
    %v778 = vpop.permute.xlu0 %777
    %v780 = vmul.f32 %v758, %v778
    %v782 = vrot.slane %v780, 4
    %783 = vrot.lane.b32.xlu0 %v782, 32
    %v784 = vpop.permute.xlu0 %783
    %v785 = vsel %vm166, %v784, 0
    %787 = vmatprep.subr.mxu0 0.0
    %788 = vmatpush1.msra.mxu0 0.0
    %789 = vmatprep.subr.mxu0 0.0
    %790 = vmatpush1.msra.mxu0 0.0
    %791 = vmatprep.subr.mxu0 0.0
    %792 = vmatpush1.msra.mxu0 0.0
    %793 = vmatprep.subr.mxu0 0.0
    %794 = vmatpush1.msra.mxu0 0.0
    %795 = vmatprep.subr.mxu0 0.0
    %796 = vmatpush1.msra.mxu0 0.0
    %797 = vmatprep.subr.mxu0 0.0
    %798 = vmatpush1.msra.mxu0 0.0
    %799 = vmatprep.subr.mxu0 0.0
    %800 = vmatpush1.msra.mxu0 0.0
    %801 = vmatprep.subr.mxu0 0.0
    %802 = vmatpush1.msra.mxu0 0.0
    %803 = vmatprep.subr.mxu0 0.0
    %804 = vmatpush1.msra.mxu0 0.0
    %805 = vmatprep.subr.mxu0 0.0
    %806 = vmatpush1.msra.mxu0 0.0
    %807 = vmatprep.subr.mxu0 0.0
    %808 = vmatpush1.msra.mxu0 0.0
    %809 = vmatprep.subr.mxu0 0.0
    %810 = vmatpush1.msra.mxu0 0.0
    %811 = vmatprep.subr.mxu0 0.0
    %812 = vmatpush1.msra.mxu0 %v251
    %813 = vmatprep.subr.mxu0 0.0
    %814 = vmatpush1.msra.mxu0 %v250
    %815 = vmatprep.subr.mxu0 0.0
    %816 = vmatpush1.msra.mxu0 %v249
    %817 = vmatprep.subr.mxu0 0.0
    %818 = vmatpush1.msra.mxu0 %v248
    %819 = vmatprep.subr.mxu0 0.0
    %820 = vmatpush2.msra.mxu0 0.0
    %821 = vmatprep.subr.mxu0 0.0
    %822 = vmatpush2.msra.mxu0 0.0
    %823 = vmatprep.subr.mxu0 0.0
    %824 = vmatpush2.msra.mxu0 0.0
    %825 = vmatprep.subr.mxu0 0.0
    %826 = vmatpush2.msra.mxu0 0.0
    %827 = vmatprep.subr.mxu0 0.0
    %828 = vmatpush2.msra.mxu0 0.0
    %829 = vmatprep.subr.mxu0 0.0
    %830 = vmatpush2.msra.mxu0 0.0
    %831 = vmatprep.subr.mxu0 0.0
    %832 = vmatpush2.msra.mxu0 0.0
    %833 = vmatprep.subr.mxu0 0.0
    %834 = vmatpush2.msra.mxu0 0.0
    %835 = vmatprep.subr.mxu0 0.0
    %836 = vmatpush2.msra.mxu0 0.0
    %837 = vmatprep.subr.mxu0 0.0
    %838 = vmatpush2.msra.mxu0 0.0
    %839 = vmatprep.subr.mxu0 0.0
    %840 = vmatpush2.msra.mxu0 0.0
    %841 = vmatprep.subr.mxu0 0.0
    %842 = vmatpush2.msra.mxu0 0.0
    %843 = vmatprep.subr.mxu0 0.0
    %844 = vmatpush2.msra.mxu0 0.0
    %845 = vmatprep.subr.mxu0 0.0
    %846 = vmatpush2.msra.mxu0 0.0
    %847 = vmatprep.subr.mxu0 0.0
    %848 = vmatpush2.msra.mxu0 0.0
    %849 = vmatprep.subr.mxu0 0.0
    %850 = vmatpush2.msra.mxu0 0.0
    %851 = vmatprep.mubr.f32.mxu0 0.0
    %852 = vmatmul.mubr.f32.gmra.mxu0 %v785
    %v853 = vpop.f32.mrf.mxu0
    %v854 = vadd.f32 %v290, %v853
    %v855 = vpop.f32.mrf.mxu0
    %856 = vdwg.mxu0
    %v857 = vsel %vm166, %v676, 0
    %859 = vmatprep.subr.mxu0 0.0
    %860 = vmatpush1.msra.mxu0 0.0
    %861 = vmatprep.subr.mxu0 0.0
    %862 = vmatpush1.msra.mxu0 0.0
    %863 = vmatprep.subr.mxu0 0.0
    %864 = vmatpush1.msra.mxu0 0.0
    %865 = vmatprep.subr.mxu0 0.0
    %866 = vmatpush1.msra.mxu0 0.0
    %867 = vmatprep.subr.mxu0 0.0
    %868 = vmatpush1.msra.mxu0 0.0
    %869 = vmatprep.subr.mxu0 0.0
    %870 = vmatpush1.msra.mxu0 0.0
    %871 = vmatprep.subr.mxu0 0.0
    %872 = vmatpush1.msra.mxu0 0.0
    %873 = vmatprep.subr.mxu0 0.0
    %874 = vmatpush1.msra.mxu0 0.0
    %875 = vmatprep.subr.mxu0 0.0
    %876 = vmatpush1.msra.mxu0 0.0
    %877 = vmatprep.subr.mxu0 0.0
    %878 = vmatpush1.msra.mxu0 0.0
    %879 = vmatprep.subr.mxu0 0.0
    %880 = vmatpush1.msra.mxu0 0.0
    %881 = vmatprep.subr.mxu0 0.0
    %882 = vmatpush1.msra.mxu0 0.0
    %883 = vmatprep.subr.mxu0 0.0
    %884 = vmatpush1.msra.mxu0 %v259
    %885 = vmatprep.subr.mxu0 0.0
    %886 = vmatpush1.msra.mxu0 %v258
    %887 = vmatprep.subr.mxu0 0.0
    %888 = vmatpush1.msra.mxu0 %v257
    %889 = vmatprep.subr.mxu0 0.0
    %890 = vmatpush1.msra.mxu0 %v256
    %891 = vmatprep.subr.mxu0 0.0
    %892 = vmatpush2.msra.mxu0 0.0
    %893 = vmatprep.subr.mxu0 0.0
    %894 = vmatpush2.msra.mxu0 0.0
    %895 = vmatprep.subr.mxu0 0.0
    %896 = vmatpush2.msra.mxu0 0.0
    %897 = vmatprep.subr.mxu0 0.0
    %898 = vmatpush2.msra.mxu0 0.0
    %899 = vmatprep.subr.mxu0 0.0
    %900 = vmatpush2.msra.mxu0 0.0
    %901 = vmatprep.subr.mxu0 0.0
    %902 = vmatpush2.msra.mxu0 0.0
    %903 = vmatprep.subr.mxu0 0.0
    %904 = vmatpush2.msra.mxu0 0.0
    %905 = vmatprep.subr.mxu0 0.0
    %906 = vmatpush2.msra.mxu0 0.0
    %907 = vmatprep.subr.mxu0 0.0
    %908 = vmatpush2.msra.mxu0 0.0
    %909 = vmatprep.subr.mxu0 0.0
    %910 = vmatpush2.msra.mxu0 0.0
    %911 = vmatprep.subr.mxu0 0.0
    %912 = vmatpush2.msra.mxu0 0.0
    %913 = vmatprep.subr.mxu0 0.0
    %914 = vmatpush2.msra.mxu0 0.0
    %915 = vmatprep.subr.mxu0 0.0
    %916 = vmatpush2.msra.mxu0 0.0
    %917 = vmatprep.subr.mxu0 0.0
    %918 = vmatpush2.msra.mxu0 0.0
    %919 = vmatprep.subr.mxu0 0.0
    %920 = vmatpush2.msra.mxu0 0.0
    %921 = vmatprep.subr.mxu0 0.0
    %922 = vmatpush2.msra.mxu0 0.0
    %923 = vmatprep.mubr.f32.mxu0 0.0
    %924 = vmatmul.mubr.f32.gmra.mxu0 %v857
    %v925 = vpop.f32.mrf.mxu0
    %v926 = vadd.f32 0.0, %v925
    %v927 = vpop.f32.mrf.mxu0
    %928 = vdwg.mxu0
    %v929 = vadd.f32 %v854, %v926
    %v930 = vxor.u32 %v929, 2147483648
    %v931 = vmul.f32 %v930, 1.442695
    %v932 = vpow.pop %v931
    %v933 = vadd.f32 %v932, 1.0
    %v934 = vrcp.pop %v933
    %v935 = vmul.f32 1.0, %v934
    %v936 = vmul.f32 %v935, 2.0
    %v937 = vsub.f32 %v936, 1.0
    %v938 = vmul.f32 %v935, %v667
    %940 = vrot.lane.b32.xlu0 %v937, 64
    %v941 = vpop.permute.xlu0 %940
    %v943 = vmul.f32 %v935, %v941
    %945 = vrot.lane.b32.xlu0 %v943, 32
    %v946 = vpop.permute.xlu0 %945
    %v948 = vadd.f32 %v938, %v946
    %v949 = vtanh.pop %v948
    %951 = vrot.lane.b32.xlu0 %v949, 64
    %v952 = vpop.permute.xlu0 %951
    %v954 = vmul.f32 %v935, %v952
    %956 = vrot.lane.b32.xlu0 %v954, 32
    %v957 = vpop.permute.xlu0 %956
    %959 = vst.msk [vmem:[#allocation2 + $0x4] sm:$0x3] %vm396, %v957
    %960 = vmatprep.subr.mxu0 0.0
    %961 = vmatpush1.msra.mxu0 0.0
    %962 = vmatprep.subr.mxu0 0.0
    %963 = vmatpush1.msra.mxu0 0.0
    %964 = vmatprep.subr.mxu0 0.0
    %965 = vmatpush1.msra.mxu0 0.0
    %966 = vmatprep.subr.mxu0 0.0
    %967 = vmatpush1.msra.mxu0 0.0
    %968 = vmatprep.subr.mxu0 0.0
    %969 = vmatpush1.msra.mxu0 0.0
    %970 = vmatprep.subr.mxu0 0.0
    %971 = vmatpush1.msra.mxu0 0.0
    %972 = vmatprep.subr.mxu0 0.0
    %973 = vmatpush1.msra.mxu0 0.0
    %974 = vmatprep.subr.mxu0 0.0
    %975 = vmatpush1.msra.mxu0 0.0
    %976 = vmatprep.subr.mxu0 0.0
    %977 = vmatpush1.msra.mxu0 0.0
    %978 = vmatprep.subr.mxu0 0.0
    %979 = vmatpush1.msra.mxu0 0.0
    %980 = vmatprep.subr.mxu0 0.0
    %981 = vmatpush1.msra.mxu0 0.0
    %982 = vmatprep.subr.mxu0 0.0
    %983 = vmatpush1.msra.mxu0 0.0
    %984 = vmatprep.subr.mxu0 0.0
    %985 = vmatpush1.msra.mxu0 %v255
    %986 = vmatprep.subr.mxu0 0.0
    %987 = vmatpush1.msra.mxu0 %v254
    %988 = vmatprep.subr.mxu0 0.0
    %989 = vmatpush1.msra.mxu0 %v253
    %990 = vmatprep.subr.mxu0 0.0
    %991 = vmatpush1.msra.mxu0 %v252
    %992 = vmatprep.subr.mxu0 0.0
    %993 = vmatpush2.msra.mxu0 0.0
    %994 = vmatprep.subr.mxu0 0.0
    %995 = vmatpush2.msra.mxu0 0.0
    %996 = vmatprep.subr.mxu0 0.0
    %997 = vmatpush2.msra.mxu0 0.0
    %998 = vmatprep.subr.mxu0 0.0
    %999 = vmatpush2.msra.mxu0 0.0
    %1000 = vmatprep.subr.mxu0 0.0
    %1001 = vmatpush2.msra.mxu0 0.0
    %1002 = vmatprep.subr.mxu0 0.0
    %1003 = vmatpush2.msra.mxu0 0.0
    %1004 = vmatprep.subr.mxu0 0.0
    %1005 = vmatpush2.msra.mxu0 0.0
    %1006 = vmatprep.subr.mxu0 0.0
    %1007 = vmatpush2.msra.mxu0 0.0
    %1008 = vmatprep.subr.mxu0 0.0
    %1009 = vmatpush2.msra.mxu0 0.0
    %1010 = vmatprep.subr.mxu0 0.0
    %1011 = vmatpush2.msra.mxu0 0.0
    %1012 = vmatprep.subr.mxu0 0.0
    %1013 = vmatpush2.msra.mxu0 0.0
    %1014 = vmatprep.subr.mxu0 0.0
    %1015 = vmatpush2.msra.mxu0 0.0
    %1016 = vmatprep.subr.mxu0 0.0
    %1017 = vmatpush2.msra.mxu0 0.0
    %1018 = vmatprep.subr.mxu0 0.0
    %1019 = vmatpush2.msra.mxu0 0.0
    %1020 = vmatprep.subr.mxu0 0.0
    %1021 = vmatpush2.msra.mxu0 0.0
    %1022 = vmatprep.subr.mxu0 0.0
    %1023 = vmatpush2.msra.mxu0 0.0
    %1024 = vmatprep.mubr.f32.mxu0 0.0
    %1025 = vmatmul.mubr.f32.gmra.mxu0 %v785
    %v1026 = vpop.f32.mrf.mxu0
    %v1027 = vadd.f32 0.0, %v1026
    %v1028 = vpop.f32.mrf.mxu0
    %1029 = vdwg.mxu0
    %v1031 = vrot.slane %v1027, 2
    %v1033 = vadd.f32 %v240, %v1031
    %v1034 = vxor.u32 %v1033, 2147483648
    %v1035 = vmul.f32 %v1034, 1.442695
    %v1036 = vpow.pop %v1035
    %v1037 = vadd.f32 %v1036, 1.0
    %v1038 = vrcp.pop %v1037
    %v1039 = vmul.f32 1.0, %v1038
    %v1040 = vmul.f32 %v1039, 2.0
    %v1041 = vsub.f32 %v1040, 1.0
    %v1043 = vrot.slane %v774, 6
    %v1045 = vmul.f32 %v1039, %v1043
    %1047 = vrot.lane.b32.xlu0 %v1041, 64
    %v1048 = vpop.permute.xlu0 %1047
    %v1050 = vmul.f32 %v1039, %v1048
    %1052 = vrot.lane.b32.xlu0 %v1050, 32
    %v1053 = vpop.permute.xlu0 %1052
    %v1055 = vadd.f32 %v1045, %v1053
    %v1056 = vtanh.pop %v1055
    %1058 = vrot.lane.b32.xlu0 %v1056, 64
    %v1059 = vpop.permute.xlu0 %1058
    %v1061 = vmul.f32 %v1039, %v1059
    %v1063 = vrot.slane %v1061, 6
    %1064 = vrot.lane.b32.xlu0 %v1063, 32
    %v1065 = vpop.permute.xlu0 %1064
    %v1066 = vsel %vm166, %v1065, 0
    %1068 = vmatprep.subr.mxu0 0.0
    %1069 = vmatpush1.msra.mxu0 0.0
    %1070 = vmatprep.subr.mxu0 0.0
    %1071 = vmatpush1.msra.mxu0 0.0
    %1072 = vmatprep.subr.mxu0 0.0
    %1073 = vmatpush1.msra.mxu0 0.0
    %1074 = vmatprep.subr.mxu0 0.0
    %1075 = vmatpush1.msra.mxu0 0.0
    %1076 = vmatprep.subr.mxu0 0.0
    %1077 = vmatpush1.msra.mxu0 0.0
    %1078 = vmatprep.subr.mxu0 0.0
    %1079 = vmatpush1.msra.mxu0 0.0
    %1080 = vmatprep.subr.mxu0 0.0
    %1081 = vmatpush1.msra.mxu0 0.0
    %1082 = vmatprep.subr.mxu0 0.0
    %1083 = vmatpush1.msra.mxu0 0.0
    %1084 = vmatprep.subr.mxu0 0.0
    %1085 = vmatpush1.msra.mxu0 0.0
    %1086 = vmatprep.subr.mxu0 0.0
    %1087 = vmatpush1.msra.mxu0 0.0
    %1088 = vmatprep.subr.mxu0 0.0
    %1089 = vmatpush1.msra.mxu0 0.0
    %1090 = vmatprep.subr.mxu0 0.0
    %1091 = vmatpush1.msra.mxu0 0.0
    %1092 = vmatprep.subr.mxu0 0.0
    %1093 = vmatpush1.msra.mxu0 %v251
    %1094 = vmatprep.subr.mxu0 0.0
    %1095 = vmatpush1.msra.mxu0 %v250
    %1096 = vmatprep.subr.mxu0 0.0
    %1097 = vmatpush1.msra.mxu0 %v249
    %1098 = vmatprep.subr.mxu0 0.0
    %1099 = vmatpush1.msra.mxu0 %v248
    %1100 = vmatprep.subr.mxu0 0.0
    %1101 = vmatpush2.msra.mxu0 0.0
    %1102 = vmatprep.subr.mxu0 0.0
    %1103 = vmatpush2.msra.mxu0 0.0
    %1104 = vmatprep.subr.mxu0 0.0
    %1105 = vmatpush2.msra.mxu0 0.0
    %1106 = vmatprep.subr.mxu0 0.0
    %1107 = vmatpush2.msra.mxu0 0.0
    %1108 = vmatprep.subr.mxu0 0.0
    %1109 = vmatpush2.msra.mxu0 0.0
    %1110 = vmatprep.subr.mxu0 0.0
    %1111 = vmatpush2.msra.mxu0 0.0
    %1112 = vmatprep.subr.mxu0 0.0
    %1113 = vmatpush2.msra.mxu0 0.0
    %1114 = vmatprep.subr.mxu0 0.0
    %1115 = vmatpush2.msra.mxu0 0.0
    %1116 = vmatprep.subr.mxu0 0.0
    %1117 = vmatpush2.msra.mxu0 0.0
    %1118 = vmatprep.subr.mxu0 0.0
    %1119 = vmatpush2.msra.mxu0 0.0
    %1120 = vmatprep.subr.mxu0 0.0
    %1121 = vmatpush2.msra.mxu0 0.0
    %1122 = vmatprep.subr.mxu0 0.0
    %1123 = vmatpush2.msra.mxu0 0.0
    %1124 = vmatprep.subr.mxu0 0.0
    %1125 = vmatpush2.msra.mxu0 0.0
    %1126 = vmatprep.subr.mxu0 0.0
    %1127 = vmatpush2.msra.mxu0 0.0
    %1128 = vmatprep.subr.mxu0 0.0
    %1129 = vmatpush2.msra.mxu0 0.0
    %1130 = vmatprep.subr.mxu0 0.0
    %1131 = vmatpush2.msra.mxu0 0.0
    %1132 = vmatprep.mubr.f32.mxu0 0.0
    %1133 = vmatmul.mubr.f32.gmra.mxu0 %v1066
    %v1134 = vpop.f32.mrf.mxu0
    %v1135 = vadd.f32 %v290, %v1134
    %v1136 = vpop.f32.mrf.mxu0
    %1137 = vdwg.mxu0
    %v1138 = vsel %vm166, %v957, 0
    %1140 = vmatprep.subr.mxu0 0.0
    %1141 = vmatpush1.msra.mxu0 0.0
    %1142 = vmatprep.subr.mxu0 0.0
    %1143 = vmatpush1.msra.mxu0 0.0
    %1144 = vmatprep.subr.mxu0 0.0
    %1145 = vmatpush1.msra.mxu0 0.0
    %1146 = vmatprep.subr.mxu0 0.0
    %1147 = vmatpush1.msra.mxu0 0.0
    %1148 = vmatprep.subr.mxu0 0.0
    %1149 = vmatpush1.msra.mxu0 0.0
    %1150 = vmatprep.subr.mxu0 0.0
    %1151 = vmatpush1.msra.mxu0 0.0
    %1152 = vmatprep.subr.mxu0 0.0
    %1153 = vmatpush1.msra.mxu0 0.0
    %1154 = vmatprep.subr.mxu0 0.0
    %1155 = vmatpush1.msra.mxu0 0.0
    %1156 = vmatprep.subr.mxu0 0.0
    %1157 = vmatpush1.msra.mxu0 0.0
    %1158 = vmatprep.subr.mxu0 0.0
    %1159 = vmatpush1.msra.mxu0 0.0
    %1160 = vmatprep.subr.mxu0 0.0
    %1161 = vmatpush1.msra.mxu0 0.0
    %1162 = vmatprep.subr.mxu0 0.0
    %1163 = vmatpush1.msra.mxu0 0.0
    %1164 = vmatprep.subr.mxu0 0.0
    %1165 = vmatpush1.msra.mxu0 %v259
    %1166 = vmatprep.subr.mxu0 0.0
    %1167 = vmatpush1.msra.mxu0 %v258
    %1168 = vmatprep.subr.mxu0 0.0
    %1169 = vmatpush1.msra.mxu0 %v257
    %1170 = vmatprep.subr.mxu0 0.0
    %1171 = vmatpush1.msra.mxu0 %v256
    %1172 = vmatprep.subr.mxu0 0.0
    %1173 = vmatpush2.msra.mxu0 0.0
    %1174 = vmatprep.subr.mxu0 0.0
    %1175 = vmatpush2.msra.mxu0 0.0
    %1176 = vmatprep.subr.mxu0 0.0
    %1177 = vmatpush2.msra.mxu0 0.0
    %1178 = vmatprep.subr.mxu0 0.0
    %1179 = vmatpush2.msra.mxu0 0.0
    %1180 = vmatprep.subr.mxu0 0.0
    %1181 = vmatpush2.msra.mxu0 0.0
    %1182 = vmatprep.subr.mxu0 0.0
    %1183 = vmatpush2.msra.mxu0 0.0
    %1184 = vmatprep.subr.mxu0 0.0
    %1185 = vmatpush2.msra.mxu0 0.0
    %1186 = vmatprep.subr.mxu0 0.0
    %1187 = vmatpush2.msra.mxu0 0.0
    %1188 = vmatprep.subr.mxu0 0.0
    %1189 = vmatpush2.msra.mxu0 0.0
    %1190 = vmatprep.subr.mxu0 0.0
    %1191 = vmatpush2.msra.mxu0 0.0
    %1192 = vmatprep.subr.mxu0 0.0
    %1193 = vmatpush2.msra.mxu0 0.0
    %1194 = vmatprep.subr.mxu0 0.0
    %1195 = vmatpush2.msra.mxu0 0.0
    %1196 = vmatprep.subr.mxu0 0.0
    %1197 = vmatpush2.msra.mxu0 0.0
    %1198 = vmatprep.subr.mxu0 0.0
    %1199 = vmatpush2.msra.mxu0 0.0
    %1200 = vmatprep.subr.mxu0 0.0
    %1201 = vmatpush2.msra.mxu0 0.0
    %1202 = vmatprep.subr.mxu0 0.0
    %1203 = vmatpush2.msra.mxu0 0.0
    %1204 = vmatprep.mubr.f32.mxu0 0.0
    %1205 = vmatmul.mubr.f32.gmra.mxu0 %v1138
    %v1206 = vpop.f32.mrf.mxu0
    %v1207 = vadd.f32 0.0, %v1206
    %v1208 = vpop.f32.mrf.mxu0
    %1209 = vdwg.mxu0
    %v1210 = vadd.f32 %v1135, %v1207
    %v1211 = vxor.u32 %v1210, 2147483648
    %v1212 = vmul.f32 %v1211, 1.442695
    %v1213 = vpow.pop %v1212
    %v1214 = vadd.f32 %v1213, 1.0
    %v1215 = vrcp.pop %v1214
    %v1216 = vmul.f32 1.0, %v1215
    %v1217 = vmul.f32 %v1216, 2.0
    %v1218 = vsub.f32 %v1217, 1.0
    %v1219 = vmul.f32 %v1216, %v948
    %1221 = vrot.lane.b32.xlu0 %v1218, 64
    %v1222 = vpop.permute.xlu0 %1221
    %v1224 = vmul.f32 %v1216, %v1222
    %1226 = vrot.lane.b32.xlu0 %v1224, 32
    %v1227 = vpop.permute.xlu0 %1226
    %v1229 = vadd.f32 %v1219, %v1227
    %v1230 = vtanh.pop %v1229
    %1232 = vrot.lane.b32.xlu0 %v1230, 64
    %v1233 = vpop.permute.xlu0 %1232
    %v1235 = vmul.f32 %v1216, %v1233
    %1237 = vrot.lane.b32.xlu0 %v1235, 32
    %v1238 = vpop.permute.xlu0 %1237
    %1240 = vst.msk [vmem:[#allocation2 + $0x6] sm:$0x3] %vm396, %v1238
    %1241 = vmatprep.subr.mxu0 0.0
    %1242 = vmatpush1.msra.mxu0 0.0
    %1243 = vmatprep.subr.mxu0 0.0
    %1244 = vmatpush1.msra.mxu0 0.0
    %1245 = vmatprep.subr.mxu0 0.0
    %1246 = vmatpush1.msra.mxu0 0.0
    %1247 = vmatprep.subr.mxu0 0.0
    %1248 = vmatpush1.msra.mxu0 0.0
    %1249 = vmatprep.subr.mxu0 0.0
    %1250 = vmatpush1.msra.mxu0 0.0
    %1251 = vmatprep.subr.mxu0 0.0
    %1252 = vmatpush1.msra.mxu0 0.0
    %1253 = vmatprep.subr.mxu0 0.0
    %1254 = vmatpush1.msra.mxu0 0.0
    %1255 = vmatprep.subr.mxu0 0.0
    %1256 = vmatpush1.msra.mxu0 0.0
    %1257 = vmatprep.subr.mxu0 0.0
    %1258 = vmatpush1.msra.mxu0 0.0
    %1259 = vmatprep.subr.mxu0 0.0
    %1260 = vmatpush1.msra.mxu0 0.0
    %1261 = vmatprep.subr.mxu0 0.0
    %1262 = vmatpush1.msra.mxu0 0.0
    %1263 = vmatprep.subr.mxu0 0.0
    %1264 = vmatpush1.msra.mxu0 0.0
    %1265 = vmatprep.subr.mxu0 0.0
    %1266 = vmatpush1.msra.mxu0 %v255
    %1267 = vmatprep.subr.mxu0 0.0
    %1268 = vmatpush1.msra.mxu0 %v254
    %1269 = vmatprep.subr.mxu0 0.0
    %1270 = vmatpush1.msra.mxu0 %v253
    %1271 = vmatprep.subr.mxu0 0.0
    %1272 = vmatpush1.msra.mxu0 %v252
    %1273 = vmatprep.subr.mxu0 0.0
    %1274 = vmatpush2.msra.mxu0 0.0
    %1275 = vmatprep.subr.mxu0 0.0
    %1276 = vmatpush2.msra.mxu0 0.0
    %1277 = vmatprep.subr.mxu0 0.0
    %1278 = vmatpush2.msra.mxu0 0.0
    %1279 = vmatprep.subr.mxu0 0.0
    %1280 = vmatpush2.msra.mxu0 0.0
    %1281 = vmatprep.subr.mxu0 0.0
    %1282 = vmatpush2.msra.mxu0 0.0
    %1283 = vmatprep.subr.mxu0 0.0
    %1284 = vmatpush2.msra.mxu0 0.0
    %1285 = vmatprep.subr.mxu0 0.0
    %1286 = vmatpush2.msra.mxu0 0.0
    %1287 = vmatprep.subr.mxu0 0.0
    %1288 = vmatpush2.msra.mxu0 0.0
    %1289 = vmatprep.subr.mxu0 0.0
    %1290 = vmatpush2.msra.mxu0 0.0
    %1291 = vmatprep.subr.mxu0 0.0
    %1292 = vmatpush2.msra.mxu0 0.0
    %1293 = vmatprep.subr.mxu0 0.0
    %1294 = vmatpush2.msra.mxu0 0.0
    %1295 = vmatprep.subr.mxu0 0.0
    %1296 = vmatpush2.msra.mxu0 0.0
    %1297 = vmatprep.subr.mxu0 0.0
    %1298 = vmatpush2.msra.mxu0 0.0
    %1299 = vmatprep.subr.mxu0 0.0
    %1300 = vmatpush2.msra.mxu0 0.0
    %1301 = vmatprep.subr.mxu0 0.0
    %1302 = vmatpush2.msra.mxu0 0.0
    %1303 = vmatprep.subr.mxu0 0.0
    %1304 = vmatpush2.msra.mxu0 0.0
    %1305 = vmatprep.mubr.f32.mxu0 0.0
    %1306 = vmatmul.mubr.f32.gmra.mxu0 %v1066
    %v1307 = vpop.f32.mrf.mxu0
    %v1308 = vadd.f32 0.0, %v1307
    %v1309 = vpop.f32.mrf.mxu0
    %1310 = vdwg.mxu0
    %v1311 = vadd.f32 %v245, %v1308
    %v1312 = vxor.u32 %v1311, 2147483648
    %v1313 = vmul.f32 %v1312, 1.442695
    %v1314 = vpow.pop %v1313
    %v1315 = vadd.f32 %v1314, 1.0
    %v1316 = vrcp.pop %v1315
    %v1317 = vmul.f32 1.0, %v1316
    %v1318 = vmul.f32 %v1317, 2.0
    %v1319 = vsub.f32 %v1318, 1.0
    %v1321 = vrot.slane %v1055, 6
    %v1323 = vmul.f32 %v1317, %v1321
    %1325 = vrot.lane.b32.xlu0 %v1319, 64
    %v1326 = vpop.permute.xlu0 %1325
    %v1328 = vmul.f32 %v1317, %v1326
    %1330 = vrot.lane.b32.xlu0 %v1328, 32
    %v1331 = vpop.permute.xlu0 %1330
    %v1333 = vadd.f32 %v1323, %v1331
    %v1334 = vtanh.pop %v1333
    %1336 = vrot.lane.b32.xlu0 %v1334, 64
    %v1337 = vpop.permute.xlu0 %1336
    %v1339 = vmul.f32 %v1317, %v1337
    %1341 = vrot.lane.b32.xlu0 %v1339, 32
    %v1342 = vpop.permute.xlu0 %1341
    %v1343 = vsel %vm166, %v1342, 0
    %1345 = vmatprep.subr.mxu0 0.0
    %1346 = vmatpush1.msra.mxu0 0.0
    %1347 = vmatprep.subr.mxu0 0.0
    %1348 = vmatpush1.msra.mxu0 0.0
    %1349 = vmatprep.subr.mxu0 0.0
    %1350 = vmatpush1.msra.mxu0 0.0
    %1351 = vmatprep.subr.mxu0 0.0
    %1352 = vmatpush1.msra.mxu0 0.0
    %1353 = vmatprep.subr.mxu0 0.0
    %1354 = vmatpush1.msra.mxu0 0.0
    %1355 = vmatprep.subr.mxu0 0.0
    %1356 = vmatpush1.msra.mxu0 0.0
    %1357 = vmatprep.subr.mxu0 0.0
    %1358 = vmatpush1.msra.mxu0 0.0
    %1359 = vmatprep.subr.mxu0 0.0
    %1360 = vmatpush1.msra.mxu0 0.0
    %1361 = vmatprep.subr.mxu0 0.0
    %1362 = vmatpush1.msra.mxu0 0.0
    %1363 = vmatprep.subr.mxu0 0.0
    %1364 = vmatpush1.msra.mxu0 0.0
    %1365 = vmatprep.subr.mxu0 0.0
    %1366 = vmatpush1.msra.mxu0 0.0
    %1367 = vmatprep.subr.mxu0 0.0
    %1368 = vmatpush1.msra.mxu0 0.0
    %1369 = vmatprep.subr.mxu0 0.0
    %1370 = vmatpush1.msra.mxu0 %v251
    %1371 = vmatprep.subr.mxu0 0.0
    %1372 = vmatpush1.msra.mxu0 %v250
    %1373 = vmatprep.subr.mxu0 0.0
    %1374 = vmatpush1.msra.mxu0 %v249
    %1375 = vmatprep.subr.mxu0 0.0
    %1376 = vmatpush1.msra.mxu0 %v248
    %1377 = vmatprep.subr.mxu0 0.0
    %1378 = vmatpush2.msra.mxu0 0.0
    %1379 = vmatprep.subr.mxu0 0.0
    %1380 = vmatpush2.msra.mxu0 0.0
    %1381 = vmatprep.subr.mxu0 0.0
    %1382 = vmatpush2.msra.mxu0 0.0
    %1383 = vmatprep.subr.mxu0 0.0
    %1384 = vmatpush2.msra.mxu0 0.0
    %1385 = vmatprep.subr.mxu0 0.0
    %1386 = vmatpush2.msra.mxu0 0.0
    %1387 = vmatprep.subr.mxu0 0.0
    %1388 = vmatpush2.msra.mxu0 0.0
    %1389 = vmatprep.subr.mxu0 0.0
    %1390 = vmatpush2.msra.mxu0 0.0
    %1391 = vmatprep.subr.mxu0 0.0
    %1392 = vmatpush2.msra.mxu0 0.0
    %1393 = vmatprep.subr.mxu0 0.0
    %1394 = vmatpush2.msra.mxu0 0.0
    %1395 = vmatprep.subr.mxu0 0.0
    %1396 = vmatpush2.msra.mxu0 0.0
    %1397 = vmatprep.subr.mxu0 0.0
    %1398 = vmatpush2.msra.mxu0 0.0
    %1399 = vmatprep.subr.mxu0 0.0
    %1400 = vmatpush2.msra.mxu0 0.0
    %1401 = vmatprep.subr.mxu0 0.0
    %1402 = vmatpush2.msra.mxu0 0.0
    %1403 = vmatprep.subr.mxu0 0.0
    %1404 = vmatpush2.msra.mxu0 0.0
    %1405 = vmatprep.subr.mxu0 0.0
    %1406 = vmatpush2.msra.mxu0 0.0
    %1407 = vmatprep.subr.mxu0 0.0
    %1408 = vmatpush2.msra.mxu0 0.0
    %1409 = vmatprep.mubr.f32.mxu0 0.0
    %1410 = vmatmul.mubr.f32.gmra.mxu0 %v1343
    %v1411 = vpop.f32.mrf.mxu0
    %v1412 = vadd.f32 %v290, %v1411
    %v1413 = vpop.f32.mrf.mxu0
    %1414 = vdwg.mxu0
    %v1415 = vsel %vm166, %v1238, 0
    %1417 = vmatprep.subr.mxu0 0.0
    %1418 = vmatpush1.msra.mxu0 0.0
    %1419 = vmatprep.subr.mxu0 0.0
    %1420 = vmatpush1.msra.mxu0 0.0
    %1421 = vmatprep.subr.mxu0 0.0
    %1422 = vmatpush1.msra.mxu0 0.0
    %1423 = vmatprep.subr.mxu0 0.0
    %1424 = vmatpush1.msra.mxu0 0.0
    %1425 = vmatprep.subr.mxu0 0.0
    %1426 = vmatpush1.msra.mxu0 0.0
    %1427 = vmatprep.subr.mxu0 0.0
    %1428 = vmatpush1.msra.mxu0 0.0
    %1429 = vmatprep.subr.mxu0 0.0
    %1430 = vmatpush1.msra.mxu0 0.0
    %1431 = vmatprep.subr.mxu0 0.0
    %1432 = vmatpush1.msra.mxu0 0.0
    %1433 = vmatprep.subr.mxu0 0.0
    %1434 = vmatpush1.msra.mxu0 0.0
    %1435 = vmatprep.subr.mxu0 0.0
    %1436 = vmatpush1.msra.mxu0 0.0
    %1437 = vmatprep.subr.mxu0 0.0
    %1438 = vmatpush1.msra.mxu0 0.0
    %1439 = vmatprep.subr.mxu0 0.0
    %1440 = vmatpush1.msra.mxu0 0.0
    %1441 = vmatprep.subr.mxu0 0.0
    %1442 = vmatpush1.msra.mxu0 %v259
    %1443 = vmatprep.subr.mxu0 0.0
    %1444 = vmatpush1.msra.mxu0 %v258
    %1445 = vmatprep.subr.mxu0 0.0
    %1446 = vmatpush1.msra.mxu0 %v257
    %1447 = vmatprep.subr.mxu0 0.0
    %1448 = vmatpush1.msra.mxu0 %v256
    %1449 = vmatprep.subr.mxu0 0.0
    %1450 = vmatpush2.msra.mxu0 0.0
    %1451 = vmatprep.subr.mxu0 0.0
    %1452 = vmatpush2.msra.mxu0 0.0
    %1453 = vmatprep.subr.mxu0 0.0
    %1454 = vmatpush2.msra.mxu0 0.0
    %1455 = vmatprep.subr.mxu0 0.0
    %1456 = vmatpush2.msra.mxu0 0.0
    %1457 = vmatprep.subr.mxu0 0.0
    %1458 = vmatpush2.msra.mxu0 0.0
    %1459 = vmatprep.subr.mxu0 0.0
    %1460 = vmatpush2.msra.mxu0 0.0
    %1461 = vmatprep.subr.mxu0 0.0
    %1462 = vmatpush2.msra.mxu0 0.0
    %1463 = vmatprep.subr.mxu0 0.0
    %1464 = vmatpush2.msra.mxu0 0.0
    %1465 = vmatprep.subr.mxu0 0.0
    %1466 = vmatpush2.msra.mxu0 0.0
    %1467 = vmatprep.subr.mxu0 0.0
    %1468 = vmatpush2.msra.mxu0 0.0
    %1469 = vmatprep.subr.mxu0 0.0
    %1470 = vmatpush2.msra.mxu0 0.0
    %1471 = vmatprep.subr.mxu0 0.0
    %1472 = vmatpush2.msra.mxu0 0.0
    %1473 = vmatprep.subr.mxu0 0.0
    %1474 = vmatpush2.msra.mxu0 0.0
    %1475 = vmatprep.subr.mxu0 0.0
    %1476 = vmatpush2.msra.mxu0 0.0
    %1477 = vmatprep.subr.mxu0 0.0
    %1478 = vmatpush2.msra.mxu0 0.0
    %1479 = vmatprep.subr.mxu0 0.0
    %1480 = vmatpush2.msra.mxu0 0.0
    %1481 = vmatprep.mubr.f32.mxu0 0.0
    %1482 = vmatmul.mubr.f32.gmra.mxu0 %v1415
    %v1483 = vpop.f32.mrf.mxu0
    %v1484 = vadd.f32 0.0, %v1483
    %v1485 = vpop.f32.mrf.mxu0
    %1486 = vdwg.mxu0
    %v1487 = vadd.f32 %v1412, %v1484
    %v1488 = vxor.u32 %v1487, 2147483648
    %v1489 = vmul.f32 %v1488, 1.442695
    %v1490 = vpow.pop %v1489
    %v1491 = vadd.f32 %v1490, 1.0
    %v1492 = vrcp.pop %v1491
    %v1493 = vmul.f32 1.0, %v1492
    %v1494 = vmul.f32 %v1493, 2.0
    %v1495 = vsub.f32 %v1494, 1.0
    %v1496 = vmul.f32 %v1493, %v1229
    %1498 = vrot.lane.b32.xlu0 %v1495, 64
    %v1499 = vpop.permute.xlu0 %1498
    %v1501 = vmul.f32 %v1493, %v1499
    %1503 = vrot.lane.b32.xlu0 %v1501, 32
    %v1504 = vpop.permute.xlu0 %1503
    %v1506 = vadd.f32 %v1496, %v1504
    %v1507 = vtanh.pop %v1506
    %1509 = vrot.lane.b32.xlu0 %v1507, 64
    %v1510 = vpop.permute.xlu0 %1509
    %v1512 = vmul.f32 %v1493, %v1510
    %1514 = vrot.lane.b32.xlu0 %v1512, 32
    %v1515 = vpop.permute.xlu0 %1514
    %1517 = vst.msk [vmem:[#allocation2 + $0x8] sm:$0x3] %vm396, %v1515
    %1518 = vmatprep.subr.mxu0 0.0
    %1519 = vmatpush1.msra.mxu0 0.0
    %1520 = vmatprep.subr.mxu0 0.0
    %1521 = vmatpush1.msra.mxu0 0.0
    %1522 = vmatprep.subr.mxu0 0.0
    %1523 = vmatpush1.msra.mxu0 0.0
    %1524 = vmatprep.subr.mxu0 0.0
    %1525 = vmatpush1.msra.mxu0 0.0
    %1526 = vmatprep.subr.mxu0 0.0
    %1527 = vmatpush1.msra.mxu0 0.0
    %1528 = vmatprep.subr.mxu0 0.0
    %1529 = vmatpush1.msra.mxu0 0.0
    %1530 = vmatprep.subr.mxu0 0.0
    %1531 = vmatpush1.msra.mxu0 0.0
    %1532 = vmatprep.subr.mxu0 0.0
    %1533 = vmatpush1.msra.mxu0 0.0
    %1534 = vmatprep.subr.mxu0 0.0
    %1535 = vmatpush1.msra.mxu0 0.0
    %1536 = vmatprep.subr.mxu0 0.0
    %1537 = vmatpush1.msra.mxu0 0.0
    %1538 = vmatprep.subr.mxu0 0.0
    %1539 = vmatpush1.msra.mxu0 0.0
    %1540 = vmatprep.subr.mxu0 0.0
    %1541 = vmatpush1.msra.mxu0 0.0
    %1542 = vmatprep.subr.mxu0 0.0
    %1543 = vmatpush1.msra.mxu0 %v255
    %1544 = vmatprep.subr.mxu0 0.0
    %1545 = vmatpush1.msra.mxu0 %v254
    %1546 = vmatprep.subr.mxu0 0.0
    %1547 = vmatpush1.msra.mxu0 %v253
    %1548 = vmatprep.subr.mxu0 0.0
    %1549 = vmatpush1.msra.mxu0 %v252
    %1550 = vmatprep.subr.mxu0 0.0
    %1551 = vmatpush2.msra.mxu0 0.0
    %1552 = vmatprep.subr.mxu0 0.0
    %1553 = vmatpush2.msra.mxu0 0.0
    %1554 = vmatprep.subr.mxu0 0.0
    %1555 = vmatpush2.msra.mxu0 0.0
    %1556 = vmatprep.subr.mxu0 0.0
    %1557 = vmatpush2.msra.mxu0 0.0
    %1558 = vmatprep.subr.mxu0 0.0
    %1559 = vmatpush2.msra.mxu0 0.0
    %1560 = vmatprep.subr.mxu0 0.0
    %1561 = vmatpush2.msra.mxu0 0.0
    %1562 = vmatprep.subr.mxu0 0.0
    %1563 = vmatpush2.msra.mxu0 0.0
    %1564 = vmatprep.subr.mxu0 0.0
    %1565 = vmatpush2.msra.mxu0 0.0
    %1566 = vmatprep.subr.mxu0 0.0
    %1567 = vmatpush2.msra.mxu0 0.0
    %1568 = vmatprep.subr.mxu0 0.0
    %1569 = vmatpush2.msra.mxu0 0.0
    %1570 = vmatprep.subr.mxu0 0.0
    %1571 = vmatpush2.msra.mxu0 0.0
    %1572 = vmatprep.subr.mxu0 0.0
    %1573 = vmatpush2.msra.mxu0 0.0
    %1574 = vmatprep.subr.mxu0 0.0
    %1575 = vmatpush2.msra.mxu0 0.0
    %1576 = vmatprep.subr.mxu0 0.0
    %1577 = vmatpush2.msra.mxu0 0.0
    %1578 = vmatprep.subr.mxu0 0.0
    %1579 = vmatpush2.msra.mxu0 0.0
    %1580 = vmatprep.subr.mxu0 0.0
    %1581 = vmatpush2.msra.mxu0 0.0
    %1582 = vmatprep.mubr.f32.mxu0 0.0
    %1583 = vmatmul.mubr.f32.gmra.mxu0 %v1343
    %v1584 = vpop.f32.mrf.mxu0
    %v1585 = vadd.f32 0.0, %v1584
    %v1586 = vpop.f32.mrf.mxu0
    %1587 = vdwg.mxu0
    %v1589 = vrot.slane %v1585, 6
    %v1591 = vadd.f32 %v245, %v1589
    %v1592 = vxor.u32 %v1591, 2147483648
    %v1593 = vmul.f32 %v1592, 1.442695
    %v1594 = vpow.pop %v1593
    %v1595 = vadd.f32 %v1594, 1.0
    %v1596 = vrcp.pop %v1595
    %v1597 = vmul.f32 1.0, %v1596
    %v1598 = vmul.f32 %v1597, 2.0
    %v1599 = vsub.f32 %v1598, 1.0
    %v1601 = vrot.slane %v1333, 6
    %v1603 = vmul.f32 %v1597, %v1601
    %1605 = vrot.lane.b32.xlu0 %v1599, 64
    %v1606 = vpop.permute.xlu0 %1605
    %v1608 = vmul.f32 %v1597, %v1606
    %1610 = vrot.lane.b32.xlu0 %v1608, 32
    %v1611 = vpop.permute.xlu0 %1610
    %v1613 = vadd.f32 %v1603, %v1611
    %v1614 = vtanh.pop %v1613
    %1616 = vrot.lane.b32.xlu0 %v1614, 64
    %v1617 = vpop.permute.xlu0 %1616
    %v1619 = vmul.f32 %v1597, %v1617
    %v1621 = vrot.slane %v1619, 2
    %1622 = vrot.lane.b32.xlu0 %v1621, 32
    %v1623 = vpop.permute.xlu0 %1622
    %v1624 = vsel %vm166, %v1623, 0
    %1626 = vmatprep.subr.mxu0 0.0
    %1627 = vmatpush1.msra.mxu0 0.0
    %1628 = vmatprep.subr.mxu0 0.0
    %1629 = vmatpush1.msra.mxu0 0.0
    %1630 = vmatprep.subr.mxu0 0.0
    %1631 = vmatpush1.msra.mxu0 0.0
    %1632 = vmatprep.subr.mxu0 0.0
    %1633 = vmatpush1.msra.mxu0 0.0
    %1634 = vmatprep.subr.mxu0 0.0
    %1635 = vmatpush1.msra.mxu0 0.0
    %1636 = vmatprep.subr.mxu0 0.0
    %1637 = vmatpush1.msra.mxu0 0.0
    %1638 = vmatprep.subr.mxu0 0.0
    %1639 = vmatpush1.msra.mxu0 0.0
    %1640 = vmatprep.subr.mxu0 0.0
    %1641 = vmatpush1.msra.mxu0 0.0
    %1642 = vmatprep.subr.mxu0 0.0
    %1643 = vmatpush1.msra.mxu0 0.0
    %1644 = vmatprep.subr.mxu0 0.0
    %1645 = vmatpush1.msra.mxu0 0.0
    %1646 = vmatprep.subr.mxu0 0.0
    %1647 = vmatpush1.msra.mxu0 0.0
    %1648 = vmatprep.subr.mxu0 0.0
    %1649 = vmatpush1.msra.mxu0 0.0
    %1650 = vmatprep.subr.mxu0 0.0
    %1651 = vmatpush1.msra.mxu0 %v251
    %1652 = vmatprep.subr.mxu0 0.0
    %1653 = vmatpush1.msra.mxu0 %v250
    %1654 = vmatprep.subr.mxu0 0.0
    %1655 = vmatpush1.msra.mxu0 %v249
    %1656 = vmatprep.subr.mxu0 0.0
    %1657 = vmatpush1.msra.mxu0 %v248
    %1658 = vmatprep.subr.mxu0 0.0
    %1659 = vmatpush2.msra.mxu0 0.0
    %1660 = vmatprep.subr.mxu0 0.0
    %1661 = vmatpush2.msra.mxu0 0.0
    %1662 = vmatprep.subr.mxu0 0.0
    %1663 = vmatpush2.msra.mxu0 0.0
    %1664 = vmatprep.subr.mxu0 0.0
    %1665 = vmatpush2.msra.mxu0 0.0
    %1666 = vmatprep.subr.mxu0 0.0
    %1667 = vmatpush2.msra.mxu0 0.0
    %1668 = vmatprep.subr.mxu0 0.0
    %1669 = vmatpush2.msra.mxu0 0.0
    %1670 = vmatprep.subr.mxu0 0.0
    %1671 = vmatpush2.msra.mxu0 0.0
    %1672 = vmatprep.subr.mxu0 0.0
    %1673 = vmatpush2.msra.mxu0 0.0
    %1674 = vmatprep.subr.mxu0 0.0
    %1675 = vmatpush2.msra.mxu0 0.0
    %1676 = vmatprep.subr.mxu0 0.0
    %1677 = vmatpush2.msra.mxu0 0.0
    %1678 = vmatprep.subr.mxu0 0.0
    %1679 = vmatpush2.msra.mxu0 0.0
    %1680 = vmatprep.subr.mxu0 0.0
    %1681 = vmatpush2.msra.mxu0 0.0
    %1682 = vmatprep.subr.mxu0 0.0
    %1683 = vmatpush2.msra.mxu0 0.0
    %1684 = vmatprep.subr.mxu0 0.0
    %1685 = vmatpush2.msra.mxu0 0.0
    %1686 = vmatprep.subr.mxu0 0.0
    %1687 = vmatpush2.msra.mxu0 0.0
    %1688 = vmatprep.subr.mxu0 0.0
    %1689 = vmatpush2.msra.mxu0 0.0
    %1690 = vmatprep.mubr.f32.mxu0 0.0
    %1691 = vmatmul.mubr.f32.gmra.mxu0 %v1624
    %v1692 = vpop.f32.mrf.mxu0
    %v1693 = vadd.f32 %v290, %v1692
    %v1694 = vpop.f32.mrf.mxu0
    %1695 = vdwg.mxu0
    %v1696 = vsel %vm166, %v1515, 0
    %1698 = vmatprep.subr.mxu0 0.0
    %1699 = vmatpush1.msra.mxu0 0.0
    %1700 = vmatprep.subr.mxu0 0.0
    %1701 = vmatpush1.msra.mxu0 0.0
    %1702 = vmatprep.subr.mxu0 0.0
    %1703 = vmatpush1.msra.mxu0 0.0
    %1704 = vmatprep.subr.mxu0 0.0
    %1705 = vmatpush1.msra.mxu0 0.0
    %1706 = vmatprep.subr.mxu0 0.0
    %1707 = vmatpush1.msra.mxu0 0.0
    %1708 = vmatprep.subr.mxu0 0.0
    %1709 = vmatpush1.msra.mxu0 0.0
    %1710 = vmatprep.subr.mxu0 0.0
    %1711 = vmatpush1.msra.mxu0 0.0
    %1712 = vmatprep.subr.mxu0 0.0
    %1713 = vmatpush1.msra.mxu0 0.0
    %1714 = vmatprep.subr.mxu0 0.0
    %1715 = vmatpush1.msra.mxu0 0.0
    %1716 = vmatprep.subr.mxu0 0.0
    %1717 = vmatpush1.msra.mxu0 0.0
    %1718 = vmatprep.subr.mxu0 0.0
    %1719 = vmatpush1.msra.mxu0 0.0
    %1720 = vmatprep.subr.mxu0 0.0
    %1721 = vmatpush1.msra.mxu0 0.0
    %1722 = vmatprep.subr.mxu0 0.0
    %1723 = vmatpush1.msra.mxu0 %v259
    %1724 = vmatprep.subr.mxu0 0.0
    %1725 = vmatpush1.msra.mxu0 %v258
    %1726 = vmatprep.subr.mxu0 0.0
    %1727 = vmatpush1.msra.mxu0 %v257
    %1728 = vmatprep.subr.mxu0 0.0
    %1729 = vmatpush1.msra.mxu0 %v256
    %1730 = vmatprep.subr.mxu0 0.0
    %1731 = vmatpush2.msra.mxu0 0.0
    %1732 = vmatprep.subr.mxu0 0.0
    %1733 = vmatpush2.msra.mxu0 0.0
    %1734 = vmatprep.subr.mxu0 0.0
    %1735 = vmatpush2.msra.mxu0 0.0
    %1736 = vmatprep.subr.mxu0 0.0
    %1737 = vmatpush2.msra.mxu0 0.0
    %1738 = vmatprep.subr.mxu0 0.0
    %1739 = vmatpush2.msra.mxu0 0.0
    %1740 = vmatprep.subr.mxu0 0.0
    %1741 = vmatpush2.msra.mxu0 0.0
    %1742 = vmatprep.subr.mxu0 0.0
    %1743 = vmatpush2.msra.mxu0 0.0
    %1744 = vmatprep.subr.mxu0 0.0
    %1745 = vmatpush2.msra.mxu0 0.0
    %1746 = vmatprep.subr.mxu0 0.0
    %1747 = vmatpush2.msra.mxu0 0.0
    %1748 = vmatprep.subr.mxu0 0.0
    %1749 = vmatpush2.msra.mxu0 0.0
    %1750 = vmatprep.subr.mxu0 0.0
    %1751 = vmatpush2.msra.mxu0 0.0
    %1752 = vmatprep.subr.mxu0 0.0
    %1753 = vmatpush2.msra.mxu0 0.0
    %1754 = vmatprep.subr.mxu0 0.0
    %1755 = vmatpush2.msra.mxu0 0.0
    %1756 = vmatprep.subr.mxu0 0.0
    %1757 = vmatpush2.msra.mxu0 0.0
    %1758 = vmatprep.subr.mxu0 0.0
    %1759 = vmatpush2.msra.mxu0 0.0
    %1760 = vmatprep.subr.mxu0 0.0
    %1761 = vmatpush2.msra.mxu0 0.0
    %1762 = vmatprep.mubr.f32.mxu0 0.0
    %1763 = vmatmul.mubr.f32.gmra.mxu0 %v1696
    %v1764 = vpop.f32.mrf.mxu0
    %v1765 = vadd.f32 0.0, %v1764
    %v1766 = vpop.f32.mrf.mxu0
    %1767 = vdwg.mxu0
    %v1768 = vadd.f32 %v1693, %v1765
    %v1769 = vxor.u32 %v1768, 2147483648
    %v1770 = vmul.f32 %v1769, 1.442695
    %v1771 = vpow.pop %v1770
    %v1772 = vadd.f32 %v1771, 1.0
    %v1773 = vrcp.pop %v1772
    %v1774 = vmul.f32 1.0, %v1773
    %v1775 = vmul.f32 %v1774, 2.0
    %v1776 = vsub.f32 %v1775, 1.0
    %v1777 = vmul.f32 %v1774, %v1506
    %1779 = vrot.lane.b32.xlu0 %v1776, 64
    %v1780 = vpop.permute.xlu0 %1779
    %v1782 = vmul.f32 %v1774, %v1780
    %1784 = vrot.lane.b32.xlu0 %v1782, 32
    %v1785 = vpop.permute.xlu0 %1784
    %v1787 = vadd.f32 %v1777, %v1785
    %v1788 = vtanh.pop %v1787
    %1790 = vrot.lane.b32.xlu0 %v1788, 64
    %v1791 = vpop.permute.xlu0 %1790
    %v1793 = vmul.f32 %v1774, %v1791
    %1795 = vrot.lane.b32.xlu0 %v1793, 32
    %v1796 = vpop.permute.xlu0 %1795
    %1798 = vst.msk [vmem:[#allocation2 + $0xa] sm:$0x3] %vm396, %v1796
    %1799 = vmatprep.subr.mxu0 0.0
    %1800 = vmatpush1.msra.mxu0 0.0
    %1801 = vmatprep.subr.mxu0 0.0
    %1802 = vmatpush1.msra.mxu0 0.0
    %1803 = vmatprep.subr.mxu0 0.0
    %1804 = vmatpush1.msra.mxu0 0.0
    %1805 = vmatprep.subr.mxu0 0.0
    %1806 = vmatpush1.msra.mxu0 0.0
    %1807 = vmatprep.subr.mxu0 0.0
    %1808 = vmatpush1.msra.mxu0 0.0
    %1809 = vmatprep.subr.mxu0 0.0
    %1810 = vmatpush1.msra.mxu0 0.0
    %1811 = vmatprep.subr.mxu0 0.0
    %1812 = vmatpush1.msra.mxu0 0.0
    %1813 = vmatprep.subr.mxu0 0.0
    %1814 = vmatpush1.msra.mxu0 0.0
    %1815 = vmatprep.subr.mxu0 0.0
    %1816 = vmatpush1.msra.mxu0 0.0
    %1817 = vmatprep.subr.mxu0 0.0
    %1818 = vmatpush1.msra.mxu0 0.0
    %1819 = vmatprep.subr.mxu0 0.0
    %1820 = vmatpush1.msra.mxu0 0.0
    %1821 = vmatprep.subr.mxu0 0.0
    %1822 = vmatpush1.msra.mxu0 0.0
    %1823 = vmatprep.subr.mxu0 0.0
    %1824 = vmatpush1.msra.mxu0 %v255
    %1825 = vmatprep.subr.mxu0 0.0
    %1826 = vmatpush1.msra.mxu0 %v254
    %1827 = vmatprep.subr.mxu0 0.0
    %1828 = vmatpush1.msra.mxu0 %v253
    %1829 = vmatprep.subr.mxu0 0.0
    %1830 = vmatpush1.msra.mxu0 %v252
    %1831 = vmatprep.subr.mxu0 0.0
    %1832 = vmatpush2.msra.mxu0 0.0
    %1833 = vmatprep.subr.mxu0 0.0
    %1834 = vmatpush2.msra.mxu0 0.0
    %1835 = vmatprep.subr.mxu0 0.0
    %1836 = vmatpush2.msra.mxu0 0.0
    %1837 = vmatprep.subr.mxu0 0.0
    %1838 = vmatpush2.msra.mxu0 0.0
    %1839 = vmatprep.subr.mxu0 0.0
    %1840 = vmatpush2.msra.mxu0 0.0
    %1841 = vmatprep.subr.mxu0 0.0
    %1842 = vmatpush2.msra.mxu0 0.0
    %1843 = vmatprep.subr.mxu0 0.0
    %1844 = vmatpush2.msra.mxu0 0.0
    %1845 = vmatprep.subr.mxu0 0.0
    %1846 = vmatpush2.msra.mxu0 0.0
    %1847 = vmatprep.subr.mxu0 0.0
    %1848 = vmatpush2.msra.mxu0 0.0
    %1849 = vmatprep.subr.mxu0 0.0
    %1850 = vmatpush2.msra.mxu0 0.0
    %1851 = vmatprep.subr.mxu0 0.0
    %1852 = vmatpush2.msra.mxu0 0.0
    %1853 = vmatprep.subr.mxu0 0.0
    %1854 = vmatpush2.msra.mxu0 0.0
    %1855 = vmatprep.subr.mxu0 0.0
    %1856 = vmatpush2.msra.mxu0 0.0
    %1857 = vmatprep.subr.mxu0 0.0
    %1858 = vmatpush2.msra.mxu0 0.0
    %1859 = vmatprep.subr.mxu0 0.0
    %1860 = vmatpush2.msra.mxu0 0.0
    %1861 = vmatprep.subr.mxu0 0.0
    %1862 = vmatpush2.msra.mxu0 0.0
    %1863 = vmatprep.mubr.f32.mxu0 0.0
    %1864 = vmatmul.mubr.f32.gmra.mxu0 %v1624
    %v1865 = vpop.f32.mrf.mxu0
    %v1866 = vadd.f32 0.0, %v1865
    %v1867 = vpop.f32.mrf.mxu0
    %1868 = vdwg.mxu0
    %v1870 = vrot.slane %v1866, 4
    %v1872 = vadd.f32 %v245, %v1870
    %v1873 = vxor.u32 %v1872, 2147483648
    %v1874 = vmul.f32 %v1873, 1.442695
    %v1875 = vpow.pop %v1874
    %v1876 = vadd.f32 %v1875, 1.0
    %v1877 = vrcp.pop %v1876
    %v1878 = vmul.f32 1.0, %v1877
    %v1879 = vmul.f32 %v1878, 2.0
    %v1880 = vsub.f32 %v1879, 1.0
    %v1882 = vrot.slane %v1613, 6
    %v1884 = vmul.f32 %v1878, %v1882
    %1886 = vrot.lane.b32.xlu0 %v1880, 64
    %v1887 = vpop.permute.xlu0 %1886
    %v1889 = vmul.f32 %v1878, %v1887
    %1891 = vrot.lane.b32.xlu0 %v1889, 32
    %v1892 = vpop.permute.xlu0 %1891
    %v1894 = vadd.f32 %v1884, %v1892
    %v1895 = vtanh.pop %v1894
    %1897 = vrot.lane.b32.xlu0 %v1895, 64
    %v1898 = vpop.permute.xlu0 %1897
    %v1900 = vmul.f32 %v1878, %v1898
    %v1902 = vrot.slane %v1900, 4
    %1903 = vrot.lane.b32.xlu0 %v1902, 32
    %v1904 = vpop.permute.xlu0 %1903
    %v1905 = vsel %vm166, %v1904, 0
    %1907 = vmatprep.subr.mxu0 0.0
    %1908 = vmatpush1.msra.mxu0 0.0
    %1909 = vmatprep.subr.mxu0 0.0
    %1910 = vmatpush1.msra.mxu0 0.0
    %1911 = vmatprep.subr.mxu0 0.0
    %1912 = vmatpush1.msra.mxu0 0.0
    %1913 = vmatprep.subr.mxu0 0.0
    %1914 = vmatpush1.msra.mxu0 0.0
    %1915 = vmatprep.subr.mxu0 0.0
    %1916 = vmatpush1.msra.mxu0 0.0
    %1917 = vmatprep.subr.mxu0 0.0
    %1918 = vmatpush1.msra.mxu0 0.0
    %1919 = vmatprep.subr.mxu0 0.0
    %1920 = vmatpush1.msra.mxu0 0.0
    %1921 = vmatprep.subr.mxu0 0.0
    %1922 = vmatpush1.msra.mxu0 0.0
    %1923 = vmatprep.subr.mxu0 0.0
    %1924 = vmatpush1.msra.mxu0 0.0
    %1925 = vmatprep.subr.mxu0 0.0
    %1926 = vmatpush1.msra.mxu0 0.0
    %1927 = vmatprep.subr.mxu0 0.0
    %1928 = vmatpush1.msra.mxu0 0.0
    %1929 = vmatprep.subr.mxu0 0.0
    %1930 = vmatpush1.msra.mxu0 0.0
    %1931 = vmatprep.subr.mxu0 0.0
    %1932 = vmatpush1.msra.mxu0 %v251
    %1933 = vmatprep.subr.mxu0 0.0
    %1934 = vmatpush1.msra.mxu0 %v250
    %1935 = vmatprep.subr.mxu0 0.0
    %1936 = vmatpush1.msra.mxu0 %v249
    %1937 = vmatprep.subr.mxu0 0.0
    %1938 = vmatpush1.msra.mxu0 %v248
    %1939 = vmatprep.subr.mxu0 0.0
    %1940 = vmatpush2.msra.mxu0 0.0
    %1941 = vmatprep.subr.mxu0 0.0
    %1942 = vmatpush2.msra.mxu0 0.0
    %1943 = vmatprep.subr.mxu0 0.0
    %1944 = vmatpush2.msra.mxu0 0.0
    %1945 = vmatprep.subr.mxu0 0.0
    %1946 = vmatpush2.msra.mxu0 0.0
    %1947 = vmatprep.subr.mxu0 0.0
    %1948 = vmatpush2.msra.mxu0 0.0
    %1949 = vmatprep.subr.mxu0 0.0
    %1950 = vmatpush2.msra.mxu0 0.0
    %1951 = vmatprep.subr.mxu0 0.0
    %1952 = vmatpush2.msra.mxu0 0.0
    %1953 = vmatprep.subr.mxu0 0.0
    %1954 = vmatpush2.msra.mxu0 0.0
    %1955 = vmatprep.subr.mxu0 0.0
    %1956 = vmatpush2.msra.mxu0 0.0
    %1957 = vmatprep.subr.mxu0 0.0
    %1958 = vmatpush2.msra.mxu0 0.0
    %1959 = vmatprep.subr.mxu0 0.0
    %1960 = vmatpush2.msra.mxu0 0.0
    %1961 = vmatprep.subr.mxu0 0.0
    %1962 = vmatpush2.msra.mxu0 0.0
    %1963 = vmatprep.subr.mxu0 0.0
    %1964 = vmatpush2.msra.mxu0 0.0
    %1965 = vmatprep.subr.mxu0 0.0
    %1966 = vmatpush2.msra.mxu0 0.0
    %1967 = vmatprep.subr.mxu0 0.0
    %1968 = vmatpush2.msra.mxu0 0.0
    %1969 = vmatprep.subr.mxu0 0.0
    %1970 = vmatpush2.msra.mxu0 0.0
    %1971 = vmatprep.mubr.f32.mxu0 0.0
    %1972 = vmatmul.mubr.f32.gmra.mxu0 %v1905
    %v1973 = vpop.f32.mrf.mxu0
    %v1974 = vadd.f32 %v290, %v1973
    %v1975 = vpop.f32.mrf.mxu0
    %1976 = vdwg.mxu0
    %v1977 = vsel %vm166, %v1796, 0
    %1979 = vmatprep.subr.mxu0 0.0
    %1980 = vmatpush1.msra.mxu0 0.0
    %1981 = vmatprep.subr.mxu0 0.0
    %1982 = vmatpush1.msra.mxu0 0.0
    %1983 = vmatprep.subr.mxu0 0.0
    %1984 = vmatpush1.msra.mxu0 0.0
    %1985 = vmatprep.subr.mxu0 0.0
    %1986 = vmatpush1.msra.mxu0 0.0
    %1987 = vmatprep.subr.mxu0 0.0
    %1988 = vmatpush1.msra.mxu0 0.0
    %1989 = vmatprep.subr.mxu0 0.0
    %1990 = vmatpush1.msra.mxu0 0.0
    %1991 = vmatprep.subr.mxu0 0.0
    %1992 = vmatpush1.msra.mxu0 0.0
    %1993 = vmatprep.subr.mxu0 0.0
    %1994 = vmatpush1.msra.mxu0 0.0
    %1995 = vmatprep.subr.mxu0 0.0
    %1996 = vmatpush1.msra.mxu0 0.0
    %1997 = vmatprep.subr.mxu0 0.0
    %1998 = vmatpush1.msra.mxu0 0.0
    %1999 = vmatprep.subr.mxu0 0.0
    %2000 = vmatpush1.msra.mxu0 0.0
    %2001 = vmatprep.subr.mxu0 0.0
    %2002 = vmatpush1.msra.mxu0 0.0
    %2003 = vmatprep.subr.mxu0 0.0
    %2004 = vmatpush1.msra.mxu0 %v259
    %2005 = vmatprep.subr.mxu0 0.0
    %2006 = vmatpush1.msra.mxu0 %v258
    %2007 = vmatprep.subr.mxu0 0.0
    %2008 = vmatpush1.msra.mxu0 %v257
    %2009 = vmatprep.subr.mxu0 0.0
    %2010 = vmatpush1.msra.mxu0 %v256
    %2011 = vmatprep.subr.mxu0 0.0
    %2012 = vmatpush2.msra.mxu0 0.0
    %2013 = vmatprep.subr.mxu0 0.0
    %2014 = vmatpush2.msra.mxu0 0.0
    %2015 = vmatprep.subr.mxu0 0.0
    %2016 = vmatpush2.msra.mxu0 0.0
    %2017 = vmatprep.subr.mxu0 0.0
    %2018 = vmatpush2.msra.mxu0 0.0
    %2019 = vmatprep.subr.mxu0 0.0
    %2020 = vmatpush2.msra.mxu0 0.0
    %2021 = vmatprep.subr.mxu0 0.0
    %2022 = vmatpush2.msra.mxu0 0.0
    %2023 = vmatprep.subr.mxu0 0.0
    %2024 = vmatpush2.msra.mxu0 0.0
    %2025 = vmatprep.subr.mxu0 0.0
    %2026 = vmatpush2.msra.mxu0 0.0
    %2027 = vmatprep.subr.mxu0 0.0
    %2028 = vmatpush2.msra.mxu0 0.0
    %2029 = vmatprep.subr.mxu0 0.0
    %2030 = vmatpush2.msra.mxu0 0.0
    %2031 = vmatprep.subr.mxu0 0.0
    %2032 = vmatpush2.msra.mxu0 0.0
    %2033 = vmatprep.subr.mxu0 0.0
    %2034 = vmatpush2.msra.mxu0 0.0
    %2035 = vmatprep.subr.mxu0 0.0
    %2036 = vmatpush2.msra.mxu0 0.0
    %2037 = vmatprep.subr.mxu0 0.0
    %2038 = vmatpush2.msra.mxu0 0.0
    %2039 = vmatprep.subr.mxu0 0.0
    %2040 = vmatpush2.msra.mxu0 0.0
    %2041 = vmatprep.subr.mxu0 0.0
    %2042 = vmatpush2.msra.mxu0 0.0
    %2043 = vmatprep.mubr.f32.mxu0 0.0
    %2044 = vmatmul.mubr.f32.gmra.mxu0 %v1977
    %v2045 = vpop.f32.mrf.mxu0
    %v2046 = vadd.f32 0.0, %v2045
    %v2047 = vpop.f32.mrf.mxu0
    %2048 = vdwg.mxu0
    %v2049 = vadd.f32 %v1974, %v2046
    %v2050 = vxor.u32 %v2049, 2147483648
    %v2051 = vmul.f32 %v2050, 1.442695
    %v2052 = vpow.pop %v2051
    %v2053 = vadd.f32 %v2052, 1.0
    %v2054 = vrcp.pop %v2053
    %v2055 = vmul.f32 1.0, %v2054
    %v2056 = vmul.f32 %v2055, 2.0
    %v2057 = vsub.f32 %v2056, 1.0
    %v2058 = vmul.f32 %v2055, %v1787
    %2060 = vrot.lane.b32.xlu0 %v2057, 64
    %v2061 = vpop.permute.xlu0 %2060
    %v2063 = vmul.f32 %v2055, %v2061
    %2065 = vrot.lane.b32.xlu0 %v2063, 32
    %v2066 = vpop.permute.xlu0 %2065
    %v2068 = vadd.f32 %v2058, %v2066
    %v2069 = vtanh.pop %v2068
    %2071 = vrot.lane.b32.xlu0 %v2069, 64
    %v2072 = vpop.permute.xlu0 %2071
    %v2074 = vmul.f32 %v2055, %v2072
    %2076 = vrot.lane.b32.xlu0 %v2074, 32
    %v2077 = vpop.permute.xlu0 %2076
    %2079 = vst.msk [vmem:[#allocation2 + $0xc] sm:$0x3] %vm396, %v2077
    %2080 = vmatprep.subr.mxu0 0.0
    %2081 = vmatpush1.msra.mxu0 0.0
    %2082 = vmatprep.subr.mxu0 0.0
    %2083 = vmatpush1.msra.mxu0 0.0
    %2084 = vmatprep.subr.mxu0 0.0
    %2085 = vmatpush1.msra.mxu0 0.0
    %2086 = vmatprep.subr.mxu0 0.0
    %2087 = vmatpush1.msra.mxu0 0.0
    %2088 = vmatprep.subr.mxu0 0.0
    %2089 = vmatpush1.msra.mxu0 0.0
    %2090 = vmatprep.subr.mxu0 0.0
    %2091 = vmatpush1.msra.mxu0 0.0
    %2092 = vmatprep.subr.mxu0 0.0
    %2093 = vmatpush1.msra.mxu0 0.0
    %2094 = vmatprep.subr.mxu0 0.0
    %2095 = vmatpush1.msra.mxu0 0.0
    %2096 = vmatprep.subr.mxu0 0.0
    %2097 = vmatpush1.msra.mxu0 0.0
    %2098 = vmatprep.subr.mxu0 0.0
    %2099 = vmatpush1.msra.mxu0 0.0
    %2100 = vmatprep.subr.mxu0 0.0
    %2101 = vmatpush1.msra.mxu0 0.0
    %2102 = vmatprep.subr.mxu0 0.0
    %2103 = vmatpush1.msra.mxu0 0.0
    %2104 = vmatprep.subr.mxu0 0.0
    %2105 = vmatpush1.msra.mxu0 %v255
    %2106 = vmatprep.subr.mxu0 0.0
    %2107 = vmatpush1.msra.mxu0 %v254
    %2108 = vmatprep.subr.mxu0 0.0
    %2109 = vmatpush1.msra.mxu0 %v253
    %2110 = vmatprep.subr.mxu0 0.0
    %2111 = vmatpush1.msra.mxu0 %v252
    %2112 = vmatprep.subr.mxu0 0.0
    %2113 = vmatpush2.msra.mxu0 0.0
    %2114 = vmatprep.subr.mxu0 0.0
    %2115 = vmatpush2.msra.mxu0 0.0
    %2116 = vmatprep.subr.mxu0 0.0
    %2117 = vmatpush2.msra.mxu0 0.0
    %2118 = vmatprep.subr.mxu0 0.0
    %2119 = vmatpush2.msra.mxu0 0.0
    %2120 = vmatprep.subr.mxu0 0.0
    %2121 = vmatpush2.msra.mxu0 0.0
    %2122 = vmatprep.subr.mxu0 0.0
    %2123 = vmatpush2.msra.mxu0 0.0
    %2124 = vmatprep.subr.mxu0 0.0
    %2125 = vmatpush2.msra.mxu0 0.0
    %2126 = vmatprep.subr.mxu0 0.0
    %2127 = vmatpush2.msra.mxu0 0.0
    %2128 = vmatprep.subr.mxu0 0.0
    %2129 = vmatpush2.msra.mxu0 0.0
    %2130 = vmatprep.subr.mxu0 0.0
    %2131 = vmatpush2.msra.mxu0 0.0
    %2132 = vmatprep.subr.mxu0 0.0
    %2133 = vmatpush2.msra.mxu0 0.0
    %2134 = vmatprep.subr.mxu0 0.0
    %2135 = vmatpush2.msra.mxu0 0.0
    %2136 = vmatprep.subr.mxu0 0.0
    %2137 = vmatpush2.msra.mxu0 0.0
    %2138 = vmatprep.subr.mxu0 0.0
    %2139 = vmatpush2.msra.mxu0 0.0
    %2140 = vmatprep.subr.mxu0 0.0
    %2141 = vmatpush2.msra.mxu0 0.0
    %2142 = vmatprep.subr.mxu0 0.0
    %2143 = vmatpush2.msra.mxu0 0.0
    %2144 = vmatprep.mubr.f32.mxu0 0.0
    %2145 = vmatmul.mubr.f32.gmra.mxu0 %v1905
    %v2146 = vpop.f32.mrf.mxu0
    %v2147 = vadd.f32 0.0, %v2146
    %v2148 = vpop.f32.mrf.mxu0
    %2149 = vdwg.mxu0
    %v2151 = vrot.slane %v2147, 2
    %v2153 = vadd.f32 %v245, %v2151
    %v2154 = vxor.u32 %v2153, 2147483648
    %v2155 = vmul.f32 %v2154, 1.442695
    %v2156 = vpow.pop %v2155
    %v2157 = vadd.f32 %v2156, 1.0
    %v2158 = vrcp.pop %v2157
    %v2159 = vmul.f32 1.0, %v2158
    %v2160 = vmul.f32 %v2159, 2.0
    %v2161 = vsub.f32 %v2160, 1.0
    %v2163 = vrot.slane %v1894, 6
    %v2165 = vmul.f32 %v2159, %v2163
    %2167 = vrot.lane.b32.xlu0 %v2161, 64
    %v2168 = vpop.permute.xlu0 %2167
    %v2170 = vmul.f32 %v2159, %v2168
    %2172 = vrot.lane.b32.xlu0 %v2170, 32
    %v2173 = vpop.permute.xlu0 %2172
    %v2175 = vadd.f32 %v2165, %v2173
    %v2176 = vtanh.pop %v2175
    %2178 = vrot.lane.b32.xlu0 %v2176, 64
    %v2179 = vpop.permute.xlu0 %2178
    %v2181 = vmul.f32 %v2159, %v2179
    %v2183 = vrot.slane %v2181, 6
    %2184 = vrot.lane.b32.xlu0 %v2183, 32
    %v2185 = vpop.permute.xlu0 %2184
    %v2186 = vsel %vm166, %v2185, 0
    %2188 = vmatprep.subr.mxu0 0.0
    %2189 = vmatpush1.msra.mxu0 0.0
    %2190 = vmatprep.subr.mxu0 0.0
    %2191 = vmatpush1.msra.mxu0 0.0
    %2192 = vmatprep.subr.mxu0 0.0
    %2193 = vmatpush1.msra.mxu0 0.0
    %2194 = vmatprep.subr.mxu0 0.0
    %2195 = vmatpush1.msra.mxu0 0.0
    %2196 = vmatprep.subr.mxu0 0.0
    %2197 = vmatpush1.msra.mxu0 0.0
    %2198 = vmatprep.subr.mxu0 0.0
    %2199 = vmatpush1.msra.mxu0 0.0
    %2200 = vmatprep.subr.mxu0 0.0
    %2201 = vmatpush1.msra.mxu0 0.0
    %2202 = vmatprep.subr.mxu0 0.0
    %2203 = vmatpush1.msra.mxu0 0.0
    %2204 = vmatprep.subr.mxu0 0.0
    %2205 = vmatpush1.msra.mxu0 0.0
    %2206 = vmatprep.subr.mxu0 0.0
    %2207 = vmatpush1.msra.mxu0 0.0
    %2208 = vmatprep.subr.mxu0 0.0
    %2209 = vmatpush1.msra.mxu0 0.0
    %2210 = vmatprep.subr.mxu0 0.0
    %2211 = vmatpush1.msra.mxu0 0.0
    %2212 = vmatprep.subr.mxu0 0.0
    %2213 = vmatpush1.msra.mxu0 %v251
    %2214 = vmatprep.subr.mxu0 0.0
    %2215 = vmatpush1.msra.mxu0 %v250
    %2216 = vmatprep.subr.mxu0 0.0
    %2217 = vmatpush1.msra.mxu0 %v249
    %2218 = vmatprep.subr.mxu0 0.0
    %2219 = vmatpush1.msra.mxu0 %v248
    %2220 = vmatprep.subr.mxu0 0.0
    %2221 = vmatpush2.msra.mxu0 0.0
    %2222 = vmatprep.subr.mxu0 0.0
    %2223 = vmatpush2.msra.mxu0 0.0
    %2224 = vmatprep.subr.mxu0 0.0
    %2225 = vmatpush2.msra.mxu0 0.0
    %2226 = vmatprep.subr.mxu0 0.0
    %2227 = vmatpush2.msra.mxu0 0.0
    %2228 = vmatprep.subr.mxu0 0.0
    %2229 = vmatpush2.msra.mxu0 0.0
    %2230 = vmatprep.subr.mxu0 0.0
    %2231 = vmatpush2.msra.mxu0 0.0
    %2232 = vmatprep.subr.mxu0 0.0
    %2233 = vmatpush2.msra.mxu0 0.0
    %2234 = vmatprep.subr.mxu0 0.0
    %2235 = vmatpush2.msra.mxu0 0.0
    %2236 = vmatprep.subr.mxu0 0.0
    %2237 = vmatpush2.msra.mxu0 0.0
    %2238 = vmatprep.subr.mxu0 0.0
    %2239 = vmatpush2.msra.mxu0 0.0
    %2240 = vmatprep.subr.mxu0 0.0
    %2241 = vmatpush2.msra.mxu0 0.0
    %2242 = vmatprep.subr.mxu0 0.0
    %2243 = vmatpush2.msra.mxu0 0.0
    %2244 = vmatprep.subr.mxu0 0.0
    %2245 = vmatpush2.msra.mxu0 0.0
    %2246 = vmatprep.subr.mxu0 0.0
    %2247 = vmatpush2.msra.mxu0 0.0
    %2248 = vmatprep.subr.mxu0 0.0
    %2249 = vmatpush2.msra.mxu0 0.0
    %2250 = vmatprep.subr.mxu0 0.0
    %2251 = vmatpush2.msra.mxu0 0.0
    %2252 = vmatprep.mubr.f32.mxu0 0.0
    %2253 = vmatmul.mubr.f32.gmra.mxu0 %v2186
    %v2254 = vpop.f32.mrf.mxu0
    %v2255 = vadd.f32 %v290, %v2254
    %v2256 = vpop.f32.mrf.mxu0
    %2257 = vdwg.mxu0
    %v2258 = vsel %vm166, %v2077, 0
    %2260 = vmatprep.subr.mxu0 0.0
    %2261 = vmatpush1.msra.mxu0 0.0
    %2262 = vmatprep.subr.mxu0 0.0
    %2263 = vmatpush1.msra.mxu0 0.0
    %2264 = vmatprep.subr.mxu0 0.0
    %2265 = vmatpush1.msra.mxu0 0.0
    %2266 = vmatprep.subr.mxu0 0.0
    %2267 = vmatpush1.msra.mxu0 0.0
    %2268 = vmatprep.subr.mxu0 0.0
    %2269 = vmatpush1.msra.mxu0 0.0
    %2270 = vmatprep.subr.mxu0 0.0
    %2271 = vmatpush1.msra.mxu0 0.0
    %2272 = vmatprep.subr.mxu0 0.0
    %2273 = vmatpush1.msra.mxu0 0.0
    %2274 = vmatprep.subr.mxu0 0.0
    %2275 = vmatpush1.msra.mxu0 0.0
    %2276 = vmatprep.subr.mxu0 0.0
    %2277 = vmatpush1.msra.mxu0 0.0
    %2278 = vmatprep.subr.mxu0 0.0
    %2279 = vmatpush1.msra.mxu0 0.0
    %2280 = vmatprep.subr.mxu0 0.0
    %2281 = vmatpush1.msra.mxu0 0.0
    %2282 = vmatprep.subr.mxu0 0.0
    %2283 = vmatpush1.msra.mxu0 0.0
    %2284 = vmatprep.subr.mxu0 0.0
    %2285 = vmatpush1.msra.mxu0 %v259
    %2286 = vmatprep.subr.mxu0 0.0
    %2287 = vmatpush1.msra.mxu0 %v258
    %2288 = vmatprep.subr.mxu0 0.0
    %2289 = vmatpush1.msra.mxu0 %v257
    %2290 = vmatprep.subr.mxu0 0.0
    %2291 = vmatpush1.msra.mxu0 %v256
    %2292 = vmatprep.subr.mxu0 0.0
    %2293 = vmatpush2.msra.mxu0 0.0
    %2294 = vmatprep.subr.mxu0 0.0
    %2295 = vmatpush2.msra.mxu0 0.0
    %2296 = vmatprep.subr.mxu0 0.0
    %2297 = vmatpush2.msra.mxu0 0.0
    %2298 = vmatprep.subr.mxu0 0.0
    %2299 = vmatpush2.msra.mxu0 0.0
    %2300 = vmatprep.subr.mxu0 0.0
    %2301 = vmatpush2.msra.mxu0 0.0
    %2302 = vmatprep.subr.mxu0 0.0
    %2303 = vmatpush2.msra.mxu0 0.0
    %2304 = vmatprep.subr.mxu0 0.0
    %2305 = vmatpush2.msra.mxu0 0.0
    %2306 = vmatprep.subr.mxu0 0.0
    %2307 = vmatpush2.msra.mxu0 0.0
    %2308 = vmatprep.subr.mxu0 0.0
    %2309 = vmatpush2.msra.mxu0 0.0
    %2310 = vmatprep.subr.mxu0 0.0
    %2311 = vmatpush2.msra.mxu0 0.0
    %2312 = vmatprep.subr.mxu0 0.0
    %2313 = vmatpush2.msra.mxu0 0.0
    %2314 = vmatprep.subr.mxu0 0.0
    %2315 = vmatpush2.msra.mxu0 0.0
    %2316 = vmatprep.subr.mxu0 0.0
    %2317 = vmatpush2.msra.mxu0 0.0
    %2318 = vmatprep.subr.mxu0 0.0
    %2319 = vmatpush2.msra.mxu0 0.0
    %2320 = vmatprep.subr.mxu0 0.0
    %2321 = vmatpush2.msra.mxu0 0.0
    %2322 = vmatprep.subr.mxu0 0.0
    %2323 = vmatpush2.msra.mxu0 0.0
    %2324 = vmatprep.mubr.f32.mxu0 0.0
    %2325 = vmatmul.mubr.f32.gmra.mxu0 %v2258
    %v2326 = vpop.f32.mrf.mxu0
    %v2327 = vadd.f32 0.0, %v2326
    %v2328 = vpop.f32.mrf.mxu0
    %2329 = vdwg.mxu0
    %v2330 = vadd.f32 %v2255, %v2327
    %v2331 = vxor.u32 %v2330, 2147483648
    %v2332 = vmul.f32 %v2331, 1.442695
    %v2333 = vpow.pop %v2332
    %v2334 = vadd.f32 %v2333, 1.0
    %v2335 = vrcp.pop %v2334
    %v2336 = vmul.f32 1.0, %v2335
    %v2337 = vmul.f32 %v2336, 2.0
    %v2338 = vsub.f32 %v2337, 1.0
    %v2339 = vmul.f32 %v2336, %v2068
    %2341 = vrot.lane.b32.xlu0 %v2338, 64
    %v2342 = vpop.permute.xlu0 %2341
    %v2344 = vmul.f32 %v2336, %v2342
    %2346 = vrot.lane.b32.xlu0 %v2344, 32
    %v2347 = vpop.permute.xlu0 %2346
    %v2349 = vadd.f32 %v2339, %v2347
    %v2350 = vtanh.pop %v2349
    %2352 = vrot.lane.b32.xlu0 %v2350, 64
    %v2353 = vpop.permute.xlu0 %2352
    %v2355 = vmul.f32 %v2336, %v2353
    %2357 = vrot.lane.b32.xlu0 %v2355, 32
    %v2358 = vpop.permute.xlu0 %2357
    %2360 = vst.msk [vmem:[#allocation2 + $0xe] sm:$0x3] %vm396, %v2358
    %v2361 = vld [vmem:[#allocation2] sm:$0xff]
    %v2362 = vld [vmem:[#allocation2 + $0x8] sm:$0xff]
    %v2363 = vld [vmem:[#allocation12] sm:$0xff]
    %v2364 = vld [vmem:[#allocation12 + $0x8] sm:$0xff]
    %v2365 = vld [vmem:[#allocation12 + $0x10] sm:$0xff]
    %v2366 = vld [vmem:[#allocation12 + $0x18] sm:$0xff]
    %v2367 = vld [vmem:[%s8] sm:$0x1]
    %v2369 = vlaneseq
    %v2370 = vshrl.u32 %v2369, 7
    %v2371 = vsub.s32 0, %v2370
    %v2372 = vrot.slane %v2367, %v2371
    %v2375 = vsel %vm166, %v2361, 0
    %v2378 = vsel %vm166, %v2362, 0
    %2380 = vmatprep.subr.mxu0 0.0
    %2381 = vmatpush1.msra.mxu0 0.0
    %2382 = vmatprep.subr.mxu0 0.0
    %2383 = vmatpush1.msra.mxu0 0.0
    %2384 = vmatprep.subr.mxu0 0.0
    %2385 = vmatpush1.msra.mxu0 0.0
    %2386 = vmatprep.subr.mxu0 0.0
    %2387 = vmatpush1.msra.mxu0 0.0
    %2388 = vmatprep.subr.mxu0 0.0
    %2389 = vmatpush1.msra.mxu0 0.0
    %2390 = vmatprep.subr.mxu0 0.0
    %2391 = vmatpush1.msra.mxu0 0.0
    %2392 = vmatprep.subr.mxu0 0.0
    %2393 = vmatpush1.msra.mxu0 0.0
    %2394 = vmatprep.subr.mxu0 0.0
    %2395 = vmatpush1.msra.mxu0 0.0
    %2396 = vmatprep.subr.mxu0 0.0
    %2397 = vmatpush1.msra.mxu0 0.0
    %2398 = vmatprep.subr.mxu0 0.0
    %2399 = vmatpush1.msra.mxu0 0.0
    %2400 = vmatprep.subr.mxu0 0.0
    %2401 = vmatpush1.msra.mxu0 0.0
    %2402 = vmatprep.subr.mxu0 0.0
    %2403 = vmatpush1.msra.mxu0 0.0
    %2404 = vmatprep.subr.mxu0 0.0
    %2405 = vmatpush1.msra.mxu0 %v2366
    %2406 = vmatprep.subr.mxu0 0.0
    %2407 = vmatpush1.msra.mxu0 %v2365
    %2408 = vmatprep.subr.mxu0 0.0
    %2409 = vmatpush1.msra.mxu0 %v2364
    %2410 = vmatprep.subr.mxu0 0.0
    %2411 = vmatpush1.msra.mxu0 %v2363
    %2412 = vmatprep.subr.mxu0 0.0
    %2413 = vmatpush2.msra.mxu0 0.0
    %2414 = vmatprep.subr.mxu0 0.0
    %2415 = vmatpush2.msra.mxu0 0.0
    %2416 = vmatprep.subr.mxu0 0.0
    %2417 = vmatpush2.msra.mxu0 0.0
    %2418 = vmatprep.subr.mxu0 0.0
    %2419 = vmatpush2.msra.mxu0 0.0
    %2420 = vmatprep.subr.mxu0 0.0
    %2421 = vmatpush2.msra.mxu0 0.0
    %2422 = vmatprep.subr.mxu0 0.0
    %2423 = vmatpush2.msra.mxu0 0.0
    %2424 = vmatprep.subr.mxu0 0.0
    %2425 = vmatpush2.msra.mxu0 0.0
    %2426 = vmatprep.subr.mxu0 0.0
    %2427 = vmatpush2.msra.mxu0 0.0
    %2428 = vmatprep.subr.mxu0 0.0
    %2429 = vmatpush2.msra.mxu0 0.0
    %2430 = vmatprep.subr.mxu0 0.0
    %2431 = vmatpush2.msra.mxu0 0.0
    %2432 = vmatprep.subr.mxu0 0.0
    %2433 = vmatpush2.msra.mxu0 0.0
    %2434 = vmatprep.subr.mxu0 0.0
    %2435 = vmatpush2.msra.mxu0 0.0
    %2436 = vmatprep.subr.mxu0 0.0
    %2437 = vmatpush2.msra.mxu0 0.0
    %2438 = vmatprep.subr.mxu0 0.0
    %2439 = vmatpush2.msra.mxu0 0.0
    %2440 = vmatprep.subr.mxu0 0.0
    %2441 = vmatpush2.msra.mxu0 0.0
    %2442 = vmatprep.subr.mxu0 0.0
    %2443 = vmatpush2.msra.mxu0 0.0
    %2444 = vmatprep.mubr.f32.mxu0 0.0
    %2445 = vmatmul.mubr.f32.gmra.mxu0 %v2375
    %v2446 = vpop.f32.mrf.mxu0
    %v2447 = vadd.f32 %v2372, %v2446
    %v2448 = vpop.f32.mrf.mxu0
    %2449 = vmatprep.mubr.f32.mxu0 0.0
    %2450 = vmatmul.mubr.f32.gmra.mxu0 %v2378
    %v2451 = vpop.f32.mrf.mxu0
    %v2452 = vadd.f32 %v2372, %v2451
    %v2453 = vpop.f32.mrf.mxu0
    %2454 = vdwg.mxu0
    %v2455 = vmax.f32 %v2447, 0.0
    %v2456 = vmax.f32 %v2452, 0.0
    %vm2457 = vcmask 523264
    %v2458 = vsel %vm2457, %v2455, 0.0
    %2459 = vadd.xlane.f32.xlu0 %v2458
    %v2460 = vpop.xlane.xlu0 %2459
    %v2461 = vsel %vm2457, %v2456, 0.0
    %2462 = vadd.xlane.f32.xlu0 %v2461
    %v2463 = vpop.xlane.xlu0 %2462
    %v2464 = vrcp.pop 64.0
    %v2465 = vmul.f32 %v2460, %v2464
    %v2466 = vmul.f32 %v2463, %v2464
    %v2467 = vsub.f32 %v2455, %v2465
    %v2468 = vsub.f32 %v2456, %v2466
    %v2469 = vmul.f32 %v2467, %v2467
    %v2470 = vmul.f32 %v2468, %v2468
    %v2471 = vsel %vm2457, %v2469, 0.0
    %2472 = vadd.xlane.f32.xlu0 %v2471
    %v2473 = vpop.xlane.xlu0 %2472
    %v2474 = vsel %vm2457, %v2470, 0.0
    %2475 = vadd.xlane.f32.xlu0 %v2474
    %v2476 = vpop.xlane.xlu0 %2475
    %v2477 = vmul.f32 %v2473, %v2464
    %v2478 = vmul.f32 %v2476, %v2464
    %v2479 = vadd.f32 %v2477, 1e-05
    %v2480 = vadd.f32 %v2478, 1e-05
    %v2481 = vrsqrt.pop %v2479
    %v2482 = vrsqrt.pop %v2480
    %v2483 = vmul.f32 %v2467, %v2481
    %v2484 = vmul.f32 %v2468, %v2482
    %v2485 = vld [vmem:[%s9] sm:$0x1]
    %v2487 = vlaneseq
    %v2488 = vshrl.u32 %v2487, 7
    %v2489 = vsub.s32 0, %v2488
    %v2490 = vrot.slane %v2485, %v2489
    %v2492 = vmul.f32 %v2483, %v2490
    %v2493 = vmul.f32 %v2484, %v2490
    %v2494 = vld [vmem:[%s10] sm:$0x1]
    %v2496 = vlaneseq
    %v2497 = vshrl.u32 %v2496, 7
    %v2498 = vsub.s32 0, %v2497
    %v2499 = vrot.slane %v2494, %v2498
    %v2501 = vadd.f32 %v2492, %v2499
    %v2502 = vadd.f32 %v2493, %v2499
    %v2503 = vmax.f32 %v2501, 0.0
    %v2504 = vmax.f32 %v2502, 0.0
    %v2505 = vld [vmem:[#allocation14] sm:$0xff]
    %v2506 = vld [vmem:[#allocation14 + $0x8] sm:$0xff]
    %v2507 = vld [vmem:[#allocation14 + $0x10] sm:$0xff]
    %v2508 = vld [vmem:[#allocation14 + $0x18] sm:$0xff]
    %v2509 = vld [vmem:[#allocation14 + $0x20] sm:$0xff]
    %v2510 = vld [vmem:[#allocation14 + $0x28] sm:$0xff]
    %v2511 = vld [vmem:[#allocation14 + $0x30] sm:$0xff]
    %v2512 = vld [vmem:[#allocation14 + $0x38] sm:$0xff]
    %v2513 = vld [vmem:[%s12] sm:$0x1]
    %v2515 = vlaneseq
    %v2516 = vshrl.u32 %v2515, 7
    %v2517 = vsub.s32 0, %v2516
    %v2518 = vrot.slane %v2513, %v2517
    %v2521 = vsel %vm2457, %v2503, 0
    %v2524 = vsel %vm2457, %v2504, 0
    %2526 = vmatprep.subr.mxu0 0.0
    %2527 = vmatpush1.msra.mxu0 0.0
    %2528 = vmatprep.subr.mxu0 0.0
    %2529 = vmatpush1.msra.mxu0 0.0
    %2530 = vmatprep.subr.mxu0 0.0
    %2531 = vmatpush1.msra.mxu0 0.0
    %2532 = vmatprep.subr.mxu0 0.0
    %2533 = vmatpush1.msra.mxu0 0.0
    %2534 = vmatprep.subr.mxu0 0.0
    %2535 = vmatpush1.msra.mxu0 0.0
    %2536 = vmatprep.subr.mxu0 0.0
    %2537 = vmatpush1.msra.mxu0 0.0
    %2538 = vmatprep.subr.mxu0 0.0
    %2539 = vmatpush1.msra.mxu0 0.0
    %2540 = vmatprep.subr.mxu0 0.0
    %2541 = vmatpush1.msra.mxu0 0.0
    %2542 = vmatprep.subr.mxu0 0.0
    %2543 = vmatpush1.msra.mxu0 %v2512
    %2544 = vmatprep.subr.mxu0 0.0
    %2545 = vmatpush1.msra.mxu0 %v2511
    %2546 = vmatprep.subr.mxu0 0.0
    %2547 = vmatpush1.msra.mxu0 %v2510
    %2548 = vmatprep.subr.mxu0 0.0
    %2549 = vmatpush1.msra.mxu0 %v2509
    %2550 = vmatprep.subr.mxu0 0.0
    %2551 = vmatpush1.msra.mxu0 %v2508
    %2552 = vmatprep.subr.mxu0 0.0
    %2553 = vmatpush1.msra.mxu0 %v2507
    %2554 = vmatprep.subr.mxu0 0.0
    %2555 = vmatpush1.msra.mxu0 %v2506
    %2556 = vmatprep.subr.mxu0 0.0
    %2557 = vmatpush1.msra.mxu0 %v2505
    %2558 = vmatprep.subr.mxu0 0.0
    %2559 = vmatpush2.msra.mxu0 0.0
    %2560 = vmatprep.subr.mxu0 0.0
    %2561 = vmatpush2.msra.mxu0 0.0
    %2562 = vmatprep.subr.mxu0 0.0
    %2563 = vmatpush2.msra.mxu0 0.0
    %2564 = vmatprep.subr.mxu0 0.0
    %2565 = vmatpush2.msra.mxu0 0.0
    %2566 = vmatprep.subr.mxu0 0.0
    %2567 = vmatpush2.msra.mxu0 0.0
    %2568 = vmatprep.subr.mxu0 0.0
    %2569 = vmatpush2.msra.mxu0 0.0
    %2570 = vmatprep.subr.mxu0 0.0
    %2571 = vmatpush2.msra.mxu0 0.0
    %2572 = vmatprep.subr.mxu0 0.0
    %2573 = vmatpush2.msra.mxu0 0.0
    %2574 = vmatprep.subr.mxu0 0.0
    %2575 = vmatpush2.msra.mxu0 0.0
    %2576 = vmatprep.subr.mxu0 0.0
    %2577 = vmatpush2.msra.mxu0 0.0
    %2578 = vmatprep.subr.mxu0 0.0
    %2579 = vmatpush2.msra.mxu0 0.0
    %2580 = vmatprep.subr.mxu0 0.0
    %2581 = vmatpush2.msra.mxu0 0.0
    %2582 = vmatprep.subr.mxu0 0.0
    %2583 = vmatpush2.msra.mxu0 0.0
    %2584 = vmatprep.subr.mxu0 0.0
    %2585 = vmatpush2.msra.mxu0 0.0
    %2586 = vmatprep.subr.mxu0 0.0
    %2587 = vmatpush2.msra.mxu0 0.0
    %2588 = vmatprep.subr.mxu0 0.0
    %2589 = vmatpush2.msra.mxu0 0.0
    %2590 = vmatprep.mubr.f32.mxu0 0.0
    %2591 = vmatmul.mubr.f32.gmra.mxu0 %v2521
    %v2592 = vpop.f32.mrf.mxu0
    %v2593 = vadd.f32 %v2518, %v2592
    %v2594 = vpop.f32.mrf.mxu0
    %2595 = vmatprep.mubr.f32.mxu0 0.0
    %2596 = vmatmul.mubr.f32.gmra.mxu0 %v2524
    %v2597 = vpop.f32.mrf.mxu0
    %v2598 = vadd.f32 %v2518, %v2597
    %v2599 = vpop.f32.mrf.mxu0
    %2600 = vdwg.mxu0
    %v2601 = vmax.f32 %v2593, 0.0
    %v2602 = vmax.f32 %v2598, 0.0
    %v2603 = vsel %vm2457, %v2601, 0.0
    %2604 = vadd.xlane.f32.xlu0 %v2603
    %v2605 = vpop.xlane.xlu0 %2604
    %v2606 = vsel %vm2457, %v2602, 0.0
    %2607 = vadd.xlane.f32.xlu0 %v2606
    %v2608 = vpop.xlane.xlu0 %2607
    %v2609 = vmul.f32 %v2605, %v2464
    %v2610 = vmul.f32 %v2608, %v2464
    %v2611 = vsub.f32 %v2601, %v2609
    %v2612 = vsub.f32 %v2602, %v2610
    %v2613 = vmul.f32 %v2611, %v2611
    %v2614 = vmul.f32 %v2612, %v2612
    %v2615 = vsel %vm2457, %v2613, 0.0
    %2616 = vadd.xlane.f32.xlu0 %v2615
    %v2617 = vpop.xlane.xlu0 %2616
    %v2618 = vsel %vm2457, %v2614, 0.0
    %2619 = vadd.xlane.f32.xlu0 %v2618
    %v2620 = vpop.xlane.xlu0 %2619
    %v2621 = vmul.f32 %v2617, %v2464
    %v2622 = vmul.f32 %v2620, %v2464
    %v2623 = vadd.f32 %v2621, 1e-05
    %v2624 = vadd.f32 %v2622, 1e-05
    %v2625 = vrsqrt.pop %v2623
    %v2626 = vrsqrt.pop %v2624
    %v2627 = vmul.f32 %v2611, %v2625
    %v2628 = vmul.f32 %v2612, %v2626
    %v2629 = vld [vmem:[%s13] sm:$0x1]
    %v2631 = vlaneseq
    %v2632 = vshrl.u32 %v2631, 7
    %v2633 = vsub.s32 0, %v2632
    %v2634 = vrot.slane %v2629, %v2633
    %v2636 = vmul.f32 %v2627, %v2634
    %v2637 = vmul.f32 %v2628, %v2634
    %v2638 = vld [vmem:[%s14] sm:$0x1]
    %v2640 = vlaneseq
    %v2641 = vshrl.u32 %v2640, 7
    %v2642 = vsub.s32 0, %v2641
    %v2643 = vrot.slane %v2638, %v2642
    %v2645 = vadd.f32 %v2636, %v2643
    %v2646 = vadd.f32 %v2637, %v2643
    %v2647 = vmax.f32 %v2645, 0.0
    %v2648 = vmax.f32 %v2646, 0.0
    %v2649 = vld [vmem:[%s15] sm:$0x1]
    %v2651 = vlaneseq
    %v2652 = vshrl.u32 %v2651, 7
    %v2653 = vsub.s32 0, %v2652
    %v2654 = vrot.slane %v2649, %v2653
    %v2656 = vmul.f32 %v2647, %v2654
    %v2657 = vmul.f32 %v2648, %v2654
    %v2658 = vsel %vm2457, %v2656, 0.0
    %2659 = vadd.xlane.f32.xlu0 %v2658
    %v2660 = vpop.xlane.xlu0 %2659
    %v2661 = vsel %vm2457, %v2657, 0.0
    %2662 = vadd.xlane.f32.xlu0 %v2661
    %v2663 = vpop.xlane.xlu0 %2662
    %v2664 = vld [vmem:[#allocation3] sm:$0x1]
    %v2666 = vlaneseq
    %v2667 = vshrl.u32 %v2666, 7
    %v2668 = vsub.s32 0, %v2667
    %v2669 = vrot.slane %v2664, %v2668
    %v2671 = vadd.f32 %v2660, %v2669
    %v2672 = vadd.f32 %v2663, %v2669
    %v2673 = vxor.u32 %v2671, 2147483648
    %v2674 = vxor.u32 %v2672, 2147483648
    %v2675 = vmul.f32 %v2673, 1.442695
    %v2676 = vpow.pop %v2675
    %v2677 = vmul.f32 %v2674, 1.442695
    %v2678 = vpow.pop %v2677
    %v2679 = vadd.f32 %v2676, 1.0
    %v2680 = vadd.f32 %v2678, 1.0
    %v2681 = vrcp.pop %v2679
    %v2682 = vmul.f32 1.0, %v2681
    %v2683 = vrcp.pop %v2680
    %v2684 = vmul.f32 1.0, %v2683
    %vm2685 = vcmask 7168
    %2686 = vst.msk [vmem:[%s17] sm:$0xff] %vm2685, %v2682
    %2687 = vst.msk [vmem:[%s17 + $0x8] sm:$0xff] %vm2685, %v2684
    // Predicated region
    $region98: #{tpu_custom_call.1} parent=1 // pred_check
      _
    $region99: #{tpu_custom_call.1} parent=1 // pred_check_branch
      %2689 = sbr.rel (0) target = $region101
    $region100: #{tpu_custom_call.1} parent=1 // pred_region
      _
    $region101: #{tpu_custom_call.1} parent=1 // pred_fallthru
      _
    // Predicated region
    $region102: #{tpu_custom_call.1} parent=1 // pred_check
      _
    $region103: #{tpu_custom_call.1} parent=1 // pred_check_branch
      %2691 = sbr.rel (0) target = $region105
    $region104: #{tpu_custom_call.1} parent=1 // pred_region
      _
    $region105: #{tpu_custom_call.1} parent=1 // pred_fallthru
      _
    %2692 = vsyncpa [#allocation5], 1
    %2693 = vsyncpa [#allocation7], 1
    %2694 = vsyncpa [#allocation10], 1
    %2695 = vsyncpa [#allocation13], 1

</llo_original>
